<compile_context>
chip_gen: v6e
topology: v6e:2x2x1
jax: 0.10.0
libtpu: 0.0.40
codegen_flags: <defaults>
</compile_context>

<pallas_src>
import functools

import jax
import jax.numpy as jnp
from jax import lax
from jax.experimental import pallas as pl
from jax.experimental.pallas import tpu as pltpu

D_MODEL = 32
N_HEAD = 4
HEAD_DIM = D_MODEL // N_HEAD
DIM_FF = 64
NUM_LAYERS = 2
EPS = 1e-5

_WEIGHT_NAMES = (
    "sa_wqk", "sa_bqk", "sa_wv", "sa_bv", "sa_wo", "sa_bo",
    "xa_wqk", "xa_bqk", "xa_wv", "xa_bv", "xa_wo", "xa_bo",
    "ff_w1", "ff_b1", "ff_w2", "ff_b2",
    "n1_w", "n1_b", "n2_w", "n2_b", "n3_w", "n3_b",
)


# ----------------------------------------------------------------------------
# Fused encoder kernel factory: one grid step == one cross-encoder layer
# ----------------------------------------------------------------------------
def _make_kernel(has_pos, S, B):
    D, H, Hd, FF = D_MODEL, N_HEAD, HEAD_DIM, DIM_FF
    SB = S * B
    R = 2 * SB          # rows: first SB = src (row = s*B + b), last SB = tgt
    NEG = -1e30

    def kernel(*refs):
        if has_pos:
            (src_r, tgt_r, psrc_r, ptgt_r, wqkv_r, wout_r, wff2_r, b_r,
             src_o, tgt_o, x_sc, pos_sc) = refs
        else:
            (src_r, tgt_r, wqkv_r, wout_r, wff2_r, b_r,
             src_o, tgt_o, x_sc) = refs

        layer = pl.program_id(0)

        # Layer 0: seed the resident VMEM state from the (free-reshaped) inputs.
        @pl.when(layer == 0)
        def _seed():
            x_sc[0:SB, :] = src_r[...]
            x_sc[SB:R, :] = tgt_r[...]
            if has_pos:
                pos_sc[0:SB, :] = psrc_r[...]
                pos_sc[SB:R, :] = ptgt_r[...]

        x = x_sc[...]                                   # (R, D)
        pos = pos_sc[...] if has_pos else None

        # --- unpack the per-layer slabs (tiny static slices, once per layer) ---
        wqkv = wqkv_r[0]                                # (2D or D, 6D): [self | cross]
        wout = wout_r[0]                                # (D, 128): [sa_wo | xa_wo | ff_w1]
        wff2 = wff2_r[0]                                # (FF, D)
        bsl = b_r[0]                                    # (8, 128) packed biases / LN params

        wz_sa = wqkv[:, 0:3 * D]
        wz_xa = wqkv[:, 3 * D:6 * D]
        bz_sa = bsl[0:1, 0:3 * D]
        bz_xa = bsl[1:2, 0:3 * D]
        sa_wo = wout[:, 0:D]
        xa_wo = wout[:, D:2 * D]
        ff_w1 = wout[:, 2 * D:2 * D + FF]
        sa_bo = bsl[2:3, 0:D]
        xa_bo = bsl[2:3, D:2 * D]
        ff_b1 = bsl[2:3, 2 * D:2 * D + FF]
        ff_b2 = bsl[3:4, 0:D]
        n1w = bsl[3:4, D:2 * D]
        n1b = bsl[3:4, 2 * D:3 * D]
        n2w = bsl[3:4, 3 * D:4 * D]
        n2b = bsl[4:5, 0:D]
        n3w = bsl[4:5, D:2 * D]
        n3b = bsl[4:5, 2 * D:3 * D]

        # --- (stream, batch) masks replace per-stream batching & the cross K/V swap ---
        rid = lax.broadcasted_iota(jnp.int32, (R, R), 0)
        cid = lax.broadcasted_iota(jnp.int32, (R, R), 1)
        same_batch = (rid % B) == (cid % B)
        q_tgt = rid >= SB
        k_tgt = cid >= SB
        self_mask = same_batch & (q_tgt == k_tgt)       # src<-src, tgt<-tgt
        cross_mask = same_batch & (q_tgt != k_tgt)      # src<-tgt, tgt<-src

        def layer_norm(z, w, b):
            m = jnp.mean(z, axis=-1, keepdims=True)
            ms = jnp.mean(z * z, axis=-1, keepdims=True)
            inv = lax.rsqrt(ms - m * m + EPS)
            return (z - m) * inv * w + b

        def attention(x_cur, wz, bz, wo, bo, mask):
            # Single fused QKV projection.  Q/K take (x + pos) via the stacked weight
            # rows; V takes x only (pos rows of the V columns are zero).
            z = jnp.concatenate([x_cur, pos], axis=-1) if has_pos else x_cur
            qkv = jnp.dot(z, wz, preferred_element_type=jnp.float32) + bz    # (R, 3D)
            out = jnp.zeros((R, D), jnp.float32)
            for h in range(H):
                lo = h * Hd
                qh = qkv[:, lo:lo + Hd]
                kh = qkv[:, D + lo:D + lo + Hd]
                vh = qkv[:, 2 * D + lo:2 * D + lo + Hd]
                s = lax.dot_general(qh, kh, (((1,), (1,)), ((), ())),
                                    preferred_element_type=jnp.float32)      # (R, R)
                s = jnp.where(mask, s, NEG)
                s = s - jnp.max(s, axis=-1, keepdims=True)
                p = jnp.exp(s)
                p = p * pl.reciprocal(jnp.sum(p, axis=-1, keepdims=True), approx=True)
                ah = jnp.dot(p, vh, preferred_element_type=jnp.float32)      # (R, Hd)
                # accumulate the output projection per head (no lane-axis concat)
                out = out + jnp.dot(ah, wo[lo:lo + Hd, :],
                                    preferred_element_type=jnp.float32)
            return out + bo

        # --- self attention + add & norm ---
        x = layer_norm(x + attention(x, wz_sa, bz_sa, sa_wo, sa_bo, self_mask), n1w, n1b)
        # --- cross attention (both directions via the mask) + add & norm ---
        x = layer_norm(x + attention(x, wz_xa, bz_xa, xa_wo, xa_bo, cross_mask), n2w, n2b)
        # --- feed forward + add & norm ---
        h1 = jnp.maximum(jnp.dot(x, ff_w1, preferred_element_type=jnp.float32) + ff_b1, 0.0)
        y = jnp.dot(h1, wff2, preferred_element_type=jnp.float32) + ff_b2
        x = layer_norm(x + y, n3w, n3b)

        x_sc[...] = x                                   # resident state for next layer

        @pl.when(layer == NUM_LAYERS - 1)
        def _store():
            src_o[...] = x[0:SB, :]
            tgt_o[...] = x[SB:R, :]

    return kernel


# ----------------------------------------------------------------------------
# Weight packing: 22 per-layer tensors -> 4 lane-dense stacked slabs
# ----------------------------------------------------------------------------
def pack_params(params, has_pos=True):
    D, Hd, FF = D_MODEL, HEAD_DIM, DIM_FF
    scale = 1.0 / float(Hd) ** 0.5
    zD = jnp.zeros((D,), jnp.float32)
    w_qkv, w_out, w_ff2, b_sl = [], [], [], []
    for l in range(NUM_LAYERS):
        def wz_b(prefix):
            wqk = params[prefix + "_wqk"][l]
            bqk = params[prefix + "_bqk"][l][0]
            wv = params[prefix + "_wv"][l]
            bv = params[prefix + "_bv"][l][0]
            wq = wqk[:, :D] * scale                      # fold 1/sqrt(Hd) into Q
            wk = wqk[:, D:]
            top = jnp.concatenate([wq, wk, wv], axis=1)  # x rows
            if has_pos:
                bot = jnp.concatenate([wq, wk, jnp.zeros((D, D), jnp.float32)], axis=1)
                wz = jnp.concatenate([top, bot], axis=0)  # pos rows (V part = 0)
            else:
                wz = top
            bz = jnp.concatenate([bqk[:D] * scale, bqk[D:], bv])
            return wz, bz

        wz_sa, bz_sa = wz_b("sa")
        wz_xa, bz_xa = wz_b("xa")
        w_qkv.append(jnp.concatenate([wz_sa, wz_xa], axis=1))                 # (2D, 6D)
        w_out.append(jnp.concatenate([params["sa_wo"][l], params["xa_wo"][l],
                                      params["ff_w1"][l]], axis=1))           # (D, 128)
        w_ff2.append(params["ff_w2"][l])                                      # (FF, D)
        rows = [
            jnp.concatenate([bz_sa, zD]),
            jnp.concatenate([bz_xa, zD]),
            jnp.concatenate([params["sa_bo"][l][0], params["xa_bo"][l][0],
                             params["ff_b1"][l][0]]),
            jnp.concatenate([params["ff_b2"][l][0], params["n1_w"][l][0],
                             params["n1_b"][l][0], params["n2_w"][l][0]]),
            jnp.concatenate([params["n2_b"][l][0], params["n3_w"][l][0],
                             params["n3_b"][l][0], zD]),
            jnp.zeros((128,), jnp.float32),
            jnp.zeros((128,), jnp.float32),
            jnp.zeros((128,), jnp.float32),
        ]
        b_sl.append(jnp.stack(rows))                                          # (8, 128)
    return {"w_qkv": jnp.stack(w_qkv), "w_out": jnp.stack(w_out),
            "w_ff2": jnp.stack(w_ff2), "b": jnp.stack(b_sl)}


# ----------------------------------------------------------------------------
# Wrapper: one pallas_call for the whole encoder, no host-side layout ops
# ----------------------------------------------------------------------------
@jax.jit
def _encoder_jit(src, tgt, packed, src_pos, tgt_pos):
    S, B, D = src.shape
    assert D == D_MODEL
    SB = S * B
    R = 2 * SB
    has_pos = (src_pos is not None) or (tgt_pos is not None)
    assert packed["w_qkv"].shape[1] == (2 * D if has_pos else D), \
        "packed params do not match positional-embedding usage"

    # Free reshapes only (merge leading dims): row order stays (s, b).
    src2 = src.reshape(SB, D).astype(jnp.float32)
    tgt2 = tgt.reshape(SB, D).astype(jnp.float32)
    inputs = [src2, tgt2]
    if has_pos:
        sp = src_pos if src_pos is not None else jnp.zeros_like(src)
        tp = tgt_pos if tgt_pos is not None else jnp.zeros_like(tgt)
        inputs += [sp.reshape(SB, D).astype(jnp.float32),
                   tp.reshape(SB, D).astype(jnp.float32)]
    weights = [packed["w_qkv"], packed["w_out"], packed["w_ff2"], packed["b"]]

    def full(shape):
        nd = len(shape)
        return pl.BlockSpec(tuple(shape), lambda l, nd=nd: (0,) * nd)

    def stacked(shape):
        nd = len(shape)
        return pl.BlockSpec((1,) + tuple(shape[1:]),
                            lambda l, nd=nd: (l,) + (0,) * (nd - 1))

    scratch = [pltpu.VMEM((R, D), jnp.float32)]          # resident [src; tgt] activations
    if has_pos:
        scratch.append(pltpu.VMEM((R, D), jnp.float32))  # resident positional embeddings

    src_o, tgt_o = pl.pallas_call(
        _make_kernel(has_pos, S, B),
        out_shape=(jax.ShapeDtypeStruct((SB, D), jnp.float32),
                   jax.ShapeDtypeStruct((SB, D), jnp.float32)),
        grid=(NUM_LAYERS,),
        in_specs=[full(a.shape) for a in inputs] + [stacked(w.shape) for w in weights],
        out_specs=(full((SB, D)), full((SB, D))),
        scratch_shapes=scratch,
        compiler_params=pltpu.CompilerParams(dimension_semantics=("arbitrary",)),
    )(*inputs, *weights)

    return src_o.reshape(1, S, B, D), tgt_o.reshape(1, S, B, D)


def transformer_cross_encoder(src, tgt, packed, src_pos=None, tgt_pos=None):
    """src, tgt, *_pos: (S, B, D) PyTorch transformer convention.
    Returns (src_out, tgt_out), each (1, S, B, D) (norm=None, return_intermediate=False)."""
    return _encoder_jit(src, tgt, packed, src_pos, tgt_pos)


# ----------------------------------------------------------------------------
# Deterministic parameter init (raw per-layer tensors, stacked along the layer axis)
# ----------------------------------------------------------------------------
def init_params(key):
    def w(k, shape, scale=0.05):
        return jax.random.normal(k, shape, jnp.float32) * scale

    p = {name: [] for name in _WEIGHT_NAMES}
    for _ in range(NUM_LAYERS):
        key, *ks = jax.random.split(key, 15)
        p["sa_wqk"].append(w(ks[0], (D_MODEL, 2 * D_MODEL)))
        p["sa_bqk"].append(w(ks[1], (1, 2 * D_MODEL)))
        p["sa_wv"].append(w(ks[2], (D_MODEL, D_MODEL)))
        p["sa_bv"].append(w(ks[3], (1, D_MODEL)))
        p["sa_wo"].append(w(ks[4], (D_MODEL, D_MODEL)))
        p["sa_bo"].append(w(ks[5], (1, D_MODEL)))
        p["xa_wqk"].append(w(ks[6], (D_MODEL, 2 * D_MODEL)))
        p["xa_bqk"].append(w(ks[7], (1, 2 * D_MODEL)))
        p["xa_wv"].append(w(ks[8], (D_MODEL, D_MODEL)))
        p["xa_bv"].append(w(ks[9], (1, D_MODEL)))
        p["xa_wo"].append(w(ks[10], (D_MODEL, D_MODEL)))
        p["xa_bo"].append(w(ks[11], (1, D_MODEL)))
        p["ff_w1"].append(w(ks[12], (D_MODEL, DIM_FF)))
        p["ff_b1"].append(jnp.zeros((1, DIM_FF), jnp.float32))
        p["ff_w2"].append(w(ks[13], (DIM_FF, D_MODEL)))
        p["ff_b2"].append(jnp.zeros((1, D_MODEL), jnp.float32))
        for n in ("n1_w", "n2_w", "n3_w"):
            p[n].append(jnp.ones((1, D_MODEL), jnp.float32))
        for n in ("n1_b", "n2_b", "n3_b"):
            p[n].append(jnp.zeros((1, D_MODEL), jnp.float32))
    return {name: jnp.stack(vals) for name, vals in p.items()}


# ----------------------------------------------------------------------------
# Pure-JAX reference (mirrors the original per-stream layer structure)
# ----------------------------------------------------------------------------
def _reference_encoder(src, tgt, sp, tp, params):
    D = D_MODEL

    def layer_norm(z, w, b):
        m = jnp.mean(z, -1, keepdims=True)
        v = jnp.mean((z - m) ** 2, -1, keepdims=True)
        return (z - m) / jnp.sqrt(v + EPS) * w + b

    def mha(q_in, k_in, v_in, wq, bq, wk, bk, wv, bv, wo, bo):
        Bn, S, _ = q_in.shape
        q = q_in @ wq + bq
        k = k_in @ wk + bk
        v = v_in @ wv + bv
        split = lambda t: t.reshape(Bn, S, N_HEAD, HEAD_DIM).transpose(0, 2, 1, 3)
        qh, kh, vh = split(q), split(k), split(v)
        s = jnp.einsum("bhqd,bhkd->bhqk", qh, kh) / jnp.sqrt(float(HEAD_DIM))
        a = jax.nn.softmax(s, axis=-1)
        o = jnp.einsum("bhqk,bhkd->bhqd", a, vh).transpose(0, 2, 1, 3).reshape(Bn, S, D)
        return o @ wo + bo

    for l in range(NUM_LAYERS):
        def attn_w(prefix):
            wqk = params[prefix + "_wqk"][l]
            bqk = params[prefix + "_bqk"][l]
            return (wqk[:, :D], bqk[:, :D], wqk[:, D:], bqk[:, D:],
                    params[prefix + "_wv"][l], params[prefix + "_bv"][l],
                    params[prefix + "_wo"][l], params[prefix + "_bo"][l])

        sa_w, xa_w = attn_w("sa"), attn_w("xa")
        n1w, n1b = params["n1_w"][l], params["n1_b"][l]
        n2w, n2b = params["n2_w"][l], params["n2_b"][l]
        n3w, n3b = params["n3_w"][l], params["n3_b"][l]
        w1, b1 = params["ff_w1"][l], params["ff_b1"][l]
        w2, b2 = params["ff_w2"][l], params["ff_b2"][l]

        qs = src + sp
        src = layer_norm(src + mha(qs, qs, src, *sa_w), n1w, n1b)
        qt = tgt + tp
        tgt = layer_norm(tgt + mha(qt, qt, tgt, *sa_w), n1w, n1b)

        src_w, tgt_w = src + sp, tgt + tp
        src2 = mha(src_w, tgt_w, tgt, *xa_w)
        tgt2 = mha(tgt_w, src_w, src, *xa_w)
        src = layer_norm(src + src2, n2w, n2b)
        tgt = layer_norm(tgt + tgt2, n2w, n2b)

        src = layer_norm(src + (jnp.maximum(src @ w1 + b1, 0.0) @ w2 + b2), n3w, n3b)
        tgt = layer_norm(tgt + (jnp.maximum(tgt @ w1 + b1, 0.0) @ w2 + b2), n3w, n3b)
    return src, tgt


if __name__ == "__main__":
    S, B = 8, 2
    key = jax.random.PRNGKey(0)
    k1, k2, k3, k4, k5 = jax.random.split(key, 5)

    src = jax.random.normal(k1, (S, B, D_MODEL), jnp.float32)
    tgt = jax.random.normal(k2, (S, B, D_MODEL), jnp.float32)
    src_pos = jax.random.normal(k3, (S, B, D_MODEL), jnp.float32) * 0.1
    tgt_pos = jax.random.normal(k4, (S, B, D_MODEL), jnp.float32) * 0.1

    params = init_params(k5)
    packed = pack_params(params, has_pos=True)

    src_out, tgt_out = transformer_cross_encoder(src, tgt, packed,
                                                 src_pos=src_pos, tgt_pos=tgt_pos)
    jax.block_until_ready((src_out, tgt_out))

    assert src_out.shape == (1, S, B, D_MODEL)
    assert tgt_out.shape == (1, S, B, D_MODEL)
    assert bool(jnp.all(jnp.isfinite(src_out))) and bool(jnp.all(jnp.isfinite(tgt_out)))

    # Sanity check vs a pure-JAX reference (loose tol: approx reciprocal in the softmax).
    src_b = jnp.transpose(src, (1, 0, 2))
    tgt_b = jnp.transpose(tgt, (1, 0, 2))
    sp = jnp.transpose(src_pos, (1, 0, 2))
    tp = jnp.transpose(tgt_pos, (1, 0, 2))
    ref_src, ref_tgt = _reference_encoder(src_b, tgt_b, sp, tp, params)
    ref_src = jnp.transpose(ref_src, (1, 0, 2))[None]
    ref_tgt = jnp.transpose(ref_tgt, (1, 0, 2))[None]
    err = max(float(jnp.max(jnp.abs(src_out - ref_src))),
              float(jnp.max(jnp.abs(tgt_out - ref_tgt))))
    assert err < 5e-2, f"max abs error vs reference: {err}"

    print("KERNEL_OK")
</pallas_src>

<mosaic_0001>
module attributes {stable_mosaic.version = 11 : i64} {
  func.func @kernel(%arg0: i32, %arg1: memref<16x32xf32, #tpu.memory_space<vmem>>, %arg2: memref<16x32xf32, #tpu.memory_space<vmem>>, %arg3: memref<16x32xf32, #tpu.memory_space<vmem>>, %arg4: memref<16x32xf32, #tpu.memory_space<vmem>>, %arg5: memref<1x64x192xf32, #tpu.memory_space<vmem>>, %arg6: memref<1x32x128xf32, #tpu.memory_space<vmem>>, %arg7: memref<1x64x32xf32, #tpu.memory_space<vmem>>, %arg8: memref<1x8x128xf32, #tpu.memory_space<vmem>>, %arg9: memref<16x32xf32, #tpu.memory_space<vmem>>, %arg10: memref<16x32xf32, #tpu.memory_space<vmem>>, %arg11: memref<32x32xf32, #tpu.memory_space<vmem>>, %arg12: memref<32x32xf32, #tpu.memory_space<vmem>>) attributes {dimension_semantics = [#tpu.dimension_semantics<arbitrary>], iteration_bounds = array<i64: 2>, scalar_prefetch = 0 : i64, scratch_operands = 2 : i64, tpu.core_type = #tpu.core_type<tc>, window_params = [{pipeline_mode = #tpu.pipeline_mode<synchronous>, transform_indices = @transform_0, window_bounds = array<i64: 16, 32>}, {pipeline_mode = #tpu.pipeline_mode<synchronous>, transform_indices = @transform_1, window_bounds = array<i64: 16, 32>}, {pipeline_mode = #tpu.pipeline_mode<synchronous>, transform_indices = @transform_2, window_bounds = array<i64: 16, 32>}, {pipeline_mode = #tpu.pipeline_mode<synchronous>, transform_indices = @transform_3, window_bounds = array<i64: 16, 32>}, {transform_indices = @transform_4, window_bounds = array<i64: 1, 64, 192>}, {transform_indices = @transform_5, window_bounds = array<i64: 1, 32, 128>}, {transform_indices = @transform_6, window_bounds = array<i64: 1, 64, 32>}, {transform_indices = @transform_7, window_bounds = array<i64: 1, 8, 128>}, {pipeline_mode = #tpu.pipeline_mode<synchronous>, transform_indices = @transform_8, window_bounds = array<i64: 16, 32>}, {pipeline_mode = #tpu.pipeline_mode<synchronous>, transform_indices = @transform_9, window_bounds = array<i64: 16, 32>}]} {
    %c0_i32 = arith.constant 0 : i32
    %0 = arith.cmpi eq, %arg0, %c0_i32 : i32
    %1 = arith.extui %0 : i1 to i32
    %c0_i32_0 = arith.constant 0 : i32
    %2 = arith.cmpi ne, %1, %c0_i32_0 : i32
    scf.if %2 {
      %c0_101 = arith.constant 0 : index
      %c0_102 = arith.constant 0 : index
      %329 = vector.load %arg1[%c0_101, %c0_102] : memref<16x32xf32, #tpu.memory_space<vmem>>, vector<16x32xf32>
      %c0_103 = arith.constant 0 : index
      %c0_104 = arith.constant 0 : index
      %330 = vector.load %arg11[%c0_103, %c0_104] : memref<32x32xf32, #tpu.memory_space<vmem>>, vector<16x32xf32>
      tpu.vector_store %arg11[%c0_103, %c0_104], %329 {strides = array<i32>} : memref<32x32xf32, #tpu.memory_space<vmem>>, vector<16x32xf32>,
      %c0_105 = arith.constant 0 : index
      %c0_106 = arith.constant 0 : index
      %331 = vector.load %arg2[%c0_105, %c0_106] : memref<16x32xf32, #tpu.memory_space<vmem>>, vector<16x32xf32>
      %c16 = arith.constant 16 : index
      %c0_107 = arith.constant 0 : index
      %332 = vector.load %arg11[%c16, %c0_107] : memref<32x32xf32, #tpu.memory_space<vmem>>, vector<16x32xf32>
      tpu.vector_store %arg11[%c16, %c0_107], %331 {strides = array<i32>} : memref<32x32xf32, #tpu.memory_space<vmem>>, vector<16x32xf32>,
      %c0_108 = arith.constant 0 : index
      %c0_109 = arith.constant 0 : index
      %333 = vector.load %arg3[%c0_108, %c0_109] : memref<16x32xf32, #tpu.memory_space<vmem>>, vector<16x32xf32>
      %c0_110 = arith.constant 0 : index
      %c0_111 = arith.constant 0 : index
      %334 = vector.load %arg12[%c0_110, %c0_111] : memref<32x32xf32, #tpu.memory_space<vmem>>, vector<16x32xf32>
      tpu.vector_store %arg12[%c0_110, %c0_111], %333 {strides = array<i32>} : memref<32x32xf32, #tpu.memory_space<vmem>>, vector<16x32xf32>,
      %c0_112 = arith.constant 0 : index
      %c0_113 = arith.constant 0 : index
      %335 = vector.load %arg4[%c0_112, %c0_113] : memref<16x32xf32, #tpu.memory_space<vmem>>, vector<16x32xf32>
      %c16_114 = arith.constant 16 : index
      %c0_115 = arith.constant 0 : index
      %336 = vector.load %arg12[%c16_114, %c0_115] : memref<32x32xf32, #tpu.memory_space<vmem>>, vector<16x32xf32>
      tpu.vector_store %arg12[%c16_114, %c0_115], %335 {strides = array<i32>} : memref<32x32xf32, #tpu.memory_space<vmem>>, vector<16x32xf32>,
    } else {
    }
    %c0 = arith.constant 0 : index
    %c0_1 = arith.constant 0 : index
    %3 = vector.load %arg11[%c0, %c0_1] : memref<32x32xf32, #tpu.memory_space<vmem>>, vector<32x32xf32>
    %c0_2 = arith.constant 0 : index
    %c0_3 = arith.constant 0 : index
    %4 = vector.load %arg12[%c0_2, %c0_3] : memref<32x32xf32, #tpu.memory_space<vmem>>, vector<32x32xf32>
    %c0_4 = arith.constant 0 : index
    %c0_5 = arith.constant 0 : index
    %c0_6 = arith.constant 0 : index
    %5 = vector.load %arg5[%c0_4, %c0_5, %c0_6] : memref<1x64x192xf32, #tpu.memory_space<vmem>>, vector<1x64x192xf32>
    %6 = vector.shape_cast %5 : vector<1x64x192xf32> to vector<64x192xf32>
    %c0_7 = arith.constant 0 : index
    %c0_8 = arith.constant 0 : index
    %c0_9 = arith.constant 0 : index
    %7 = vector.load %arg6[%c0_7, %c0_8, %c0_9] : memref<1x32x128xf32, #tpu.memory_space<vmem>>, vector<1x32x128xf32>
    %8 = vector.shape_cast %7 : vector<1x32x128xf32> to vector<32x128xf32>
    %c0_10 = arith.constant 0 : index
    %c0_11 = arith.constant 0 : index
    %c0_12 = arith.constant 0 : index
    %9 = vector.load %arg7[%c0_10, %c0_11, %c0_12] : memref<1x64x32xf32, #tpu.memory_space<vmem>>, vector<1x64x32xf32>
    %10 = vector.shape_cast %9 : vector<1x64x32xf32> to vector<64x32xf32>
    %c0_13 = arith.constant 0 : index
    %c0_14 = arith.constant 0 : index
    %c0_15 = arith.constant 0 : index
    %11 = vector.load %arg8[%c0_13, %c0_14, %c0_15] : memref<1x8x128xf32, #tpu.memory_space<vmem>>, vector<1x8x128xf32>
    %12 = vector.shape_cast %11 : vector<1x8x128xf32> to vector<8x128xf32>
    %13 = vector.extract_strided_slice %6 {offsets = [0, 0], sizes = [64, 96], strides = [1, 1]} : vector<64x192xf32> to vector<64x96xf32>
    %14 = vector.extract_strided_slice %6 {offsets = [0, 96], sizes = [64, 96], strides = [1, 1]} : vector<64x192xf32> to vector<64x96xf32>
    %15 = vector.extract_strided_slice %12 {offsets = [0, 0], sizes = [1, 96], strides = [1, 1]} : vector<8x128xf32> to vector<1x96xf32>
    %16 = vector.extract_strided_slice %12 {offsets = [1, 0], sizes = [1, 96], strides = [1, 1]} : vector<8x128xf32> to vector<1x96xf32>
    %17 = vector.extract_strided_slice %8 {offsets = [0, 0], sizes = [32, 32], strides = [1, 1]} : vector<32x128xf32> to vector<32x32xf32>
    %18 = vector.extract_strided_slice %8 {offsets = [0, 32], sizes = [32, 32], strides = [1, 1]} : vector<32x128xf32> to vector<32x32xf32>
    %19 = vector.extract_strided_slice %8 {offsets = [0, 64], sizes = [32, 64], strides = [1, 1]} : vector<32x128xf32> to vector<32x64xf32>
    %20 = vector.extract_strided_slice %12 {offsets = [2, 0], sizes = [1, 32], strides = [1, 1]} : vector<8x128xf32> to vector<1x32xf32>
    %21 = vector.extract_strided_slice %12 {offsets = [2, 32], sizes = [1, 32], strides = [1, 1]} : vector<8x128xf32> to vector<1x32xf32>
    %22 = vector.extract_strided_slice %12 {offsets = [2, 64], sizes = [1, 64], strides = [1, 1]} : vector<8x128xf32> to vector<1x64xf32>
    %23 = vector.extract_strided_slice %12 {offsets = [3, 0], sizes = [1, 32], strides = [1, 1]} : vector<8x128xf32> to vector<1x32xf32>
    %24 = vector.extract_strided_slice %12 {offsets = [3, 32], sizes = [1, 32], strides = [1, 1]} : vector<8x128xf32> to vector<1x32xf32>
    %25 = vector.extract_strided_slice %12 {offsets = [3, 64], sizes = [1, 32], strides = [1, 1]} : vector<8x128xf32> to vector<1x32xf32>
    %26 = vector.extract_strided_slice %12 {offsets = [3, 96], sizes = [1, 32], strides = [1, 1]} : vector<8x128xf32> to vector<1x32xf32>
    %27 = vector.extract_strided_slice %12 {offsets = [4, 0], sizes = [1, 32], strides = [1, 1]} : vector<8x128xf32> to vector<1x32xf32>
    %28 = vector.extract_strided_slice %12 {offsets = [4, 32], sizes = [1, 32], strides = [1, 1]} : vector<8x128xf32> to vector<1x32xf32>
    %29 = vector.extract_strided_slice %12 {offsets = [4, 64], sizes = [1, 32], strides = [1, 1]} : vector<8x128xf32> to vector<1x32xf32>
    %30 = tpu.iota {dimensions = array<i32: 0>} : vector<32x32xi32>
    %31 = tpu.iota {dimensions = array<i32: 1>} : vector<32x32xi32>
    %c2_i32 = arith.constant 2 : i32
    %c0_i32_16 = arith.constant 0 : i32
    %32 = arith.cmpi eq, %c2_i32, %c0_i32_16 : i32
    %c1_i32 = arith.constant 1 : i32
    %33 = arith.select %32, %c1_i32, %c2_i32 : i32
    %34 = vector.broadcast %33 : i32 to vector<32x32xi32>
    %35 = arith.remsi %30, %34 : vector<32x32xi32>
    %c0_i32_17 = arith.constant 0 : i32
    %36 = vector.broadcast %c0_i32_17 : i32 to vector<32x32xi32>
    %37 = arith.cmpi ne, %35, %36 : vector<32x32xi32>
    %c0_i32_18 = arith.constant 0 : i32
    %38 = vector.broadcast %c0_i32_18 : i32 to vector<32x32xi32>
    %39 = arith.cmpi slt, %35, %38 : vector<32x32xi32>
    %c0_i32_19 = arith.constant 0 : i32
    %40 = arith.cmpi slt, %33, %c0_i32_19 : i32
    %41 = vector.broadcast %40 : i1 to vector<32x32xi1>
    %42 = vector.broadcast %41 : vector<32x32xi1> to vector<32x32xi1>
    %43 = arith.xori %39, %42 : vector<32x32xi1>
    %44 = arith.andi %43, %37 : vector<32x32xi1>
    %45 = vector.broadcast %33 : i32 to vector<32x32xi32>
    %46 = arith.addi %35, %45 : vector<32x32xi32>
    %47 = arith.select %44, %46, %35 : vector<32x32xi1>, vector<32x32xi32>
    %c2_i32_20 = arith.constant 2 : i32
    %c0_i32_21 = arith.constant 0 : i32
    %48 = arith.cmpi eq, %c2_i32_20, %c0_i32_21 : i32
    %c1_i32_22 = arith.constant 1 : i32
    %49 = arith.select %48, %c1_i32_22, %c2_i32_20 : i32
    %50 = vector.broadcast %49 : i32 to vector<32x32xi32>
    %51 = arith.remsi %31, %50 : vector<32x32xi32>
    %c0_i32_23 = arith.constant 0 : i32
    %52 = vector.broadcast %c0_i32_23 : i32 to vector<32x32xi32>
    %53 = arith.cmpi ne, %51, %52 : vector<32x32xi32>
    %c0_i32_24 = arith.constant 0 : i32
    %54 = vector.broadcast %c0_i32_24 : i32 to vector<32x32xi32>
    %55 = arith.cmpi slt, %51, %54 : vector<32x32xi32>
    %c0_i32_25 = arith.constant 0 : i32
    %56 = arith.cmpi slt, %49, %c0_i32_25 : i32
    %57 = vector.broadcast %56 : i1 to vector<32x32xi1>
    %58 = vector.broadcast %57 : vector<32x32xi1> to vector<32x32xi1>
    %59 = arith.xori %55, %58 : vector<32x32xi1>
    %60 = arith.andi %59, %53 : vector<32x32xi1>
    %61 = vector.broadcast %49 : i32 to vector<32x32xi32>
    %62 = arith.addi %51, %61 : vector<32x32xi32>
    %63 = arith.select %60, %62, %51 : vector<32x32xi1>, vector<32x32xi32>
    %64 = arith.cmpi eq, %47, %63 : vector<32x32xi32>
    %c16_i32 = arith.constant 16 : i32
    %65 = vector.broadcast %c16_i32 : i32 to vector<32x32xi32>
    %66 = arith.cmpi sge, %30, %65 : vector<32x32xi32>
    %c16_i32_26 = arith.constant 16 : i32
    %67 = vector.broadcast %c16_i32_26 : i32 to vector<32x32xi32>
    %68 = arith.cmpi sge, %31, %67 : vector<32x32xi32>
    %69 = arith.xori %66, %68 : vector<32x32xi1>
    %cst = arith.constant dense<true> : vector<32x32xi1>
    %70 = arith.xori %69, %cst : vector<32x32xi1>
    %71 = arith.andi %64, %70 : vector<32x32xi1>
    %72 = arith.xori %66, %68 : vector<32x32xi1>
    %73 = arith.andi %64, %72 : vector<32x32xi1>
    %74 = tpu.concatenate %3, %4 in 1 : vector<32x32xf32>, vector<32x32xf32> -> vector<32x64xf32>
    %cst_27 = arith.constant dense<0.000000e+00> : vector<32x96xf32>
    %75 = tpu.matmul %74, %13, %cst_27 {dimension_numbers = #tpu.dot_dimension_numbers<[1], [0], [0], [1], [0, 0, 1, 1], [], []>} : vector<32x64xf32>, vector<64x96xf32>, vector<32x96xf32> -> vector<32x96xf32>
    %76 = vector.broadcast %15 : vector<1x96xf32> to vector<32x96xf32>
    %77 = arith.addf %75, %76 : vector<32x96xf32>
    %cst_28 = arith.constant 0.000000e+00 : f32
    %78 = vector.broadcast %cst_28 : f32 to vector<32x32xf32>
    %79 = vector.extract_strided_slice %77 {offsets = [0, 0], sizes = [32, 8], strides = [1, 1]} : vector<32x96xf32> to vector<32x8xf32>
    %80 = vector.extract_strided_slice %77 {offsets = [0, 32], sizes = [32, 8], strides = [1, 1]} : vector<32x96xf32> to vector<32x8xf32>
    %81 = vector.extract_strided_slice %77 {offsets = [0, 64], sizes = [32, 8], strides = [1, 1]} : vector<32x96xf32> to vector<32x8xf32>
    %cst_29 = arith.constant dense<0.000000e+00> : vector<32x32xf32>
    %82 = tpu.matmul %79, %80, %cst_29 {dimension_numbers = #tpu.dot_dimension_numbers<[1], [1], [0], [0], [0, 0, 1, 0], [], []>} : vector<32x8xf32>, vector<32x8xf32>, vector<32x32xf32> -> vector<32x32xf32>
    %cst_30 = arith.constant -1.000000e+30 : f32
    %83 = vector.broadcast %cst_30 : f32 to vector<32x32xf32>
    %84 = arith.select %71, %82, %83 : vector<32x32xi1>, vector<32x32xf32>
    %cst_31 = arith.constant dense<0xFF800000> : vector<32xf32>
    %85 = vector.multi_reduction <maximumf>, %84, %cst_31 [1] : vector<32x32xf32> to vector<32xf32>
    %86 = vector.shape_cast %85 : vector<32xf32> to vector<32x1xf32>
    %87 = vector.broadcast %86 : vector<32x1xf32> to vector<32x32xf32>
    %88 = arith.subf %84, %87 : vector<32x32xf32>
    %89 = math.exp %88 : vector<32x32xf32>
    %cst_32 = arith.constant dense<0.000000e+00> : vector<32xf32>
    %90 = vector.multi_reduction <add>, %89, %cst_32 [1] : vector<32x32xf32> to vector<32xf32>
    %91 = vector.shape_cast %90 : vector<32xf32> to vector<32x1xf32>
    %92 = tpu.reciprocal %91 {approx = true} : vector<32x1xf32> -> vector<32x1xf32>
    %93 = vector.broadcast %92 : vector<32x1xf32> to vector<32x32xf32>
    %94 = arith.mulf %89, %93 : vector<32x32xf32>
    %cst_33 = arith.constant dense<0.000000e+00> : vector<32x8xf32>
    %95 = tpu.matmul %94, %81, %cst_33 {dimension_numbers = #tpu.dot_dimension_numbers<[1], [0], [0], [1], [0, 0, 1, 1], [], []>} : vector<32x32xf32>, vector<32x8xf32>, vector<32x8xf32> -> vector<32x8xf32>
    %96 = vector.extract_strided_slice %17 {offsets = [0, 0], sizes = [8, 32], strides = [1, 1]} : vector<32x32xf32> to vector<8x32xf32>
    %cst_34 = arith.constant dense<0.000000e+00> : vector<32x32xf32>
    %97 = tpu.matmul %95, %96, %cst_34 {dimension_numbers = #tpu.dot_dimension_numbers<[1], [0], [0], [1], [0, 0, 1, 1], [], []>} : vector<32x8xf32>, vector<8x32xf32>, vector<32x32xf32> -> vector<32x32xf32>
    %98 = arith.addf %78, %97 : vector<32x32xf32>
    %99 = vector.extract_strided_slice %77 {offsets = [0, 8], sizes = [32, 8], strides = [1, 1]} : vector<32x96xf32> to vector<32x8xf32>
    %100 = vector.extract_strided_slice %77 {offsets = [0, 40], sizes = [32, 8], strides = [1, 1]} : vector<32x96xf32> to vector<32x8xf32>
    %101 = vector.extract_strided_slice %77 {offsets = [0, 72], sizes = [32, 8], strides = [1, 1]} : vector<32x96xf32> to vector<32x8xf32>
    %cst_35 = arith.constant dense<0.000000e+00> : vector<32x32xf32>
    %102 = tpu.matmul %99, %100, %cst_35 {dimension_numbers = #tpu.dot_dimension_numbers<[1], [1], [0], [0], [0, 0, 1, 0], [], []>} : vector<32x8xf32>, vector<32x8xf32>, vector<32x32xf32> -> vector<32x32xf32>
    %cst_36 = arith.constant -1.000000e+30 : f32
    %103 = vector.broadcast %cst_36 : f32 to vector<32x32xf32>
    %104 = arith.select %71, %102, %103 : vector<32x32xi1>, vector<32x32xf32>
    %cst_37 = arith.constant dense<0xFF800000> : vector<32xf32>
    %105 = vector.multi_reduction <maximumf>, %104, %cst_37 [1] : vector<32x32xf32> to vector<32xf32>
    %106 = vector.shape_cast %105 : vector<32xf32> to vector<32x1xf32>
    %107 = vector.broadcast %106 : vector<32x1xf32> to vector<32x32xf32>
    %108 = arith.subf %104, %107 : vector<32x32xf32>
    %109 = math.exp %108 : vector<32x32xf32>
    %cst_38 = arith.constant dense<0.000000e+00> : vector<32xf32>
    %110 = vector.multi_reduction <add>, %109, %cst_38 [1] : vector<32x32xf32> to vector<32xf32>
    %111 = vector.shape_cast %110 : vector<32xf32> to vector<32x1xf32>
    %112 = tpu.reciprocal %111 {approx = true} : vector<32x1xf32> -> vector<32x1xf32>
    %113 = vector.broadcast %112 : vector<32x1xf32> to vector<32x32xf32>
    %114 = arith.mulf %109, %113 : vector<32x32xf32>
    %cst_39 = arith.constant dense<0.000000e+00> : vector<32x8xf32>
    %115 = tpu.matmul %114, %101, %cst_39 {dimension_numbers = #tpu.dot_dimension_numbers<[1], [0], [0], [1], [0, 0, 1, 1], [], []>} : vector<32x32xf32>, vector<32x8xf32>, vector<32x8xf32> -> vector<32x8xf32>
    %116 = vector.extract_strided_slice %17 {offsets = [8, 0], sizes = [8, 32], strides = [1, 1]} : vector<32x32xf32> to vector<8x32xf32>
    %cst_40 = arith.constant dense<0.000000e+00> : vector<32x32xf32>
    %117 = tpu.matmul %115, %116, %cst_40 {dimension_numbers = #tpu.dot_dimension_numbers<[1], [0], [0], [1], [0, 0, 1, 1], [], []>} : vector<32x8xf32>, vector<8x32xf32>, vector<32x32xf32> -> vector<32x32xf32>
    %118 = arith.addf %98, %117 : vector<32x32xf32>
    %119 = vector.extract_strided_slice %77 {offsets = [0, 16], sizes = [32, 8], strides = [1, 1]} : vector<32x96xf32> to vector<32x8xf32>
    %120 = vector.extract_strided_slice %77 {offsets = [0, 48], sizes = [32, 8], strides = [1, 1]} : vector<32x96xf32> to vector<32x8xf32>
    %121 = vector.extract_strided_slice %77 {offsets = [0, 80], sizes = [32, 8], strides = [1, 1]} : vector<32x96xf32> to vector<32x8xf32>
    %cst_41 = arith.constant dense<0.000000e+00> : vector<32x32xf32>
    %122 = tpu.matmul %119, %120, %cst_41 {dimension_numbers = #tpu.dot_dimension_numbers<[1], [1], [0], [0], [0, 0, 1, 0], [], []>} : vector<32x8xf32>, vector<32x8xf32>, vector<32x32xf32> -> vector<32x32xf32>
    %cst_42 = arith.constant -1.000000e+30 : f32
    %123 = vector.broadcast %cst_42 : f32 to vector<32x32xf32>
    %124 = arith.select %71, %122, %123 : vector<32x32xi1>, vector<32x32xf32>
    %cst_43 = arith.constant dense<0xFF800000> : vector<32xf32>
    %125 = vector.multi_reduction <maximumf>, %124, %cst_43 [1] : vector<32x32xf32> to vector<32xf32>
    %126 = vector.shape_cast %125 : vector<32xf32> to vector<32x1xf32>
    %127 = vector.broadcast %126 : vector<32x1xf32> to vector<32x32xf32>
    %128 = arith.subf %124, %127 : vector<32x32xf32>
    %129 = math.exp %128 : vector<32x32xf32>
    %cst_44 = arith.constant dense<0.000000e+00> : vector<32xf32>
    %130 = vector.multi_reduction <add>, %129, %cst_44 [1] : vector<32x32xf32> to vector<32xf32>
    %131 = vector.shape_cast %130 : vector<32xf32> to vector<32x1xf32>
    %132 = tpu.reciprocal %131 {approx = true} : vector<32x1xf32> -> vector<32x1xf32>
    %133 = vector.broadcast %132 : vector<32x1xf32> to vector<32x32xf32>
    %134 = arith.mulf %129, %133 : vector<32x32xf32>
    %cst_45 = arith.constant dense<0.000000e+00> : vector<32x8xf32>
    %135 = tpu.matmul %134, %121, %cst_45 {dimension_numbers = #tpu.dot_dimension_numbers<[1], [0], [0], [1], [0, 0, 1, 1], [], []>} : vector<32x32xf32>, vector<32x8xf32>, vector<32x8xf32> -> vector<32x8xf32>
    %136 = vector.extract_strided_slice %17 {offsets = [16, 0], sizes = [8, 32], strides = [1, 1]} : vector<32x32xf32> to vector<8x32xf32>
    %cst_46 = arith.constant dense<0.000000e+00> : vector<32x32xf32>
    %137 = tpu.matmul %135, %136, %cst_46 {dimension_numbers = #tpu.dot_dimension_numbers<[1], [0], [0], [1], [0, 0, 1, 1], [], []>} : vector<32x8xf32>, vector<8x32xf32>, vector<32x32xf32> -> vector<32x32xf32>
    %138 = arith.addf %118, %137 : vector<32x32xf32>
    %139 = vector.extract_strided_slice %77 {offsets = [0, 24], sizes = [32, 8], strides = [1, 1]} : vector<32x96xf32> to vector<32x8xf32>
    %140 = vector.extract_strided_slice %77 {offsets = [0, 56], sizes = [32, 8], strides = [1, 1]} : vector<32x96xf32> to vector<32x8xf32>
    %141 = vector.extract_strided_slice %77 {offsets = [0, 88], sizes = [32, 8], strides = [1, 1]} : vector<32x96xf32> to vector<32x8xf32>
    %cst_47 = arith.constant dense<0.000000e+00> : vector<32x32xf32>
    %142 = tpu.matmul %139, %140, %cst_47 {dimension_numbers = #tpu.dot_dimension_numbers<[1], [1], [0], [0], [0, 0, 1, 0], [], []>} : vector<32x8xf32>, vector<32x8xf32>, vector<32x32xf32> -> vector<32x32xf32>
    %cst_48 = arith.constant -1.000000e+30 : f32
    %143 = vector.broadcast %cst_48 : f32 to vector<32x32xf32>
    %144 = arith.select %71, %142, %143 : vector<32x32xi1>, vector<32x32xf32>
    %cst_49 = arith.constant dense<0xFF800000> : vector<32xf32>
    %145 = vector.multi_reduction <maximumf>, %144, %cst_49 [1] : vector<32x32xf32> to vector<32xf32>
    %146 = vector.shape_cast %145 : vector<32xf32> to vector<32x1xf32>
    %147 = vector.broadcast %146 : vector<32x1xf32> to vector<32x32xf32>
    %148 = arith.subf %144, %147 : vector<32x32xf32>
    %149 = math.exp %148 : vector<32x32xf32>
    %cst_50 = arith.constant dense<0.000000e+00> : vector<32xf32>
    %150 = vector.multi_reduction <add>, %149, %cst_50 [1] : vector<32x32xf32> to vector<32xf32>
    %151 = vector.shape_cast %150 : vector<32xf32> to vector<32x1xf32>
    %152 = tpu.reciprocal %151 {approx = true} : vector<32x1xf32> -> vector<32x1xf32>
    %153 = vector.broadcast %152 : vector<32x1xf32> to vector<32x32xf32>
    %154 = arith.mulf %149, %153 : vector<32x32xf32>
    %cst_51 = arith.constant dense<0.000000e+00> : vector<32x8xf32>
    %155 = tpu.matmul %154, %141, %cst_51 {dimension_numbers = #tpu.dot_dimension_numbers<[1], [0], [0], [1], [0, 0, 1, 1], [], []>} : vector<32x32xf32>, vector<32x8xf32>, vector<32x8xf32> -> vector<32x8xf32>
    %156 = vector.extract_strided_slice %17 {offsets = [24, 0], sizes = [8, 32], strides = [1, 1]} : vector<32x32xf32> to vector<8x32xf32>
    %cst_52 = arith.constant dense<0.000000e+00> : vector<32x32xf32>
    %157 = tpu.matmul %155, %156, %cst_52 {dimension_numbers = #tpu.dot_dimension_numbers<[1], [0], [0], [1], [0, 0, 1, 1], [], []>} : vector<32x8xf32>, vector<8x32xf32>, vector<32x32xf32> -> vector<32x32xf32>
    %158 = arith.addf %138, %157 : vector<32x32xf32>
    %159 = vector.broadcast %20 : vector<1x32xf32> to vector<32x32xf32>
    %160 = arith.addf %158, %159 : vector<32x32xf32>
    %161 = arith.addf %3, %160 : vector<32x32xf32>
    %cst_53 = arith.constant dense<0.000000e+00> : vector<32xf32>
    %162 = vector.multi_reduction <add>, %161, %cst_53 [1] : vector<32x32xf32> to vector<32xf32>
    %163 = vector.shape_cast %162 : vector<32xf32> to vector<32x1xf32>
    %cst_54 = arith.constant 3.200000e+01 : f32
    %164 = vector.broadcast %cst_54 : f32 to vector<32x1xf32>
    %165 = arith.divf %163, %164 : vector<32x1xf32>
    %166 = arith.mulf %161, %161 : vector<32x32xf32>
    %cst_55 = arith.constant dense<0.000000e+00> : vector<32xf32>
    %167 = vector.multi_reduction <add>, %166, %cst_55 [1] : vector<32x32xf32> to vector<32xf32>
    %168 = vector.shape_cast %167 : vector<32xf32> to vector<32x1xf32>
    %cst_56 = arith.constant 3.200000e+01 : f32
    %169 = vector.broadcast %cst_56 : f32 to vector<32x1xf32>
    %170 = arith.divf %168, %169 : vector<32x1xf32>
    %171 = arith.mulf %165, %165 : vector<32x1xf32>
    %172 = arith.subf %170, %171 : vector<32x1xf32>
    %cst_57 = arith.constant 9.99999974E-6 : f32
    %173 = vector.broadcast %cst_57 : f32 to vector<32x1xf32>
    %174 = arith.addf %172, %173 : vector<32x1xf32>
    %175 = math.rsqrt %174 : vector<32x1xf32>
    %176 = vector.broadcast %165 : vector<32x1xf32> to vector<32x32xf32>
    %177 = arith.subf %161, %176 : vector<32x32xf32>
    %178 = vector.broadcast %175 : vector<32x1xf32> to vector<32x32xf32>
    %179 = arith.mulf %177, %178 : vector<32x32xf32>
    %180 = vector.broadcast %24 : vector<1x32xf32> to vector<32x32xf32>
    %181 = arith.mulf %179, %180 : vector<32x32xf32>
    %182 = vector.broadcast %25 : vector<1x32xf32> to vector<32x32xf32>
    %183 = arith.addf %181, %182 : vector<32x32xf32>
    %184 = tpu.concatenate %183, %4 in 1 : vector<32x32xf32>, vector<32x32xf32> -> vector<32x64xf32>
    %cst_58 = arith.constant dense<0.000000e+00> : vector<32x96xf32>
    %185 = tpu.matmul %184, %14, %cst_58 {dimension_numbers = #tpu.dot_dimension_numbers<[1], [0], [0], [1], [0, 0, 1, 1], [], []>} : vector<32x64xf32>, vector<64x96xf32>, vector<32x96xf32> -> vector<32x96xf32>
    %186 = vector.broadcast %16 : vector<1x96xf32> to vector<32x96xf32>
    %187 = arith.addf %185, %186 : vector<32x96xf32>
    %cst_59 = arith.constant 0.000000e+00 : f32
    %188 = vector.broadcast %cst_59 : f32 to vector<32x32xf32>
    %189 = vector.extract_strided_slice %187 {offsets = [0, 0], sizes = [32, 8], strides = [1, 1]} : vector<32x96xf32> to vector<32x8xf32>
    %190 = vector.extract_strided_slice %187 {offsets = [0, 32], sizes = [32, 8], strides = [1, 1]} : vector<32x96xf32> to vector<32x8xf32>
    %191 = vector.extract_strided_slice %187 {offsets = [0, 64], sizes = [32, 8], strides = [1, 1]} : vector<32x96xf32> to vector<32x8xf32>
    %cst_60 = arith.constant dense<0.000000e+00> : vector<32x32xf32>
    %192 = tpu.matmul %189, %190, %cst_60 {dimension_numbers = #tpu.dot_dimension_numbers<[1], [1], [0], [0], [0, 0, 1, 0], [], []>} : vector<32x8xf32>, vector<32x8xf32>, vector<32x32xf32> -> vector<32x32xf32>
    %cst_61 = arith.constant -1.000000e+30 : f32
    %193 = vector.broadcast %cst_61 : f32 to vector<32x32xf32>
    %194 = arith.select %73, %192, %193 : vector<32x32xi1>, vector<32x32xf32>
    %cst_62 = arith.constant dense<0xFF800000> : vector<32xf32>
    %195 = vector.multi_reduction <maximumf>, %194, %cst_62 [1] : vector<32x32xf32> to vector<32xf32>
    %196 = vector.shape_cast %195 : vector<32xf32> to vector<32x1xf32>
    %197 = vector.broadcast %196 : vector<32x1xf32> to vector<32x32xf32>
    %198 = arith.subf %194, %197 : vector<32x32xf32>
    %199 = math.exp %198 : vector<32x32xf32>
    %cst_63 = arith.constant dense<0.000000e+00> : vector<32xf32>
    %200 = vector.multi_reduction <add>, %199, %cst_63 [1] : vector<32x32xf32> to vector<32xf32>
    %201 = vector.shape_cast %200 : vector<32xf32> to vector<32x1xf32>
    %202 = tpu.reciprocal %201 {approx = true} : vector<32x1xf32> -> vector<32x1xf32>
    %203 = vector.broadcast %202 : vector<32x1xf32> to vector<32x32xf32>
    %204 = arith.mulf %199, %203 : vector<32x32xf32>
    %cst_64 = arith.constant dense<0.000000e+00> : vector<32x8xf32>
    %205 = tpu.matmul %204, %191, %cst_64 {dimension_numbers = #tpu.dot_dimension_numbers<[1], [0], [0], [1], [0, 0, 1, 1], [], []>} : vector<32x32xf32>, vector<32x8xf32>, vector<32x8xf32> -> vector<32x8xf32>
    %206 = vector.extract_strided_slice %18 {offsets = [0, 0], sizes = [8, 32], strides = [1, 1]} : vector<32x32xf32> to vector<8x32xf32>
    %cst_65 = arith.constant dense<0.000000e+00> : vector<32x32xf32>
    %207 = tpu.matmul %205, %206, %cst_65 {dimension_numbers = #tpu.dot_dimension_numbers<[1], [0], [0], [1], [0, 0, 1, 1], [], []>} : vector<32x8xf32>, vector<8x32xf32>, vector<32x32xf32> -> vector<32x32xf32>
    %208 = arith.addf %188, %207 : vector<32x32xf32>
    %209 = vector.extract_strided_slice %187 {offsets = [0, 8], sizes = [32, 8], strides = [1, 1]} : vector<32x96xf32> to vector<32x8xf32>
    %210 = vector.extract_strided_slice %187 {offsets = [0, 40], sizes = [32, 8], strides = [1, 1]} : vector<32x96xf32> to vector<32x8xf32>
    %211 = vector.extract_strided_slice %187 {offsets = [0, 72], sizes = [32, 8], strides = [1, 1]} : vector<32x96xf32> to vector<32x8xf32>
    %cst_66 = arith.constant dense<0.000000e+00> : vector<32x32xf32>
    %212 = tpu.matmul %209, %210, %cst_66 {dimension_numbers = #tpu.dot_dimension_numbers<[1], [1], [0], [0], [0, 0, 1, 0], [], []>} : vector<32x8xf32>, vector<32x8xf32>, vector<32x32xf32> -> vector<32x32xf32>
    %cst_67 = arith.constant -1.000000e+30 : f32
    %213 = vector.broadcast %cst_67 : f32 to vector<32x32xf32>
    %214 = arith.select %73, %212, %213 : vector<32x32xi1>, vector<32x32xf32>
    %cst_68 = arith.constant dense<0xFF800000> : vector<32xf32>
    %215 = vector.multi_reduction <maximumf>, %214, %cst_68 [1] : vector<32x32xf32> to vector<32xf32>
    %216 = vector.shape_cast %215 : vector<32xf32> to vector<32x1xf32>
    %217 = vector.broadcast %216 : vector<32x1xf32> to vector<32x32xf32>
    %218 = arith.subf %214, %217 : vector<32x32xf32>
    %219 = math.exp %218 : vector<32x32xf32>
    %cst_69 = arith.constant dense<0.000000e+00> : vector<32xf32>
    %220 = vector.multi_reduction <add>, %219, %cst_69 [1] : vector<32x32xf32> to vector<32xf32>
    %221 = vector.shape_cast %220 : vector<32xf32> to vector<32x1xf32>
    %222 = tpu.reciprocal %221 {approx = true} : vector<32x1xf32> -> vector<32x1xf32>
    %223 = vector.broadcast %222 : vector<32x1xf32> to vector<32x32xf32>
    %224 = arith.mulf %219, %223 : vector<32x32xf32>
    %cst_70 = arith.constant dense<0.000000e+00> : vector<32x8xf32>
    %225 = tpu.matmul %224, %211, %cst_70 {dimension_numbers = #tpu.dot_dimension_numbers<[1], [0], [0], [1], [0, 0, 1, 1], [], []>} : vector<32x32xf32>, vector<32x8xf32>, vector<32x8xf32> -> vector<32x8xf32>
    %226 = vector.extract_strided_slice %18 {offsets = [8, 0], sizes = [8, 32], strides = [1, 1]} : vector<32x32xf32> to vector<8x32xf32>
    %cst_71 = arith.constant dense<0.000000e+00> : vector<32x32xf32>
    %227 = tpu.matmul %225, %226, %cst_71 {dimension_numbers = #tpu.dot_dimension_numbers<[1], [0], [0], [1], [0, 0, 1, 1], [], []>} : vector<32x8xf32>, vector<8x32xf32>, vector<32x32xf32> -> vector<32x32xf32>
    %228 = arith.addf %208, %227 : vector<32x32xf32>
    %229 = vector.extract_strided_slice %187 {offsets = [0, 16], sizes = [32, 8], strides = [1, 1]} : vector<32x96xf32> to vector<32x8xf32>
    %230 = vector.extract_strided_slice %187 {offsets = [0, 48], sizes = [32, 8], strides = [1, 1]} : vector<32x96xf32> to vector<32x8xf32>
    %231 = vector.extract_strided_slice %187 {offsets = [0, 80], sizes = [32, 8], strides = [1, 1]} : vector<32x96xf32> to vector<32x8xf32>
    %cst_72 = arith.constant dense<0.000000e+00> : vector<32x32xf32>
    %232 = tpu.matmul %229, %230, %cst_72 {dimension_numbers = #tpu.dot_dimension_numbers<[1], [1], [0], [0], [0, 0, 1, 0], [], []>} : vector<32x8xf32>, vector<32x8xf32>, vector<32x32xf32> -> vector<32x32xf32>
    %cst_73 = arith.constant -1.000000e+30 : f32
    %233 = vector.broadcast %cst_73 : f32 to vector<32x32xf32>
    %234 = arith.select %73, %232, %233 : vector<32x32xi1>, vector<32x32xf32>
    %cst_74 = arith.constant dense<0xFF800000> : vector<32xf32>
    %235 = vector.multi_reduction <maximumf>, %234, %cst_74 [1] : vector<32x32xf32> to vector<32xf32>
    %236 = vector.shape_cast %235 : vector<32xf32> to vector<32x1xf32>
    %237 = vector.broadcast %236 : vector<32x1xf32> to vector<32x32xf32>
    %238 = arith.subf %234, %237 : vector<32x32xf32>
    %239 = math.exp %238 : vector<32x32xf32>
    %cst_75 = arith.constant dense<0.000000e+00> : vector<32xf32>
    %240 = vector.multi_reduction <add>, %239, %cst_75 [1] : vector<32x32xf32> to vector<32xf32>
    %241 = vector.shape_cast %240 : vector<32xf32> to vector<32x1xf32>
    %242 = tpu.reciprocal %241 {approx = true} : vector<32x1xf32> -> vector<32x1xf32>
    %243 = vector.broadcast %242 : vector<32x1xf32> to vector<32x32xf32>
    %244 = arith.mulf %239, %243 : vector<32x32xf32>
    %cst_76 = arith.constant dense<0.000000e+00> : vector<32x8xf32>
    %245 = tpu.matmul %244, %231, %cst_76 {dimension_numbers = #tpu.dot_dimension_numbers<[1], [0], [0], [1], [0, 0, 1, 1], [], []>} : vector<32x32xf32>, vector<32x8xf32>, vector<32x8xf32> -> vector<32x8xf32>
    %246 = vector.extract_strided_slice %18 {offsets = [16, 0], sizes = [8, 32], strides = [1, 1]} : vector<32x32xf32> to vector<8x32xf32>
    %cst_77 = arith.constant dense<0.000000e+00> : vector<32x32xf32>
    %247 = tpu.matmul %245, %246, %cst_77 {dimension_numbers = #tpu.dot_dimension_numbers<[1], [0], [0], [1], [0, 0, 1, 1], [], []>} : vector<32x8xf32>, vector<8x32xf32>, vector<32x32xf32> -> vector<32x32xf32>
    %248 = arith.addf %228, %247 : vector<32x32xf32>
    %249 = vector.extract_strided_slice %187 {offsets = [0, 24], sizes = [32, 8], strides = [1, 1]} : vector<32x96xf32> to vector<32x8xf32>
    %250 = vector.extract_strided_slice %187 {offsets = [0, 56], sizes = [32, 8], strides = [1, 1]} : vector<32x96xf32> to vector<32x8xf32>
    %251 = vector.extract_strided_slice %187 {offsets = [0, 88], sizes = [32, 8], strides = [1, 1]} : vector<32x96xf32> to vector<32x8xf32>
    %cst_78 = arith.constant dense<0.000000e+00> : vector<32x32xf32>
    %252 = tpu.matmul %249, %250, %cst_78 {dimension_numbers = #tpu.dot_dimension_numbers<[1], [1], [0], [0], [0, 0, 1, 0], [], []>} : vector<32x8xf32>, vector<32x8xf32>, vector<32x32xf32> -> vector<32x32xf32>
    %cst_79 = arith.constant -1.000000e+30 : f32
    %253 = vector.broadcast %cst_79 : f32 to vector<32x32xf32>
    %254 = arith.select %73, %252, %253 : vector<32x32xi1>, vector<32x32xf32>
    %cst_80 = arith.constant dense<0xFF800000> : vector<32xf32>
    %255 = vector.multi_reduction <maximumf>, %254, %cst_80 [1] : vector<32x32xf32> to vector<32xf32>
    %256 = vector.shape_cast %255 : vector<32xf32> to vector<32x1xf32>
    %257 = vector.broadcast %256 : vector<32x1xf32> to vector<32x32xf32>
    %258 = arith.subf %254, %257 : vector<32x32xf32>
    %259 = math.exp %258 : vector<32x32xf32>
    %cst_81 = arith.constant dense<0.000000e+00> : vector<32xf32>
    %260 = vector.multi_reduction <add>, %259, %cst_81 [1] : vector<32x32xf32> to vector<32xf32>
    %261 = vector.shape_cast %260 : vector<32xf32> to vector<32x1xf32>
    %262 = tpu.reciprocal %261 {approx = true} : vector<32x1xf32> -> vector<32x1xf32>
    %263 = vector.broadcast %262 : vector<32x1xf32> to vector<32x32xf32>
    %264 = arith.mulf %259, %263 : vector<32x32xf32>
    %cst_82 = arith.constant dense<0.000000e+00> : vector<32x8xf32>
    %265 = tpu.matmul %264, %251, %cst_82 {dimension_numbers = #tpu.dot_dimension_numbers<[1], [0], [0], [1], [0, 0, 1, 1], [], []>} : vector<32x32xf32>, vector<32x8xf32>, vector<32x8xf32> -> vector<32x8xf32>
    %266 = vector.extract_strided_slice %18 {offsets = [24, 0], sizes = [8, 32], strides = [1, 1]} : vector<32x32xf32> to vector<8x32xf32>
    %cst_83 = arith.constant dense<0.000000e+00> : vector<32x32xf32>
    %267 = tpu.matmul %265, %266, %cst_83 {dimension_numbers = #tpu.dot_dimension_numbers<[1], [0], [0], [1], [0, 0, 1, 1], [], []>} : vector<32x8xf32>, vector<8x32xf32>, vector<32x32xf32> -> vector<32x32xf32>
    %268 = arith.addf %248, %267 : vector<32x32xf32>
    %269 = vector.broadcast %21 : vector<1x32xf32> to vector<32x32xf32>
    %270 = arith.addf %268, %269 : vector<32x32xf32>
    %271 = arith.addf %183, %270 : vector<32x32xf32>
    %cst_84 = arith.constant dense<0.000000e+00> : vector<32xf32>
    %272 = vector.multi_reduction <add>, %271, %cst_84 [1] : vector<32x32xf32> to vector<32xf32>
    %273 = vector.shape_cast %272 : vector<32xf32> to vector<32x1xf32>
    %cst_85 = arith.constant 3.200000e+01 : f32
    %274 = vector.broadcast %cst_85 : f32 to vector<32x1xf32>
    %275 = arith.divf %273, %274 : vector<32x1xf32>
    %276 = arith.mulf %271, %271 : vector<32x32xf32>
    %cst_86 = arith.constant dense<0.000000e+00> : vector<32xf32>
    %277 = vector.multi_reduction <add>, %276, %cst_86 [1] : vector<32x32xf32> to vector<32xf32>
    %278 = vector.shape_cast %277 : vector<32xf32> to vector<32x1xf32>
    %cst_87 = arith.constant 3.200000e+01 : f32
    %279 = vector.broadcast %cst_87 : f32 to vector<32x1xf32>
    %280 = arith.divf %278, %279 : vector<32x1xf32>
    %281 = arith.mulf %275, %275 : vector<32x1xf32>
    %282 = arith.subf %280, %281 : vector<32x1xf32>
    %cst_88 = arith.constant 9.99999974E-6 : f32
    %283 = vector.broadcast %cst_88 : f32 to vector<32x1xf32>
    %284 = arith.addf %282, %283 : vector<32x1xf32>
    %285 = math.rsqrt %284 : vector<32x1xf32>
    %286 = vector.broadcast %275 : vector<32x1xf32> to vector<32x32xf32>
    %287 = arith.subf %271, %286 : vector<32x32xf32>
    %288 = vector.broadcast %285 : vector<32x1xf32> to vector<32x32xf32>
    %289 = arith.mulf %287, %288 : vector<32x32xf32>
    %290 = vector.broadcast %26 : vector<1x32xf32> to vector<32x32xf32>
    %291 = arith.mulf %289, %290 : vector<32x32xf32>
    %292 = vector.broadcast %27 : vector<1x32xf32> to vector<32x32xf32>
    %293 = arith.addf %291, %292 : vector<32x32xf32>
    %cst_89 = arith.constant dense<0.000000e+00> : vector<32x64xf32>
    %294 = tpu.matmul %293, %19, %cst_89 {dimension_numbers = #tpu.dot_dimension_numbers<[1], [0], [0], [1], [0, 0, 1, 1], [], []>} : vector<32x32xf32>, vector<32x64xf32>, vector<32x64xf32> -> vector<32x64xf32>
    %295 = vector.broadcast %22 : vector<1x64xf32> to vector<32x64xf32>
    %296 = arith.addf %294, %295 : vector<32x64xf32>
    %cst_90 = arith.constant 0.000000e+00 : f32
    %297 = vector.broadcast %cst_90 : f32 to vector<32x64xf32>
    %298 = arith.maximumf %296, %297 : vector<32x64xf32>
    %cst_91 = arith.constant dense<0.000000e+00> : vector<32x32xf32>
    %299 = tpu.matmul %298, %10, %cst_91 {dimension_numbers = #tpu.dot_dimension_numbers<[1], [0], [0], [1], [0, 0, 1, 1], [], []>} : vector<32x64xf32>, vector<64x32xf32>, vector<32x32xf32> -> vector<32x32xf32>
    %300 = vector.broadcast %23 : vector<1x32xf32> to vector<32x32xf32>
    %301 = arith.addf %299, %300 : vector<32x32xf32>
    %302 = arith.addf %293, %301 : vector<32x32xf32>
    %cst_92 = arith.constant dense<0.000000e+00> : vector<32xf32>
    %303 = vector.multi_reduction <add>, %302, %cst_92 [1] : vector<32x32xf32> to vector<32xf32>
    %304 = vector.shape_cast %303 : vector<32xf32> to vector<32x1xf32>
    %cst_93 = arith.constant 3.200000e+01 : f32
    %305 = vector.broadcast %cst_93 : f32 to vector<32x1xf32>
    %306 = arith.divf %304, %305 : vector<32x1xf32>
    %307 = arith.mulf %302, %302 : vector<32x32xf32>
    %cst_94 = arith.constant dense<0.000000e+00> : vector<32xf32>
    %308 = vector.multi_reduction <add>, %307, %cst_94 [1] : vector<32x32xf32> to vector<32xf32>
    %309 = vector.shape_cast %308 : vector<32xf32> to vector<32x1xf32>
    %cst_95 = arith.constant 3.200000e+01 : f32
    %310 = vector.broadcast %cst_95 : f32 to vector<32x1xf32>
    %311 = arith.divf %309, %310 : vector<32x1xf32>
    %312 = arith.mulf %306, %306 : vector<32x1xf32>
    %313 = arith.subf %311, %312 : vector<32x1xf32>
    %cst_96 = arith.constant 9.99999974E-6 : f32
    %314 = vector.broadcast %cst_96 : f32 to vector<32x1xf32>
    %315 = arith.addf %313, %314 : vector<32x1xf32>
    %316 = math.rsqrt %315 : vector<32x1xf32>
    %317 = vector.broadcast %306 : vector<32x1xf32> to vector<32x32xf32>
    %318 = arith.subf %302, %317 : vector<32x32xf32>
    %319 = vector.broadcast %316 : vector<32x1xf32> to vector<32x32xf32>
    %320 = arith.mulf %318, %319 : vector<32x32xf32>
    %321 = vector.broadcast %28 : vector<1x32xf32> to vector<32x32xf32>
    %322 = arith.mulf %320, %321 : vector<32x32xf32>
    %323 = vector.broadcast %29 : vector<1x32xf32> to vector<32x32xf32>
    %324 = arith.addf %322, %323 : vector<32x32xf32>
    %c0_97 = arith.constant 0 : index
    %c0_98 = arith.constant 0 : index
    %325 = vector.load %arg11[%c0_97, %c0_98] : memref<32x32xf32, #tpu.memory_space<vmem>>, vector<32x32xf32>
    tpu.vector_store %arg11[%c0_97, %c0_98], %324 {strides = array<i32>} : memref<32x32xf32, #tpu.memory_space<vmem>>, vector<32x32xf32>,
    %c1_i32_99 = arith.constant 1 : i32
    %326 = arith.cmpi eq, %arg0, %c1_i32_99 : i32
    %327 = arith.extui %326 : i1 to i32
    %c0_i32_100 = arith.constant 0 : i32
    %328 = arith.cmpi ne, %327, %c0_i32_100 : i32
    scf.if %328 {
      %329 = vector.extract_strided_slice %324 {offsets = [0, 0], sizes = [16, 32], strides = [1, 1]} : vector<32x32xf32> to vector<16x32xf32>
      %c0_101 = arith.constant 0 : index
      %c0_102 = arith.constant 0 : index
      %330 = vector.load %arg9[%c0_101, %c0_102] : memref<16x32xf32, #tpu.memory_space<vmem>>, vector<16x32xf32>
      tpu.vector_store %arg9[%c0_101, %c0_102], %329 {strides = array<i32>} : memref<16x32xf32, #tpu.memory_space<vmem>>, vector<16x32xf32>,
      %331 = vector.extract_strided_slice %324 {offsets = [16, 0], sizes = [16, 32], strides = [1, 1]} : vector<32x32xf32> to vector<16x32xf32>
      %c0_103 = arith.constant 0 : index
      %c0_104 = arith.constant 0 : index
      %332 = vector.load %arg10[%c0_103, %c0_104] : memref<16x32xf32, #tpu.memory_space<vmem>>, vector<16x32xf32>
      tpu.vector_store %arg10[%c0_103, %c0_104], %331 {strides = array<i32>} : memref<16x32xf32, #tpu.memory_space<vmem>>, vector<16x32xf32>,
    } else {
    }
    return
  }
  func.func @transform_0(%arg0: i32) -> (i32, i32) {
    %c0_i32 = arith.constant 0 : i32
    %c0_i32_0 = arith.constant 0 : i32
    %c0_i32_1 = arith.constant 0 : i32
    return %c0_i32, %c0_i32_0 : i32, i32
  }
  func.func @transform_1(%arg0: i32) -> (i32, i32) {
    %c0_i32 = arith.constant 0 : i32
    %c0_i32_0 = arith.constant 0 : i32
    %c0_i32_1 = arith.constant 0 : i32
    return %c0_i32, %c0_i32_0 : i32, i32
  }
  func.func @transform_2(%arg0: i32) -> (i32, i32) {
    %c0_i32 = arith.constant 0 : i32
    %c0_i32_0 = arith.constant 0 : i32
    %c0_i32_1 = arith.constant 0 : i32
    return %c0_i32, %c0_i32_0 : i32, i32
  }
  func.func @transform_3(%arg0: i32) -> (i32, i32) {
    %c0_i32 = arith.constant 0 : i32
    %c0_i32_0 = arith.constant 0 : i32
    %c0_i32_1 = arith.constant 0 : i32
    return %c0_i32, %c0_i32_0 : i32, i32
  }
  func.func @transform_4(%arg0: i32) -> (i32, i32, i32) {
    %c0_i32 = arith.constant 0 : i32
    %c0_i32_0 = arith.constant 0 : i32
    %c0_i32_1 = arith.constant 0 : i32
    return %arg0, %c0_i32, %c0_i32_0 : i32, i32, i32
  }
  func.func @transform_5(%arg0: i32) -> (i32, i32, i32) {
    %c0_i32 = arith.constant 0 : i32
    %c0_i32_0 = arith.constant 0 : i32
    %c0_i32_1 = arith.constant 0 : i32
    return %arg0, %c0_i32, %c0_i32_0 : i32, i32, i32
  }
  func.func @transform_6(%arg0: i32) -> (i32, i32, i32) {
    %c0_i32 = arith.constant 0 : i32
    %c0_i32_0 = arith.constant 0 : i32
    %c0_i32_1 = arith.constant 0 : i32
    return %arg0, %c0_i32, %c0_i32_0 : i32, i32, i32
  }
  func.func @transform_7(%arg0: i32) -> (i32, i32, i32) {
    %c0_i32 = arith.constant 0 : i32
    %c0_i32_0 = arith.constant 0 : i32
    %c0_i32_1 = arith.constant 0 : i32
    return %arg0, %c0_i32, %c0_i32_0 : i32, i32, i32
  }
  func.func @transform_8(%arg0: i32) -> (i32, i32) {
    %c0_i32 = arith.constant 0 : i32
    %c0_i32_0 = arith.constant 0 : i32
    %c0_i32_1 = arith.constant 0 : i32
    return %c0_i32, %c0_i32_0 : i32, i32
  }
  func.func @transform_9(%arg0: i32) -> (i32, i32) {
    %c0_i32 = arith.constant 0 : i32
    %c0_i32_0 = arith.constant 0 : i32
    %c0_i32_1 = arith.constant 0 : i32
    return %c0_i32, %c0_i32_0 : i32, i32
  }
}

</mosaic_0001>

<llo_original>
// kernel: _encoder_jit.1
$region0: #{_encoder_jit.1}
  #allocation0 [shape = 'u32[]', space=smem, size = 0x4, offset = 0x4, fixed_abs, tag = 'smem constant byte address 0x4 - core index']
  #allocation1 [shape = 'u32[144,128]{1,0:T(1,128)}', space=vmem, size = 0x12000, scoped, tag = 'internal scratch']
  #allocation2 [shape = 'f32[32,32]{1,0:T(8,128)}', space=vmem, size = 0x4000, scoped, tag = 'scratch operand']
  #allocation3 [shape = 'f32[32,32]{1,0:T(8,128)}', space=vmem, size = 0x4000, scoped, tag = 'scratch operand']
  %s0 = inlined_call_operand.vmem [shape: f32[16,32], index: 0, kind: input, shape index: {}]
  %s1 = inlined_call_operand.vmem [shape: f32[16,32], index: 1, kind: input, shape index: {}]
  %s2 = inlined_call_operand.vmem [shape: f32[16,32], index: 2, kind: input, shape index: {}]
  %s3 = inlined_call_operand.vmem [shape: f32[16,32], index: 3, kind: input, shape index: {}]
  %s4 = inlined_call_operand.hbm [shape: f32[2,64,192], index: 4, kind: input, shape index: {}]
  %s5 = inlined_call_operand.vmem [shape: f32[2,32,128], index: 5, kind: input, shape index: {}]
  %s6 = inlined_call_operand.vmem [shape: f32[2,64,32], index: 6, kind: input, shape index: {}]
  %s7 = inlined_call_operand.vmem [shape: f32[2,8,128], index: 7, kind: input, shape index: {}]
  %s8 = inlined_call_operand.hbm [shape: f32[16,32], index: 8, kind: output, shape index: {0}]
  %s9 = inlined_call_operand.hbm [shape: f32[16,32], index: 9, kind: output, shape index: {1}]
  %10 = xla_tuple %s8, %s9
  %s11 = sld [smem:[#allocation0]]
  $region85: #{_encoder_jit.1} parent=0
    _
  %s13 = ssub.s32 1, %s11
  %s14 = scalar_select 0, %s13, %s11
  $region1: #{_encoder_jit.1} parent=0
    #allocation4 [shape = 'u8[131072]{0}', space=vmem, size = 0x20000, scoped, tag = 'input window, operand 4']
    #allocation5 [shape = 's32[2]{0}', space=sflag, size = 0x8, scoped, tag = 'scoped memory for _encoder_jit.1']
    #allocation6 [shape = 's32[2]{0}', space=sflag, size = 0x8, scoped, tag = 'scoped memory for _encoder_jit.1']
    #allocation7 [shape = 'u8[8192]{0}', space=vmem, size = 0x2000, scoped, tag = 'output window, operand 0, single buffered']
    #allocation8 [shape = 'u8[8192]{0}', space=vmem, size = 0x2000, scoped, tag = 'output window, operand 1, single buffered']
    #allocation9 [shape = 's32[1]{0}', space=sflag, size = 0x4, scoped, tag = 'scoped memory for _encoder_jit.1']
    %15 = vsyncpa [#allocation5], 0
    %s16 = scalar_lea.sflag [#allocation5], 1
    %17 = vsyncpa %s16, 0
    %18 = vsyncpa [#allocation6], 0
    %19 = vsyncpa [#allocation9], 0
    loop: start=0, step=1, limit=4
    $region2: #{_encoder_jit.1} parent=1 // loop_pre_header
      _
    $region3: #{_encoder_jit.1} parent=1 // loop_header
      %s21 = sphi 0, %s25
      %p22 = scmp.ge.s32.totalorder %s21, 4
      %s29 = sphi 0, %s29
      %s31 = sphi 0, %s29
      %s32 = sphi 0, %s31
      %s46 = sphi 0, %s32
      %s50 = sphi 0, %s50
      %s52 = sphi 0, %s50
      %s53 = sphi 0, %s52
      %s67 = sphi 0, %s53
      %s71 = sphi 0, %s71
      %s73 = sphi 0, %s71
      %s74 = sphi 0, %s73
      %s88 = sphi 0, %s74
      %s92 = sphi 0, %s92
      %s94 = sphi 0, %s92
      %s95 = sphi 0, %s94
      %s109 = sphi 0, %s95
      %s115 = sphi 0, %s117
      %s118 = sphi 0, %s115
      %s119 = sphi 0, %s118
      %s135 = sphi 0, %s119
      %s141 = sphi 0, %s143
      %s144 = sphi 0, %s141
      %s145 = sphi 0, %s144
      %s161 = sphi 0, %s145
      %s167 = sphi 0, %s169
      %s170 = sphi 0, %s167
      %s171 = sphi 0, %s170
      %s187 = sphi 0, %s171
      %s193 = sphi 0, %s195
      %s196 = sphi 0, %s193
      %s197 = sphi 0, %s196
      %s213 = sphi 0, %s197
      %s217 = sphi 0, %s217
      %s219 = sphi 0, %s217
      %s220 = sphi 0, %s219
      %s234 = sphi 0, %s220
      %s238 = sphi 0, %s238
      %s240 = sphi 0, %s238
      %s241 = sphi 0, %s240
      %s255 = sphi 0, %s241
    $region4: #{_encoder_jit.1} parent=1 // loop_header_branch
      %24 = sbr.rel (%p22) target = $region8
    $region5: #{_encoder_jit.1} parent=1 // loop_body
      %s26 = ssub.s32 %s21, 1
      %s27 = ssub.s32 %s21, 2
      %s28 = sadd.s32 %s21, 1
      %s30 = sadd.s32 %s29, 1
      %p33 = scmp.eq.s32.totalorder %s21, 1
      %p34 = scmp.ne.s32.totalorder %s29, %s31
      %p35 = scmp.eq.s32.totalorder %s21, 0
      %p36 = por %p34, %p35
      %p37 = scmp.ne.s32.totalorder %s29, %s31
      %p38 = scmp.eq.s32.totalorder %s26, 1
      %p39 = por %p37, %p38
      %p40 = scmp.ne.s32.totalorder %s31, %s32
      %p41 = scmp.eq.s32.totalorder %s26, 0
      %p42 = por %p40, %p41
      %p43 = scmp.ne.s32.totalorder %s31, %s32
      %p44 = scmp.eq.s32.totalorder %s27, 1
      %p45 = por %p43, %p44
      %p47 = scmp.ne.s32.totalorder %s32, %s46
      %p48 = scmp.eq.s32.totalorder %s27, 0
      %p49 = por %p47, %p48
      %s51 = sadd.s32 %s50, 1
      %p54 = scmp.eq.s32.totalorder %s21, 1
      %p55 = scmp.ne.s32.totalorder %s50, %s52
      %p56 = scmp.eq.s32.totalorder %s21, 0
      %p57 = por %p55, %p56
      %p58 = scmp.ne.s32.totalorder %s50, %s52
      %p59 = scmp.eq.s32.totalorder %s26, 1
      %p60 = por %p58, %p59
      %p61 = scmp.ne.s32.totalorder %s52, %s53
      %p62 = scmp.eq.s32.totalorder %s26, 0
      %p63 = por %p61, %p62
      %p64 = scmp.ne.s32.totalorder %s52, %s53
      %p65 = scmp.eq.s32.totalorder %s27, 1
      %p66 = por %p64, %p65
      %p68 = scmp.ne.s32.totalorder %s53, %s67
      %p69 = scmp.eq.s32.totalorder %s27, 0
      %p70 = por %p68, %p69
      %s72 = sadd.s32 %s71, 1
      %p75 = scmp.eq.s32.totalorder %s21, 1
      %p76 = scmp.ne.s32.totalorder %s71, %s73
      %p77 = scmp.eq.s32.totalorder %s21, 0
      %p78 = por %p76, %p77
      %p79 = scmp.ne.s32.totalorder %s71, %s73
      %p80 = scmp.eq.s32.totalorder %s26, 1
      %p81 = por %p79, %p80
      %p82 = scmp.ne.s32.totalorder %s73, %s74
      %p83 = scmp.eq.s32.totalorder %s26, 0
      %p84 = por %p82, %p83
      %p85 = scmp.ne.s32.totalorder %s73, %s74
      %p86 = scmp.eq.s32.totalorder %s27, 1
      %p87 = por %p85, %p86
      %p89 = scmp.ne.s32.totalorder %s74, %s88
      %p90 = scmp.eq.s32.totalorder %s27, 0
      %p91 = por %p89, %p90
      %s93 = sadd.s32 %s92, 1
      %p96 = scmp.eq.s32.totalorder %s21, 1
      %p97 = scmp.ne.s32.totalorder %s92, %s94
      %p98 = scmp.eq.s32.totalorder %s21, 0
      %p99 = por %p97, %p98
      %p100 = scmp.ne.s32.totalorder %s92, %s94
      %p101 = scmp.eq.s32.totalorder %s26, 1
      %p102 = por %p100, %p101
      %p103 = scmp.ne.s32.totalorder %s94, %s95
      %p104 = scmp.eq.s32.totalorder %s26, 0
      %p105 = por %p103, %p104
      %p106 = scmp.ne.s32.totalorder %s94, %s95
      %p107 = scmp.eq.s32.totalorder %s27, 1
      %p108 = por %p106, %p107
      %p110 = scmp.ne.s32.totalorder %s95, %s109
      %p111 = scmp.eq.s32.totalorder %s27, 0
      %p112 = por %p110, %p111
      %s113 = ssub.s32 %s21, %s28
      %p114 = scmp.eq.s32.totalorder %s113, 0
      %s116 = sadd.s32 %s115, 1
      %s117 = scalar_select %p114, %s115, %s116
      %p120 = pneg %p114
      %p121 = scmp.eq.s32.totalorder %s21, 1
      %p122 = por %p120, %p121
      %p123 = scmp.ne.s32.totalorder %s115, %s118
      %p124 = scmp.eq.s32.totalorder %s21, 0
      %p125 = por %p123, %p124
      %p126 = scmp.ne.s32.totalorder %s115, %s118
      %p127 = scmp.eq.s32.totalorder %s26, 1
      %p128 = por %p126, %p127
      %p129 = scmp.ne.s32.totalorder %s118, %s119
      %p130 = scmp.eq.s32.totalorder %s26, 0
      %p131 = por %p129, %p130
      %p132 = scmp.ne.s32.totalorder %s118, %s119
      %p133 = scmp.eq.s32.totalorder %s27, 1
      %p134 = por %p132, %p133
      %p136 = scmp.ne.s32.totalorder %s119, %s135
      %p137 = scmp.eq.s32.totalorder %s27, 0
      %p138 = por %p136, %p137
      %s139 = ssub.s32 %s21, %s28
      %p140 = scmp.eq.s32.totalorder %s139, 0
      %s142 = sadd.s32 %s141, 1
      %s143 = scalar_select %p140, %s141, %s142
      %p146 = pneg %p140
      %p147 = scmp.eq.s32.totalorder %s21, 1
      %p148 = por %p146, %p147
      %p149 = scmp.ne.s32.totalorder %s141, %s144
      %p150 = scmp.eq.s32.totalorder %s21, 0
      %p151 = por %p149, %p150
      %p152 = scmp.ne.s32.totalorder %s141, %s144
      %p153 = scmp.eq.s32.totalorder %s26, 1
      %p154 = por %p152, %p153
      %p155 = scmp.ne.s32.totalorder %s144, %s145
      %p156 = scmp.eq.s32.totalorder %s26, 0
      %p157 = por %p155, %p156
      %p158 = scmp.ne.s32.totalorder %s144, %s145
      %p159 = scmp.eq.s32.totalorder %s27, 1
      %p160 = por %p158, %p159
      %p162 = scmp.ne.s32.totalorder %s145, %s161
      %p163 = scmp.eq.s32.totalorder %s27, 0
      %p164 = por %p162, %p163
      %s165 = ssub.s32 %s21, %s28
      %p166 = scmp.eq.s32.totalorder %s165, 0
      %s168 = sadd.s32 %s167, 1
      %s169 = scalar_select %p166, %s167, %s168
      %p172 = pneg %p166
      %p173 = scmp.eq.s32.totalorder %s21, 1
      %p174 = por %p172, %p173
      %p175 = scmp.ne.s32.totalorder %s167, %s170
      %p176 = scmp.eq.s32.totalorder %s21, 0
      %p177 = por %p175, %p176
      %p178 = scmp.ne.s32.totalorder %s167, %s170
      %p179 = scmp.eq.s32.totalorder %s26, 1
      %p180 = por %p178, %p179
      %p181 = scmp.ne.s32.totalorder %s170, %s171
      %p182 = scmp.eq.s32.totalorder %s26, 0
      %p183 = por %p181, %p182
      %p184 = scmp.ne.s32.totalorder %s170, %s171
      %p185 = scmp.eq.s32.totalorder %s27, 1
      %p186 = por %p184, %p185
      %p188 = scmp.ne.s32.totalorder %s171, %s187
      %p189 = scmp.eq.s32.totalorder %s27, 0
      %p190 = por %p188, %p189
      %s191 = ssub.s32 %s21, %s28
      %p192 = scmp.eq.s32.totalorder %s191, 0
      %s194 = sadd.s32 %s193, 1
      %s195 = scalar_select %p192, %s193, %s194
      %p198 = pneg %p192
      %p199 = scmp.eq.s32.totalorder %s21, 1
      %p200 = por %p198, %p199
      %p201 = scmp.ne.s32.totalorder %s193, %s196
      %p202 = scmp.eq.s32.totalorder %s21, 0
      %p203 = por %p201, %p202
      %p204 = scmp.ne.s32.totalorder %s193, %s196
      %p205 = scmp.eq.s32.totalorder %s26, 1
      %p206 = por %p204, %p205
      %p207 = scmp.ne.s32.totalorder %s196, %s197
      %p208 = scmp.eq.s32.totalorder %s26, 0
      %p209 = por %p207, %p208
      %p210 = scmp.ne.s32.totalorder %s196, %s197
      %p211 = scmp.eq.s32.totalorder %s27, 1
      %p212 = por %p210, %p211
      %p214 = scmp.ne.s32.totalorder %s197, %s213
      %p215 = scmp.eq.s32.totalorder %s27, 0
      %p216 = por %p214, %p215
      %s218 = sadd.s32 %s217, 1
      %p221 = scmp.eq.s32.totalorder %s21, 1
      %p222 = scmp.ne.s32.totalorder %s217, %s219
      %p223 = scmp.eq.s32.totalorder %s21, 0
      %p224 = por %p222, %p223
      %p225 = scmp.ne.s32.totalorder %s217, %s219
      %p226 = scmp.eq.s32.totalorder %s26, 1
      %p227 = por %p225, %p226
      %p228 = scmp.ne.s32.totalorder %s219, %s220
      %p229 = scmp.eq.s32.totalorder %s26, 0
      %p230 = por %p228, %p229
      %p231 = scmp.ne.s32.totalorder %s219, %s220
      %p232 = scmp.eq.s32.totalorder %s27, 1
      %p233 = por %p231, %p232
      %p235 = scmp.ne.s32.totalorder %s220, %s234
      %p236 = scmp.eq.s32.totalorder %s27, 0
      %p237 = por %p235, %p236
      %s239 = sadd.s32 %s238, 1
      %p242 = scmp.eq.s32.totalorder %s21, 1
      %p243 = scmp.ne.s32.totalorder %s238, %s240
      %p244 = scmp.eq.s32.totalorder %s21, 0
      %p245 = por %p243, %p244
      %p246 = scmp.ne.s32.totalorder %s238, %s240
      %p247 = scmp.eq.s32.totalorder %s26, 1
      %p248 = por %p246, %p247
      %p249 = scmp.ne.s32.totalorder %s240, %s241
      %p250 = scmp.eq.s32.totalorder %s26, 0
      %p251 = por %p249, %p250
      %p252 = scmp.ne.s32.totalorder %s240, %s241
      %p253 = scmp.eq.s32.totalorder %s27, 1
      %p254 = por %p252, %p253
      %p256 = scmp.ne.s32.totalorder %s241, %s255
      %p257 = scmp.eq.s32.totalorder %s27, 0
      %p258 = por %p256, %p257
      %p259 = scmp.le.s32.totalorder 1, %s21
      %p260 = scmp.lt.s32.totalorder %s21, 3
      %p261 = pnand %p259, %p260
      %p262 = pneg %p261
      // Predicated region
      $region9: #{_encoder_jit.1} parent=5 // pred_check
        _
      $region10: #{_encoder_jit.1} parent=5 // pred_check_branch
        %264 = sbr.rel (%p261) target = $region12
      $region11: #{_encoder_jit.1} parent=5 // pred_region
        %s265 = ssub.s32 %s21, 1
        // Predicated region
        $region13: #{_encoder_jit.1} parent=11 // pred_check
          %p266 = pneg %p42
        $region14: #{_encoder_jit.1} parent=11 // pred_check_branch
          %268 = sbr.rel (%p266) target = $region16
        $region15: #{_encoder_jit.1} parent=11 // pred_region
          _
        $region16: #{_encoder_jit.1} parent=11 // pred_fallthru
          _
        // Predicated region
        $region17: #{_encoder_jit.1} parent=11 // pred_check
          %p269 = pneg %p63
        $region18: #{_encoder_jit.1} parent=11 // pred_check_branch
          %271 = sbr.rel (%p269) target = $region20
        $region19: #{_encoder_jit.1} parent=11 // pred_region
          _
        $region20: #{_encoder_jit.1} parent=11 // pred_fallthru
          _
        // Predicated region
        $region21: #{_encoder_jit.1} parent=11 // pred_check
          %p272 = pneg %p84
        $region22: #{_encoder_jit.1} parent=11 // pred_check_branch
          %274 = sbr.rel (%p272) target = $region24
        $region23: #{_encoder_jit.1} parent=11 // pred_region
          _
        $region24: #{_encoder_jit.1} parent=11 // pred_fallthru
          _
        // Predicated region
        $region25: #{_encoder_jit.1} parent=11 // pred_check
          %p275 = pneg %p105
        $region26: #{_encoder_jit.1} parent=11 // pred_check_branch
          %277 = sbr.rel (%p275) target = $region28
        $region27: #{_encoder_jit.1} parent=11 // pred_region
          _
        $region28: #{_encoder_jit.1} parent=11 // pred_fallthru
          _
      $region12: #{_encoder_jit.1} parent=5 // pred_fallthru
        _
      %p278 = scmp.lt.s32.totalorder %s21, 2
      // Predicated region
      $region29: #{_encoder_jit.1} parent=5 // pred_check
        %p279 = pneg %p278
      $region30: #{_encoder_jit.1} parent=5 // pred_check_branch
        %281 = sbr.rel (%p279) target = $region32
      $region31: #{_encoder_jit.1} parent=5 // pred_region
        // Predicated region
        $region33: #{_encoder_jit.1} parent=31 // pred_check
          %p282 = pneg %p125
        $region34: #{_encoder_jit.1} parent=31 // pred_check_branch
          %284 = sbr.rel (%p282) target = $region36
        $region35: #{_encoder_jit.1} parent=31 // pred_region
          %s285 = sand.u32 %s115, 1
          %s286 = scalar_lea.sflag [#allocation5], %s285
          %s287 = sand.u32 %s115, 1
          %s288 = smul.addr %s287, 128
          %s289 = scalar_lea.vmem [#allocation4], %s288
          %s291 = ssub.s32 2048, 2048
          %292 = vsyncadd %s286, %s291
          %s293 = smul.addr %s21, 16
          %s294 = smul.addr %s293, 128
          %s295 = scalar_lea.hbm %s4, %s294
          %s296 = sshll.u32 %s289, 4
          %s297 = int_to_ptr.vmem [resolvable:$true] %s296
          %302 = dma.hbm_to_vmem [thread:$0]  %s295, 2048, %s297, %s286, 256, 256, 16
        $region36: #{_encoder_jit.1} parent=31 // pred_fallthru
          _
        // Predicated region
        $region37: #{_encoder_jit.1} parent=31 // pred_check
          %p303 = pneg %p151
        $region38: #{_encoder_jit.1} parent=31 // pred_check_branch
          %305 = sbr.rel (%p303) target = $region40
        $region39: #{_encoder_jit.1} parent=31 // pred_region
          %p306 = scmp.lt.s32.totalorder %s21, 1
          %s307 = scalar_select %p306, %s21, 1
          %s308 = smul.addr %s307, 4
          %s309 = smul.addr %s308, 8
          %s310 = scalar_lea.vmem %s5, %s309
        $region40: #{_encoder_jit.1} parent=31 // pred_fallthru
          _
        // Predicated region
        $region41: #{_encoder_jit.1} parent=31 // pred_check
          %p311 = pneg %p177
        $region42: #{_encoder_jit.1} parent=31 // pred_check_branch
          %313 = sbr.rel (%p311) target = $region44
        $region43: #{_encoder_jit.1} parent=31 // pred_region
          %p314 = scmp.lt.s32.totalorder %s21, 1
          %s315 = scalar_select %p314, %s21, 1
          %s316 = smul.addr %s315, 8
          %s317 = smul.addr %s316, 8
          %s318 = scalar_lea.vmem %s6, %s317
        $region44: #{_encoder_jit.1} parent=31 // pred_fallthru
          _
        // Predicated region
        $region45: #{_encoder_jit.1} parent=31 // pred_check
          %p319 = pneg %p203
        $region46: #{_encoder_jit.1} parent=31 // pred_check_branch
          %321 = sbr.rel (%p319) target = $region48
        $region47: #{_encoder_jit.1} parent=31 // pred_region
          %p322 = scmp.lt.s32.totalorder %s21, 1
          %s323 = scalar_select %p322, %s21, 1
          %s324 = smul.addr %s323, 8
          %s325 = scalar_lea.vmem %s7, %s324
        $region48: #{_encoder_jit.1} parent=31 // pred_fallthru
          _
      $region32: #{_encoder_jit.1} parent=5 // pred_fallthru
        _
      %p326 = scmp.le.s32.totalorder 1, %s21
      %p327 = scmp.lt.s32.totalorder %s21, 3
      %p328 = pnand %p326, %p327
      %p329 = pneg %p328
      // Predicated region
      $region49: #{_encoder_jit.1} parent=5 // pred_check
        _
      $region50: #{_encoder_jit.1} parent=5 // pred_check_branch
        %331 = sbr.rel (%p328) target = $region52
      $region51: #{_encoder_jit.1} parent=5 // pred_region
        %s332 = ssub.s32 %s21, 1
        %s333 = sand.u32 %s118, 1
        %s334 = scalar_lea.sflag [#allocation5], %s333
        %s335 = sand.u32 %s118, 1
        %s336 = smul.addr %s335, 128
        %s337 = scalar_lea.vmem [#allocation4], %s336
        // Predicated region
        $region53: #{_encoder_jit.1} parent=51 // pred_check
          %p338 = pneg %p131
        $region54: #{_encoder_jit.1} parent=51 // pred_check_branch
          %340 = sbr.rel (%p338) target = $region56
        $region55: #{_encoder_jit.1} parent=51 // pred_region
          %341 = dma.done %s334, 2048
        $region56: #{_encoder_jit.1} parent=51 // pred_fallthru
          _
        %p342 = pneg %p42
        %p343 = pneg %p39
        %p344 = pneg %p63
        %p345 = pneg %p60
        %p346 = pneg %p84
        %p347 = pneg %p81
        %p348 = pneg %p105
        %p349 = pneg %p102
        %s350 = sand.u32 %s118, 1
        %s351 = scalar_lea.sflag [#allocation5], %s350
        %s352 = sand.u32 %s118, 1
        %s353 = smul.addr %s352, 128
        %s354 = scalar_lea.vmem [#allocation4], %s353
        %p355 = pneg %p131
        %p356 = pneg %p128
        %p357 = scmp.lt.s32.totalorder %s26, 1
        %s358 = scalar_select %p357, %s26, 1
        %s359 = smul.addr %s358, 4
        %s360 = smul.addr %s359, 8
        %s361 = scalar_lea.vmem %s5, %s360
        %p362 = pneg %p157
        %p363 = pneg %p154
        %p364 = scmp.lt.s32.totalorder %s26, 1
        %s365 = scalar_select %p364, %s26, 1
        %s366 = smul.addr %s365, 8
        %s367 = smul.addr %s366, 8
        %s368 = scalar_lea.vmem %s6, %s367
        %p369 = pneg %p183
        %p370 = pneg %p180
        %p371 = scmp.lt.s32.totalorder %s26, 1
        %s372 = scalar_select %p371, %s26, 1
        %s373 = smul.addr %s372, 8
        %s374 = scalar_lea.vmem %s7, %s373
        %p375 = pneg %p209
        %p376 = pneg %p206
        %p377 = pneg %p230
        %p378 = pneg %p227
        %p379 = pneg %p251
        %p380 = pneg %p248
        %p381 = scmp.lt.s32.totalorder %s26, 1
        %s382 = scalar_select %p381, %s26, 1
        %s383 = smul.addr %s382, 4
        %s384 = smul.addr %s383, 8
        %s385 = scalar_lea.vmem %s5, %s384
        %p386 = scmp.lt.s32.totalorder %s26, 1
        %s387 = scalar_select %p386, %s26, 1
        %s388 = smul.addr %s387, 8
        %s389 = smul.addr %s388, 8
        %s390 = scalar_lea.vmem %s6, %s389
        %p391 = scmp.lt.s32.totalorder %s26, 1
        %s392 = scalar_select %p391, %s26, 1
        %s393 = smul.addr %s392, 8
        %s394 = scalar_lea.vmem %s7, %s393
        %p395 = scmp.eq.s32.totalorder %s26, 0
        // Predicated region
        $region57: #{_encoder_jit.1} parent=51 // pred_check
          %p396 = pneg %p395
        $region58: #{_encoder_jit.1} parent=51 // pred_check_branch
          %398 = sbr.rel (%p396) target = $region60
        $region59: #{_encoder_jit.1} parent=51 // pred_region
          %v399 = vld [vmem:[%s0] sm:$0xff]
          %v400 = vld [vmem:[%s0 + $0x8] sm:$0xff]
          %vm401 = vcmask 261120
          %402 = vst.msk [vmem:[#allocation2] sm:$0xff] %vm401, %v399
          %403 = vst.msk [vmem:[#allocation2 + $0x8] sm:$0xff] %vm401, %v400
          %v404 = vld [vmem:[%s1] sm:$0xff]
          %v405 = vld [vmem:[%s1 + $0x8] sm:$0xff]
          %406 = vst.msk [vmem:[#allocation2 + $0x10] sm:$0xff] %vm401, %v404
          %407 = vst.msk [vmem:[#allocation2 + $0x18] sm:$0xff] %vm401, %v405
          %v408 = vld [vmem:[%s2] sm:$0xff]
          %v409 = vld [vmem:[%s2 + $0x8] sm:$0xff]
          %410 = vst.msk [vmem:[#allocation3] sm:$0xff] %vm401, %v408
          %411 = vst.msk [vmem:[#allocation3 + $0x8] sm:$0xff] %vm401, %v409
          %v412 = vld [vmem:[%s3] sm:$0xff]
          %v413 = vld [vmem:[%s3 + $0x8] sm:$0xff]
          %414 = vst.msk [vmem:[#allocation3 + $0x10] sm:$0xff] %vm401, %v412
          %415 = vst.msk [vmem:[#allocation3 + $0x18] sm:$0xff] %vm401, %v413
        $region60: #{_encoder_jit.1} parent=51 // pred_fallthru
          _
        %v416 = vld [vmem:[#allocation2] sm:$0xff]
        %v417 = vld [vmem:[#allocation2 + $0x8] sm:$0xff]
        %v418 = vld [vmem:[#allocation2 + $0x10] sm:$0xff]
        %v419 = vld [vmem:[#allocation2 + $0x18] sm:$0xff]
        %v420 = vld [vmem:[#allocation3] sm:$0xff]
        %v421 = vld [vmem:[#allocation3 + $0x8] sm:$0xff]
        %v422 = vld [vmem:[#allocation3 + $0x10] sm:$0xff]
        %v423 = vld [vmem:[#allocation3 + $0x18] sm:$0xff]
        %v424 = vld [vmem:[%s337] sm:$0xff]
        %v425 = vld [vmem:[%s337 + $0x8] sm:$0xff]
        %v426 = vld [vmem:[%s337 + $0x10] sm:$0xff]
        %v427 = vld [vmem:[%s337 + $0x18] sm:$0xff]
        %v428 = vld [vmem:[%s337 + $0x20] sm:$0xff]
        %v429 = vld [vmem:[%s337 + $0x28] sm:$0xff]
        %v430 = vld [vmem:[%s337 + $0x30] sm:$0xff]
        %v431 = vld [vmem:[%s337 + $0x38] sm:$0xff]
        %v432 = vld [vmem:[%s337 + $0x40] sm:$0xff]
        %v433 = vld [vmem:[%s337 + $0x48] sm:$0xff]
        %v434 = vld [vmem:[%s337 + $0x50] sm:$0xff]
        %v435 = vld [vmem:[%s337 + $0x58] sm:$0xff]
        %v436 = vld [vmem:[%s337 + $0x60] sm:$0xff]
        %v437 = vld [vmem:[%s337 + $0x68] sm:$0xff]
        %v438 = vld [vmem:[%s337 + $0x70] sm:$0xff]
        %v439 = vld [vmem:[%s337 + $0x78] sm:$0xff]
        %v440 = vld [vmem:[%s385] sm:$0xff]
        %v441 = vld [vmem:[%s385 + $0x8] sm:$0xff]
        %v442 = vld [vmem:[%s385 + $0x10] sm:$0xff]
        %v443 = vld [vmem:[%s385 + $0x18] sm:$0xff]
        %v444 = vld [vmem:[%s390] sm:$0xff]
        %v445 = vld [vmem:[%s390 + $0x8] sm:$0xff]
        %v446 = vld [vmem:[%s390 + $0x10] sm:$0xff]
        %v447 = vld [vmem:[%s390 + $0x18] sm:$0xff]
        %v448 = vld [vmem:[%s390 + $0x20] sm:$0xff]
        %v449 = vld [vmem:[%s390 + $0x28] sm:$0xff]
        %v450 = vld [vmem:[%s390 + $0x30] sm:$0xff]
        %v451 = vld [vmem:[%s390 + $0x38] sm:$0xff]
        %v452 = vld [vmem:[%s394] sm:$0xff]
        %v453 = vlaneseq
        %v454 = vshrl.u32 %v453, 7
        %v455 = vadd.s32 %v454, 8
        %v456 = vadd.s32 %v454, 16
        %v457 = vadd.s32 %v454, 24
        %v458 = vlaneseq
        %v459 = vand.u32 %v458, 127
        %vm460 = vcmp.lt.s32.totalorder %v454, 0
        %v461 = vsub.s32 0, %v454
        %v462 = vsel %vm460, %v461, %v454
        %v463 = vshrl.u32 %v462, 1
        %v464 = vand.u32 %v462, 1
        %v465 = vsub.s32 0, %v464
        %v466 = vsel %vm460, %v465, %v464
        %vm467 = vcmp.lt.s32.totalorder %v455, 0
        %v468 = vsub.s32 0, %v455
        %v469 = vsel %vm467, %v468, %v455
        %v470 = vshrl.u32 %v469, 1
        %v471 = vand.u32 %v469, 1
        %v472 = vsub.s32 0, %v471
        %v473 = vsel %vm467, %v472, %v471
        %vm474 = vcmp.lt.s32.totalorder %v456, 0
        %v475 = vsub.s32 0, %v456
        %v476 = vsel %vm474, %v475, %v456
        %v477 = vshrl.u32 %v476, 1
        %v478 = vand.u32 %v476, 1
        %v479 = vsub.s32 0, %v478
        %v480 = vsel %vm474, %v479, %v478
        %vm481 = vcmp.lt.s32.totalorder %v457, 0
        %v482 = vsub.s32 0, %v457
        %v483 = vsel %vm481, %v482, %v457
        %v484 = vshrl.u32 %v483, 1
        %v485 = vand.u32 %v483, 1
        %v486 = vsub.s32 0, %v485
        %v487 = vsel %vm481, %v486, %v485
        %vm488 = vcmp.ne.s32.totalorder %v466, 0
        %vm489 = vcmp.ne.s32.totalorder %v473, 0
        %vm490 = vcmp.ne.s32.totalorder %v480, 0
        %vm491 = vcmp.ne.s32.totalorder %v487, 0
        %vm492 = vcmp.lt.s32.totalorder %v466, 0
        %vm493 = vcmp.lt.s32.totalorder %v473, 0
        %vm494 = vcmp.lt.s32.totalorder %v480, 0
        %vm495 = vcmp.lt.s32.totalorder %v487, 0
        %vm496 = vmand %vm492, %vm488
        %vm497 = vmand %vm493, %vm489
        %vm498 = vmand %vm494, %vm490
        %vm499 = vmand %vm495, %vm491
        %v500 = vadd.s32 %v466, 2
        %v501 = vadd.s32 %v473, 2
        %v502 = vadd.s32 %v480, 2
        %v503 = vadd.s32 %v487, 2
        %v504 = vsel %vm496, %v500, %v466
        %v505 = vsel %vm497, %v501, %v473
        %v506 = vsel %vm498, %v502, %v480
        %v507 = vsel %vm499, %v503, %v487
        %vm508 = vcmp.lt.s32.totalorder %v459, 0
        %v509 = vsub.s32 0, %v459
        %v510 = vsel %vm508, %v509, %v459
        %v511 = vshrl.u32 %v510, 1
        %v512 = vand.u32 %v510, 1
        %v513 = vsub.s32 0, %v512
        %v514 = vsel %vm508, %v513, %v512
        %vm515 = vcmp.ne.s32.totalorder %v514, 0
        %vm516 = vcmp.lt.s32.totalorder %v514, 0
        %vm517 = vmand %vm516, %vm515
        %v518 = vadd.s32 %v514, 2
        %v519 = vsel %vm517, %v518, %v514
        %vm520 = vcmp.eq.s32.totalorder %v504, %v519
        %vm521 = vcmp.eq.s32.totalorder %v505, %v519
        %vm522 = vcmp.eq.s32.totalorder %v506, %v519
        %vm523 = vcmp.eq.s32.totalorder %v507, %v519
        %vm524 = vcmp.ge.s32.totalorder %v454, 16
        %vm525 = vcmp.ge.s32.totalorder %v455, 16
        %vm526 = vcmp.ge.s32.totalorder %v456, 16
        %vm527 = vcmp.ge.s32.totalorder %v457, 16
        %vm528 = vcmp.ge.s32.totalorder %v459, 16
        %vm529 = vmxor %vm524, %vm528
        %vm530 = vmxor %vm525, %vm528
        %vm531 = vmxor %vm526, %vm528
        %vm532 = vmxor %vm527, %vm528
        %vm533 = vmxor %vm529, 1
        %vm534 = vmxor %vm530, 1
        %vm535 = vmxor %vm531, 1
        %vm536 = vmxor %vm532, 1
        %vm537 = vmand %vm520, %vm533
        %vm538 = vmand %vm521, %vm534
        %vm539 = vmand %vm522, %vm535
        %vm540 = vmand %vm523, %vm536
        %vm541 = vmand %vm520, %vm529
        %vm542 = vmand %vm521, %vm530
        %vm543 = vmand %vm522, %vm531
        %vm544 = vmand %vm523, %vm532
        %549 = vrot.lane.b32.xlu0 %v420, 32
        %v550 = vpop.permute.xlu0 %549
        %551 = vrot.lane.b32.xlu0 %v421, 32
        %v552 = vpop.permute.xlu0 %551
        %553 = vrot.lane.b32.xlu0 %v422, 32
        %v554 = vpop.permute.xlu0 %553
        %555 = vrot.lane.b32.xlu0 %v423, 32
        %v556 = vpop.permute.xlu0 %555
        %vm561 = vcmask 261120
        %v562 = vsel %vm561, %v416, %v550
        %v563 = vsel %vm561, %v417, %v552
        %v564 = vsel %vm561, %v418, %v554
        %v565 = vsel %vm561, %v419, %v556
        %v566 = vlaneseq
        %v567 = vshrl.u32 %v566, 7
        %v568 = vsub.s32 0, %v567
        %v569 = vrot.slane %v452, %v568
        %vm570 = vcmask 523264
        %v572 = vsel %vm570, %v562, 0
        %v575 = vsel %vm570, %v563, 0
        %v578 = vsel %vm570, %v564, 0
        %v581 = vsel %vm570, %v565, 0
        %583 = vmatprep.subr.mxu0 0.0
        %584 = vmatpush1.msra.mxu0 0.0
        %585 = vmatprep.subr.mxu0 0.0
        %586 = vmatpush1.msra.mxu0 0.0
        %587 = vmatprep.subr.mxu0 0.0
        %588 = vmatpush1.msra.mxu0 0.0
        %589 = vmatprep.subr.mxu0 0.0
        %590 = vmatpush1.msra.mxu0 0.0
        %591 = vmatprep.subr.mxu0 0.0
        %592 = vmatpush1.msra.mxu0 0.0
        %593 = vmatprep.subr.mxu0 0.0
        %594 = vmatpush1.msra.mxu0 0.0
        %595 = vmatprep.subr.mxu0 0.0
        %596 = vmatpush1.msra.mxu0 0.0
        %597 = vmatprep.subr.mxu0 0.0
        %598 = vmatpush1.msra.mxu0 0.0
        %599 = vmatprep.subr.mxu0 0.0
        %600 = vmatpush1.msra.mxu0 %v438
        %601 = vmatprep.subr.mxu0 0.0
        %602 = vmatpush1.msra.mxu0 %v436
        %603 = vmatprep.subr.mxu0 0.0
        %604 = vmatpush1.msra.mxu0 %v434
        %605 = vmatprep.subr.mxu0 0.0
        %606 = vmatpush1.msra.mxu0 %v432
        %607 = vmatprep.subr.mxu0 0.0
        %608 = vmatpush1.msra.mxu0 %v430
        %609 = vmatprep.subr.mxu0 0.0
        %610 = vmatpush1.msra.mxu0 %v428
        %611 = vmatprep.subr.mxu0 0.0
        %612 = vmatpush1.msra.mxu0 %v426
        %613 = vmatprep.subr.mxu0 0.0
        %614 = vmatpush1.msra.mxu0 %v424
        %615 = vmatprep.subr.mxu0 0.0
        %616 = vmatpush2.msra.mxu0 0.0
        %617 = vmatprep.subr.mxu0 0.0
        %618 = vmatpush2.msra.mxu0 0.0
        %619 = vmatprep.subr.mxu0 0.0
        %620 = vmatpush2.msra.mxu0 0.0
        %621 = vmatprep.subr.mxu0 0.0
        %622 = vmatpush2.msra.mxu0 0.0
        %623 = vmatprep.subr.mxu0 0.0
        %624 = vmatpush2.msra.mxu0 0.0
        %625 = vmatprep.subr.mxu0 0.0
        %626 = vmatpush2.msra.mxu0 0.0
        %627 = vmatprep.subr.mxu0 0.0
        %628 = vmatpush2.msra.mxu0 0.0
        %629 = vmatprep.subr.mxu0 0.0
        %630 = vmatpush2.msra.mxu0 0.0
        %631 = vmatprep.subr.mxu0 0.0
        %632 = vmatpush2.msra.mxu0 0.0
        %633 = vmatprep.subr.mxu0 0.0
        %634 = vmatpush2.msra.mxu0 0.0
        %635 = vmatprep.subr.mxu0 0.0
        %636 = vmatpush2.msra.mxu0 0.0
        %637 = vmatprep.subr.mxu0 0.0
        %638 = vmatpush2.msra.mxu0 0.0
        %639 = vmatprep.subr.mxu0 0.0
        %640 = vmatpush2.msra.mxu0 0.0
        %641 = vmatprep.subr.mxu0 0.0
        %642 = vmatpush2.msra.mxu0 0.0
        %643 = vmatprep.subr.mxu0 0.0
        %644 = vmatpush2.msra.mxu0 0.0
        %645 = vmatprep.subr.mxu0 0.0
        %646 = vmatpush2.msra.mxu0 0.0
        %647 = vmatprep.mubr.f32.mxu0 0.0
        %648 = vmatmul.mubr.f32.gmra.mxu0 %v572
        %v649 = vpop.f32.mrf.mxu0
        %v650 = vadd.f32 %v569, %v649
        %v651 = vpop.f32.mrf.mxu0
        %652 = vmatprep.mubr.f32.mxu0 0.0
        %653 = vmatmul.mubr.f32.gmra.mxu0 %v575
        %v654 = vpop.f32.mrf.mxu0
        %v655 = vadd.f32 %v569, %v654
        %v656 = vpop.f32.mrf.mxu0
        %657 = vmatprep.mubr.f32.mxu0 0.0
        %658 = vmatmul.mubr.f32.gmra.mxu0 %v578
        %v659 = vpop.f32.mrf.mxu0
        %v660 = vadd.f32 %v569, %v659
        %v661 = vpop.f32.mrf.mxu0
        %662 = vmatprep.mubr.f32.mxu0 0.0
        %663 = vmatmul.mubr.f32.gmra.mxu0 %v581
        %v664 = vpop.f32.mrf.mxu0
        %v665 = vadd.f32 %v569, %v664
        %v666 = vpop.f32.mrf.mxu0
        %667 = vdwg.mxu0
        %672 = vrot.lane.b32.xlu0 %v650, 96
        %v673 = vpop.permute.xlu0 %672
        %674 = vrot.lane.b32.xlu0 %v655, 96
        %v675 = vpop.permute.xlu0 %674
        %676 = vrot.lane.b32.xlu0 %v660, 96
        %v677 = vpop.permute.xlu0 %676
        %678 = vrot.lane.b32.xlu0 %v665, 96
        %v679 = vpop.permute.xlu0 %678
        %vm680 = vcmask 64512
        %v681 = vsel %vm680, %v650, 0
        %v683 = vsel %vm680, %v655, 0
        %v685 = vsel %vm680, %v660, 0
        %v687 = vsel %vm680, %v665, 0
        %v689 = vsel %vm680, %v673, 0
        %v691 = vsel %vm680, %v675, 0
        %v693 = vsel %vm680, %v677, 0
        %v695 = vsel %vm680, %v679, 0
        %697 = vmatprep.subr.mxu0 0.0
        %698 = vmatpush1.xpose.msra.mxu0 0.0
        %699 = vmatprep.subr.mxu0 0.0
        %700 = vmatpush1.xpose.msra.mxu0 0.0
        %701 = vmatprep.subr.mxu0 0.0
        %702 = vmatpush1.xpose.msra.mxu0 0.0
        %703 = vmatprep.subr.mxu0 0.0
        %704 = vmatpush1.xpose.msra.mxu0 0.0
        %705 = vmatprep.subr.mxu0 0.0
        %706 = vmatpush1.xpose.msra.mxu0 0.0
        %707 = vmatprep.subr.mxu0 0.0
        %708 = vmatpush1.xpose.msra.mxu0 0.0
        %709 = vmatprep.subr.mxu0 0.0
        %710 = vmatpush1.xpose.msra.mxu0 0.0
        %711 = vmatprep.subr.mxu0 0.0
        %712 = vmatpush1.xpose.msra.mxu0 0.0
        %713 = vmatprep.subr.mxu0 0.0
        %714 = vmatpush1.xpose.msra.mxu0 0.0
        %715 = vmatprep.subr.mxu0 0.0
        %716 = vmatpush1.xpose.msra.mxu0 0.0
        %717 = vmatprep.subr.mxu0 0.0
        %718 = vmatpush1.xpose.msra.mxu0 0.0
        %719 = vmatprep.subr.mxu0 0.0
        %720 = vmatpush1.xpose.msra.mxu0 0.0
        %721 = vmatprep.subr.mxu0 0.0
        %722 = vmatpush1.xpose.msra.mxu0 %v695
        %723 = vmatprep.subr.mxu0 0.0
        %724 = vmatpush1.xpose.msra.mxu0 %v693
        %725 = vmatprep.subr.mxu0 0.0
        %726 = vmatpush1.xpose.msra.mxu0 %v691
        %727 = vmatprep.subr.mxu0 0.0
        %728 = vmatpush1.xpose.msra.mxu0 %v689
        %729 = vmatprep.subr.mxu0 0.0
        %730 = vmatpush2.xpose.msra.mxu0 0.0
        %731 = vmatprep.subr.mxu0 0.0
        %732 = vmatpush2.xpose.msra.mxu0 0.0
        %733 = vmatprep.subr.mxu0 0.0
        %734 = vmatpush2.xpose.msra.mxu0 0.0
        %735 = vmatprep.subr.mxu0 0.0
        %736 = vmatpush2.xpose.msra.mxu0 0.0
        %737 = vmatprep.subr.mxu0 0.0
        %738 = vmatpush2.xpose.msra.mxu0 0.0
        %739 = vmatprep.subr.mxu0 0.0
        %740 = vmatpush2.xpose.msra.mxu0 0.0
        %741 = vmatprep.subr.mxu0 0.0
        %742 = vmatpush2.xpose.msra.mxu0 0.0
        %743 = vmatprep.subr.mxu0 0.0
        %744 = vmatpush2.xpose.msra.mxu0 0.0
        %745 = vmatprep.subr.mxu0 0.0
        %746 = vmatpush2.xpose.msra.mxu0 0.0
        %747 = vmatprep.subr.mxu0 0.0
        %748 = vmatpush2.xpose.msra.mxu0 0.0
        %749 = vmatprep.subr.mxu0 0.0
        %750 = vmatpush2.xpose.msra.mxu0 0.0
        %751 = vmatprep.subr.mxu0 0.0
        %752 = vmatpush2.xpose.msra.mxu0 0.0
        %753 = vmatprep.subr.mxu0 0.0
        %754 = vmatpush2.xpose.msra.mxu0 0.0
        %755 = vmatprep.subr.mxu0 0.0
        %756 = vmatpush2.xpose.msra.mxu0 0.0
        %757 = vmatprep.subr.mxu0 0.0
        %758 = vmatpush2.xpose.msra.mxu0 0.0
        %759 = vmatprep.subr.mxu0 0.0
        %760 = vmatpush2.xpose.msra.mxu0 0.0
        %761 = vmatprep.mubr.f32.mxu0 0.0
        %762 = vmatmul.mubr.f32.gmra.mxu0 %v681
        %v763 = vpop.f32.mrf.mxu0
        %v764 = vadd.f32 0.0, %v763
        %v765 = vpop.f32.mrf.mxu0
        %766 = vmatprep.mubr.f32.mxu0 0.0
        %767 = vmatmul.mubr.f32.gmra.mxu0 %v683
        %v768 = vpop.f32.mrf.mxu0
        %v769 = vadd.f32 0.0, %v768
        %v770 = vpop.f32.mrf.mxu0
        %771 = vmatprep.mubr.f32.mxu0 0.0
        %772 = vmatmul.mubr.f32.gmra.mxu0 %v685
        %v773 = vpop.f32.mrf.mxu0
        %v774 = vadd.f32 0.0, %v773
        %v775 = vpop.f32.mrf.mxu0
        %776 = vmatprep.mubr.f32.mxu0 0.0
        %777 = vmatmul.mubr.f32.gmra.mxu0 %v687
        %v778 = vpop.f32.mrf.mxu0
        %v779 = vadd.f32 0.0, %v778
        %v780 = vpop.f32.mrf.mxu0
        %781 = vdwg.mxu0
        %v782 = vsel %vm537, %v764, -1e+30
        %v783 = vsel %vm538, %v769, -1e+30
        %v784 = vsel %vm539, %v774, -1e+30
        %v785 = vsel %vm540, %v779, -1e+30
        %v786 = vsel %vm561, %v782, -inf
        %787 = vmax.xlane.f32.xlu0 %v786
        %v788 = vpop.xlane.xlu0 %787
        %v789 = vsel %vm561, %v783, -inf
        %790 = vmax.xlane.f32.xlu0 %v789
        %v791 = vpop.xlane.xlu0 %790
        %v792 = vsel %vm561, %v784, -inf
        %793 = vmax.xlane.f32.xlu0 %v792
        %v794 = vpop.xlane.xlu0 %793
        %v795 = vsel %vm561, %v785, -inf
        %796 = vmax.xlane.f32.xlu0 %v795
        %v797 = vpop.xlane.xlu0 %796
        %v798 = vsub.f32 %v782, %v788
        %v799 = vsub.f32 %v783, %v791
        %v800 = vsub.f32 %v784, %v794
        %v801 = vsub.f32 %v785, %v797
        %v802 = vmul.f32 %v798, 1.442695
        %v803 = vpow.pop %v802
        %v804 = vmul.f32 %v799, 1.442695
        %v805 = vpow.pop %v804
        %v806 = vmul.f32 %v800, 1.442695
        %v807 = vpow.pop %v806
        %v808 = vmul.f32 %v801, 1.442695
        %v809 = vpow.pop %v808
        %v810 = vsel %vm561, %v803, 0.0
        %811 = vadd.xlane.f32.xlu0 %v810
        %v812 = vpop.xlane.xlu0 %811
        %v813 = vsel %vm561, %v805, 0.0
        %814 = vadd.xlane.f32.xlu0 %v813
        %v815 = vpop.xlane.xlu0 %814
        %v816 = vsel %vm561, %v807, 0.0
        %817 = vadd.xlane.f32.xlu0 %v816
        %v818 = vpop.xlane.xlu0 %817
        %v819 = vsel %vm561, %v809, 0.0
        %820 = vadd.xlane.f32.xlu0 %v819
        %v821 = vpop.xlane.xlu0 %820
        %v822 = vrcp.pop %v812
        %v823 = vrcp.pop %v815
        %v824 = vrcp.pop %v818
        %v825 = vrcp.pop %v821
        %v826 = vmul.f32 %v803, %v822
        %v827 = vmul.f32 %v805, %v823
        %v828 = vmul.f32 %v807, %v824
        %v829 = vmul.f32 %v809, %v825
        %830 = vrot.lane.b32.xlu0 %v650, 64
        %v831 = vpop.permute.xlu0 %830
        %832 = vrot.lane.b32.xlu0 %v655, 64
        %v833 = vpop.permute.xlu0 %832
        %834 = vrot.lane.b32.xlu0 %v660, 64
        %v835 = vpop.permute.xlu0 %834
        %836 = vrot.lane.b32.xlu0 %v665, 64
        %v837 = vpop.permute.xlu0 %836
        %v843 = vsel %vm561, %v826, 0
        %v846 = vsel %vm561, %v827, 0
        %v849 = vsel %vm561, %v828, 0
        %v852 = vsel %vm561, %v829, 0
        %854 = vmatprep.subr.mxu0 0.0
        %855 = vmatpush1.msra.mxu0 0.0
        %856 = vmatprep.subr.mxu0 0.0
        %857 = vmatpush1.msra.mxu0 0.0
        %858 = vmatprep.subr.mxu0 0.0
        %859 = vmatpush1.msra.mxu0 0.0
        %860 = vmatprep.subr.mxu0 0.0
        %861 = vmatpush1.msra.mxu0 0.0
        %862 = vmatprep.subr.mxu0 0.0
        %863 = vmatpush1.msra.mxu0 0.0
        %864 = vmatprep.subr.mxu0 0.0
        %865 = vmatpush1.msra.mxu0 0.0
        %866 = vmatprep.subr.mxu0 0.0
        %867 = vmatpush1.msra.mxu0 0.0
        %868 = vmatprep.subr.mxu0 0.0
        %869 = vmatpush1.msra.mxu0 0.0
        %870 = vmatprep.subr.mxu0 0.0
        %871 = vmatpush1.msra.mxu0 0.0
        %872 = vmatprep.subr.mxu0 0.0
        %873 = vmatpush1.msra.mxu0 0.0
        %874 = vmatprep.subr.mxu0 0.0
        %875 = vmatpush1.msra.mxu0 0.0
        %876 = vmatprep.subr.mxu0 0.0
        %877 = vmatpush1.msra.mxu0 0.0
        %878 = vmatprep.subr.mxu0 0.0
        %879 = vmatpush1.msra.mxu0 %v837
        %880 = vmatprep.subr.mxu0 0.0
        %881 = vmatpush1.msra.mxu0 %v835
        %882 = vmatprep.subr.mxu0 0.0
        %883 = vmatpush1.msra.mxu0 %v833
        %884 = vmatprep.subr.mxu0 0.0
        %885 = vmatpush1.msra.mxu0 %v831
        %886 = vmatprep.subr.mxu0 0.0
        %887 = vmatpush2.msra.mxu0 0.0
        %888 = vmatprep.subr.mxu0 0.0
        %889 = vmatpush2.msra.mxu0 0.0
        %890 = vmatprep.subr.mxu0 0.0
        %891 = vmatpush2.msra.mxu0 0.0
        %892 = vmatprep.subr.mxu0 0.0
        %893 = vmatpush2.msra.mxu0 0.0
        %894 = vmatprep.subr.mxu0 0.0
        %895 = vmatpush2.msra.mxu0 0.0
        %896 = vmatprep.subr.mxu0 0.0
        %897 = vmatpush2.msra.mxu0 0.0
        %898 = vmatprep.subr.mxu0 0.0
        %899 = vmatpush2.msra.mxu0 0.0
        %900 = vmatprep.subr.mxu0 0.0
        %901 = vmatpush2.msra.mxu0 0.0
        %902 = vmatprep.subr.mxu0 0.0
        %903 = vmatpush2.msra.mxu0 0.0
        %904 = vmatprep.subr.mxu0 0.0
        %905 = vmatpush2.msra.mxu0 0.0
        %906 = vmatprep.subr.mxu0 0.0
        %907 = vmatpush2.msra.mxu0 0.0
        %908 = vmatprep.subr.mxu0 0.0
        %909 = vmatpush2.msra.mxu0 0.0
        %910 = vmatprep.subr.mxu0 0.0
        %911 = vmatpush2.msra.mxu0 0.0
        %912 = vmatprep.subr.mxu0 0.0
        %913 = vmatpush2.msra.mxu0 0.0
        %914 = vmatprep.subr.mxu0 0.0
        %915 = vmatpush2.msra.mxu0 0.0
        %916 = vmatprep.subr.mxu0 0.0
        %917 = vmatpush2.msra.mxu0 0.0
        %918 = vmatprep.mubr.f32.mxu0 0.0
        %919 = vmatmul.mubr.f32.gmra.mxu0 %v843
        %v920 = vpop.f32.mrf.mxu0
        %v921 = vadd.f32 0.0, %v920
        %v922 = vpop.f32.mrf.mxu0
        %923 = vmatprep.mubr.f32.mxu0 0.0
        %924 = vmatmul.mubr.f32.gmra.mxu0 %v846
        %v925 = vpop.f32.mrf.mxu0
        %v926 = vadd.f32 0.0, %v925
        %v927 = vpop.f32.mrf.mxu0
        %928 = vmatprep.mubr.f32.mxu0 0.0
        %929 = vmatmul.mubr.f32.gmra.mxu0 %v849
        %v930 = vpop.f32.mrf.mxu0
        %v931 = vadd.f32 0.0, %v930
        %v932 = vpop.f32.mrf.mxu0
        %933 = vmatprep.mubr.f32.mxu0 0.0
        %934 = vmatmul.mubr.f32.gmra.mxu0 %v852
        %v935 = vpop.f32.mrf.mxu0
        %v936 = vadd.f32 0.0, %v935
        %v937 = vpop.f32.mrf.mxu0
        %938 = vdwg.mxu0
        %939 = vrot.lane.b32.xlu0 %v650, 120
        %v940 = vpop.permute.xlu0 %939
        %941 = vrot.lane.b32.xlu0 %v655, 120
        %v942 = vpop.permute.xlu0 %941
        %943 = vrot.lane.b32.xlu0 %v660, 120
        %v944 = vpop.permute.xlu0 %943
        %945 = vrot.lane.b32.xlu0 %v665, 120
        %v946 = vpop.permute.xlu0 %945
        %947 = vrot.lane.b32.xlu0 %v650, 88
        %v948 = vpop.permute.xlu0 %947
        %949 = vrot.lane.b32.xlu0 %v655, 88
        %v950 = vpop.permute.xlu0 %949
        %951 = vrot.lane.b32.xlu0 %v660, 88
        %v952 = vpop.permute.xlu0 %951
        %953 = vrot.lane.b32.xlu0 %v665, 88
        %v954 = vpop.permute.xlu0 %953
        %v955 = vsel %vm680, %v940, 0
        %v957 = vsel %vm680, %v942, 0
        %v959 = vsel %vm680, %v944, 0
        %v961 = vsel %vm680, %v946, 0
        %v963 = vsel %vm680, %v948, 0
        %v965 = vsel %vm680, %v950, 0
        %v967 = vsel %vm680, %v952, 0
        %v969 = vsel %vm680, %v954, 0
        %971 = vmatprep.subr.mxu0 0.0
        %972 = vmatpush1.xpose.msra.mxu0 0.0
        %973 = vmatprep.subr.mxu0 0.0
        %974 = vmatpush1.xpose.msra.mxu0 0.0
        %975 = vmatprep.subr.mxu0 0.0
        %976 = vmatpush1.xpose.msra.mxu0 0.0
        %977 = vmatprep.subr.mxu0 0.0
        %978 = vmatpush1.xpose.msra.mxu0 0.0
        %979 = vmatprep.subr.mxu0 0.0
        %980 = vmatpush1.xpose.msra.mxu0 0.0
        %981 = vmatprep.subr.mxu0 0.0
        %982 = vmatpush1.xpose.msra.mxu0 0.0
        %983 = vmatprep.subr.mxu0 0.0
        %984 = vmatpush1.xpose.msra.mxu0 0.0
        %985 = vmatprep.subr.mxu0 0.0
        %986 = vmatpush1.xpose.msra.mxu0 0.0
        %987 = vmatprep.subr.mxu0 0.0
        %988 = vmatpush1.xpose.msra.mxu0 0.0
        %989 = vmatprep.subr.mxu0 0.0
        %990 = vmatpush1.xpose.msra.mxu0 0.0
        %991 = vmatprep.subr.mxu0 0.0
        %992 = vmatpush1.xpose.msra.mxu0 0.0
        %993 = vmatprep.subr.mxu0 0.0
        %994 = vmatpush1.xpose.msra.mxu0 0.0
        %995 = vmatprep.subr.mxu0 0.0
        %996 = vmatpush1.xpose.msra.mxu0 %v969
        %997 = vmatprep.subr.mxu0 0.0
        %998 = vmatpush1.xpose.msra.mxu0 %v967
        %999 = vmatprep.subr.mxu0 0.0
        %1000 = vmatpush1.xpose.msra.mxu0 %v965
        %1001 = vmatprep.subr.mxu0 0.0
        %1002 = vmatpush1.xpose.msra.mxu0 %v963
        %1003 = vmatprep.subr.mxu0 0.0
        %1004 = vmatpush2.xpose.msra.mxu0 0.0
        %1005 = vmatprep.subr.mxu0 0.0
        %1006 = vmatpush2.xpose.msra.mxu0 0.0
        %1007 = vmatprep.subr.mxu0 0.0
        %1008 = vmatpush2.xpose.msra.mxu0 0.0
        %1009 = vmatprep.subr.mxu0 0.0
        %1010 = vmatpush2.xpose.msra.mxu0 0.0
        %1011 = vmatprep.subr.mxu0 0.0
        %1012 = vmatpush2.xpose.msra.mxu0 0.0
        %1013 = vmatprep.subr.mxu0 0.0
        %1014 = vmatpush2.xpose.msra.mxu0 0.0
        %1015 = vmatprep.subr.mxu0 0.0
        %1016 = vmatpush2.xpose.msra.mxu0 0.0
        %1017 = vmatprep.subr.mxu0 0.0
        %1018 = vmatpush2.xpose.msra.mxu0 0.0
        %1019 = vmatprep.subr.mxu0 0.0
        %1020 = vmatpush2.xpose.msra.mxu0 0.0
        %1021 = vmatprep.subr.mxu0 0.0
        %1022 = vmatpush2.xpose.msra.mxu0 0.0
        %1023 = vmatprep.subr.mxu0 0.0
        %1024 = vmatpush2.xpose.msra.mxu0 0.0
        %1025 = vmatprep.subr.mxu0 0.0
        %1026 = vmatpush2.xpose.msra.mxu0 0.0
        %1027 = vmatprep.subr.mxu0 0.0
        %1028 = vmatpush2.xpose.msra.mxu0 0.0
        %1029 = vmatprep.subr.mxu0 0.0
        %1030 = vmatpush2.xpose.msra.mxu0 0.0
        %1031 = vmatprep.subr.mxu0 0.0
        %1032 = vmatpush2.xpose.msra.mxu0 0.0
        %1033 = vmatprep.subr.mxu0 0.0
        %1034 = vmatpush2.xpose.msra.mxu0 0.0
        %1035 = vmatprep.mubr.f32.mxu0 0.0
        %1036 = vmatmul.mubr.f32.gmra.mxu0 %v955
        %v1037 = vpop.f32.mrf.mxu0
        %v1038 = vadd.f32 0.0, %v1037
        %v1039 = vpop.f32.mrf.mxu0
        %1040 = vmatprep.mubr.f32.mxu0 0.0
        %1041 = vmatmul.mubr.f32.gmra.mxu0 %v957
        %v1042 = vpop.f32.mrf.mxu0
        %v1043 = vadd.f32 0.0, %v1042
        %v1044 = vpop.f32.mrf.mxu0
        %1045 = vmatprep.mubr.f32.mxu0 0.0
        %1046 = vmatmul.mubr.f32.gmra.mxu0 %v959
        %v1047 = vpop.f32.mrf.mxu0
        %v1048 = vadd.f32 0.0, %v1047
        %v1049 = vpop.f32.mrf.mxu0
        %1050 = vmatprep.mubr.f32.mxu0 0.0
        %1051 = vmatmul.mubr.f32.gmra.mxu0 %v961
        %v1052 = vpop.f32.mrf.mxu0
        %v1053 = vadd.f32 0.0, %v1052
        %v1054 = vpop.f32.mrf.mxu0
        %1055 = vdwg.mxu0
        %v1056 = vsel %vm537, %v1038, -1e+30
        %v1057 = vsel %vm538, %v1043, -1e+30
        %v1058 = vsel %vm539, %v1048, -1e+30
        %v1059 = vsel %vm540, %v1053, -1e+30
        %v1060 = vsel %vm561, %v1056, -inf
        %1061 = vmax.xlane.f32.xlu0 %v1060
        %v1062 = vpop.xlane.xlu0 %1061
        %v1063 = vsel %vm561, %v1057, -inf
        %1064 = vmax.xlane.f32.xlu0 %v1063
        %v1065 = vpop.xlane.xlu0 %1064
        %v1066 = vsel %vm561, %v1058, -inf
        %1067 = vmax.xlane.f32.xlu0 %v1066
        %v1068 = vpop.xlane.xlu0 %1067
        %v1069 = vsel %vm561, %v1059, -inf
        %1070 = vmax.xlane.f32.xlu0 %v1069
        %v1071 = vpop.xlane.xlu0 %1070
        %v1072 = vsub.f32 %v1056, %v1062
        %v1073 = vsub.f32 %v1057, %v1065
        %v1074 = vsub.f32 %v1058, %v1068
        %v1075 = vsub.f32 %v1059, %v1071
        %v1076 = vmul.f32 %v1072, 1.442695
        %v1077 = vpow.pop %v1076
        %v1078 = vmul.f32 %v1073, 1.442695
        %v1079 = vpow.pop %v1078
        %v1080 = vmul.f32 %v1074, 1.442695
        %v1081 = vpow.pop %v1080
        %v1082 = vmul.f32 %v1075, 1.442695
        %v1083 = vpow.pop %v1082
        %v1084 = vsel %vm561, %v1077, 0.0
        %1085 = vadd.xlane.f32.xlu0 %v1084
        %v1086 = vpop.xlane.xlu0 %1085
        %v1087 = vsel %vm561, %v1079, 0.0
        %1088 = vadd.xlane.f32.xlu0 %v1087
        %v1089 = vpop.xlane.xlu0 %1088
        %v1090 = vsel %vm561, %v1081, 0.0
        %1091 = vadd.xlane.f32.xlu0 %v1090
        %v1092 = vpop.xlane.xlu0 %1091
        %v1093 = vsel %vm561, %v1083, 0.0
        %1094 = vadd.xlane.f32.xlu0 %v1093
        %v1095 = vpop.xlane.xlu0 %1094
        %v1096 = vrcp.pop %v1086
        %v1097 = vrcp.pop %v1089
        %v1098 = vrcp.pop %v1092
        %v1099 = vrcp.pop %v1095
        %v1100 = vmul.f32 %v1077, %v1096
        %v1101 = vmul.f32 %v1079, %v1097
        %v1102 = vmul.f32 %v1081, %v1098
        %v1103 = vmul.f32 %v1083, %v1099
        %1104 = vrot.lane.b32.xlu0 %v650, 56
        %v1105 = vpop.permute.xlu0 %1104
        %1106 = vrot.lane.b32.xlu0 %v655, 56
        %v1107 = vpop.permute.xlu0 %1106
        %1108 = vrot.lane.b32.xlu0 %v660, 56
        %v1109 = vpop.permute.xlu0 %1108
        %1110 = vrot.lane.b32.xlu0 %v665, 56
        %v1111 = vpop.permute.xlu0 %1110
        %v1117 = vsel %vm561, %v1100, 0
        %v1120 = vsel %vm561, %v1101, 0
        %v1123 = vsel %vm561, %v1102, 0
        %v1126 = vsel %vm561, %v1103, 0
        %1128 = vmatprep.subr.mxu0 0.0
        %1129 = vmatpush1.msra.mxu0 0.0
        %1130 = vmatprep.subr.mxu0 0.0
        %1131 = vmatpush1.msra.mxu0 0.0
        %1132 = vmatprep.subr.mxu0 0.0
        %1133 = vmatpush1.msra.mxu0 0.0
        %1134 = vmatprep.subr.mxu0 0.0
        %1135 = vmatpush1.msra.mxu0 0.0
        %1136 = vmatprep.subr.mxu0 0.0
        %1137 = vmatpush1.msra.mxu0 0.0
        %1138 = vmatprep.subr.mxu0 0.0
        %1139 = vmatpush1.msra.mxu0 0.0
        %1140 = vmatprep.subr.mxu0 0.0
        %1141 = vmatpush1.msra.mxu0 0.0
        %1142 = vmatprep.subr.mxu0 0.0
        %1143 = vmatpush1.msra.mxu0 0.0
        %1144 = vmatprep.subr.mxu0 0.0
        %1145 = vmatpush1.msra.mxu0 0.0
        %1146 = vmatprep.subr.mxu0 0.0
        %1147 = vmatpush1.msra.mxu0 0.0
        %1148 = vmatprep.subr.mxu0 0.0
        %1149 = vmatpush1.msra.mxu0 0.0
        %1150 = vmatprep.subr.mxu0 0.0
        %1151 = vmatpush1.msra.mxu0 0.0
        %1152 = vmatprep.subr.mxu0 0.0
        %1153 = vmatpush1.msra.mxu0 %v1111
        %1154 = vmatprep.subr.mxu0 0.0
        %1155 = vmatpush1.msra.mxu0 %v1109
        %1156 = vmatprep.subr.mxu0 0.0
        %1157 = vmatpush1.msra.mxu0 %v1107
        %1158 = vmatprep.subr.mxu0 0.0
        %1159 = vmatpush1.msra.mxu0 %v1105
        %1160 = vmatprep.subr.mxu0 0.0
        %1161 = vmatpush2.msra.mxu0 0.0
        %1162 = vmatprep.subr.mxu0 0.0
        %1163 = vmatpush2.msra.mxu0 0.0
        %1164 = vmatprep.subr.mxu0 0.0
        %1165 = vmatpush2.msra.mxu0 0.0
        %1166 = vmatprep.subr.mxu0 0.0
        %1167 = vmatpush2.msra.mxu0 0.0
        %1168 = vmatprep.subr.mxu0 0.0
        %1169 = vmatpush2.msra.mxu0 0.0
        %1170 = vmatprep.subr.mxu0 0.0
        %1171 = vmatpush2.msra.mxu0 0.0
        %1172 = vmatprep.subr.mxu0 0.0
        %1173 = vmatpush2.msra.mxu0 0.0
        %1174 = vmatprep.subr.mxu0 0.0
        %1175 = vmatpush2.msra.mxu0 0.0
        %1176 = vmatprep.subr.mxu0 0.0
        %1177 = vmatpush2.msra.mxu0 0.0
        %1178 = vmatprep.subr.mxu0 0.0
        %1179 = vmatpush2.msra.mxu0 0.0
        %1180 = vmatprep.subr.mxu0 0.0
        %1181 = vmatpush2.msra.mxu0 0.0
        %1182 = vmatprep.subr.mxu0 0.0
        %1183 = vmatpush2.msra.mxu0 0.0
        %1184 = vmatprep.subr.mxu0 0.0
        %1185 = vmatpush2.msra.mxu0 0.0
        %1186 = vmatprep.subr.mxu0 0.0
        %1187 = vmatpush2.msra.mxu0 0.0
        %1188 = vmatprep.subr.mxu0 0.0
        %1189 = vmatpush2.msra.mxu0 0.0
        %1190 = vmatprep.subr.mxu0 0.0
        %1191 = vmatpush2.msra.mxu0 0.0
        %1192 = vmatprep.mubr.f32.mxu0 0.0
        %1193 = vmatmul.mubr.f32.gmra.mxu0 %v1117
        %v1194 = vpop.f32.mrf.mxu0
        %v1195 = vadd.f32 0.0, %v1194
        %v1196 = vpop.f32.mrf.mxu0
        %1197 = vmatprep.mubr.f32.mxu0 0.0
        %1198 = vmatmul.mubr.f32.gmra.mxu0 %v1120
        %v1199 = vpop.f32.mrf.mxu0
        %v1200 = vadd.f32 0.0, %v1199
        %v1201 = vpop.f32.mrf.mxu0
        %1202 = vmatprep.mubr.f32.mxu0 0.0
        %1203 = vmatmul.mubr.f32.gmra.mxu0 %v1123
        %v1204 = vpop.f32.mrf.mxu0
        %v1205 = vadd.f32 0.0, %v1204
        %v1206 = vpop.f32.mrf.mxu0
        %1207 = vmatprep.mubr.f32.mxu0 0.0
        %1208 = vmatmul.mubr.f32.gmra.mxu0 %v1126
        %v1209 = vpop.f32.mrf.mxu0
        %v1210 = vadd.f32 0.0, %v1209
        %v1211 = vpop.f32.mrf.mxu0
        %1212 = vdwg.mxu0
        %v1214 = vsel %vm680, %v1195, 0
        %v1217 = vsel %vm680, %v1200, 0
        %v1220 = vsel %vm680, %v1205, 0
        %v1223 = vsel %vm680, %v1210, 0
        %1225 = vmatprep.subr.mxu0 0.0
        %1226 = vmatpush1.msra.mxu0 0.0
        %1227 = vmatprep.subr.mxu0 0.0
        %1228 = vmatpush1.msra.mxu0 0.0
        %1229 = vmatprep.subr.mxu0 0.0
        %1230 = vmatpush1.msra.mxu0 0.0
        %1231 = vmatprep.subr.mxu0 0.0
        %1232 = vmatpush1.msra.mxu0 0.0
        %1233 = vmatprep.subr.mxu0 0.0
        %1234 = vmatpush1.msra.mxu0 0.0
        %1235 = vmatprep.subr.mxu0 0.0
        %1236 = vmatpush1.msra.mxu0 0.0
        %1237 = vmatprep.subr.mxu0 0.0
        %1238 = vmatpush1.msra.mxu0 0.0
        %1239 = vmatprep.subr.mxu0 0.0
        %1240 = vmatpush1.msra.mxu0 0.0
        %1241 = vmatprep.subr.mxu0 0.0
        %1242 = vmatpush1.msra.mxu0 0.0
        %1243 = vmatprep.subr.mxu0 0.0
        %1244 = vmatpush1.msra.mxu0 0.0
        %1245 = vmatprep.subr.mxu0 0.0
        %1246 = vmatpush1.msra.mxu0 0.0
        %1247 = vmatprep.subr.mxu0 0.0
        %1248 = vmatpush1.msra.mxu0 0.0
        %1249 = vmatprep.subr.mxu0 0.0
        %1250 = vmatpush1.msra.mxu0 0.0
        %1251 = vmatprep.subr.mxu0 0.0
        %1252 = vmatpush1.msra.mxu0 0.0
        %1253 = vmatprep.subr.mxu0 0.0
        %1254 = vmatpush1.msra.mxu0 0.0
        %1255 = vmatprep.subr.mxu0 0.0
        %1256 = vmatpush1.msra.mxu0 %v441
        %1257 = vmatprep.subr.mxu0 0.0
        %1258 = vmatpush2.msra.mxu0 0.0
        %1259 = vmatprep.subr.mxu0 0.0
        %1260 = vmatpush2.msra.mxu0 0.0
        %1261 = vmatprep.subr.mxu0 0.0
        %1262 = vmatpush2.msra.mxu0 0.0
        %1263 = vmatprep.subr.mxu0 0.0
        %1264 = vmatpush2.msra.mxu0 0.0
        %1265 = vmatprep.subr.mxu0 0.0
        %1266 = vmatpush2.msra.mxu0 0.0
        %1267 = vmatprep.subr.mxu0 0.0
        %1268 = vmatpush2.msra.mxu0 0.0
        %1269 = vmatprep.subr.mxu0 0.0
        %1270 = vmatpush2.msra.mxu0 0.0
        %1271 = vmatprep.subr.mxu0 0.0
        %1272 = vmatpush2.msra.mxu0 0.0
        %1273 = vmatprep.subr.mxu0 0.0
        %1274 = vmatpush2.msra.mxu0 0.0
        %1275 = vmatprep.subr.mxu0 0.0
        %1276 = vmatpush2.msra.mxu0 0.0
        %1277 = vmatprep.subr.mxu0 0.0
        %1278 = vmatpush2.msra.mxu0 0.0
        %1279 = vmatprep.subr.mxu0 0.0
        %1280 = vmatpush2.msra.mxu0 0.0
        %1281 = vmatprep.subr.mxu0 0.0
        %1282 = vmatpush2.msra.mxu0 0.0
        %1283 = vmatprep.subr.mxu0 0.0
        %1284 = vmatpush2.msra.mxu0 0.0
        %1285 = vmatprep.subr.mxu0 0.0
        %1286 = vmatpush2.msra.mxu0 0.0
        %1287 = vmatprep.subr.mxu0 0.0
        %1288 = vmatpush2.msra.mxu0 0.0
        %1289 = vmatprep.mubr.f32.mxu0 0.0
        %1290 = vmatmul.mubr.f32.gmra.mxu0 %v1214
        %v1291 = vpop.f32.mrf.mxu0
        %v1292 = vadd.f32 0.0, %v1291
        %v1293 = vpop.f32.mrf.mxu0
        %1294 = vmatprep.mubr.f32.mxu0 0.0
        %1295 = vmatmul.mubr.f32.gmra.mxu0 %v1217
        %v1296 = vpop.f32.mrf.mxu0
        %v1297 = vadd.f32 0.0, %v1296
        %v1298 = vpop.f32.mrf.mxu0
        %1299 = vmatprep.mubr.f32.mxu0 0.0
        %1300 = vmatmul.mubr.f32.gmra.mxu0 %v1220
        %v1301 = vpop.f32.mrf.mxu0
        %v1302 = vadd.f32 0.0, %v1301
        %v1303 = vpop.f32.mrf.mxu0
        %1304 = vmatprep.mubr.f32.mxu0 0.0
        %1305 = vmatmul.mubr.f32.gmra.mxu0 %v1223
        %v1306 = vpop.f32.mrf.mxu0
        %v1307 = vadd.f32 0.0, %v1306
        %v1308 = vpop.f32.mrf.mxu0
        %1309 = vdwg.mxu0
        %v1311 = vsel %vm680, %v921, 0
        %v1314 = vsel %vm680, %v926, 0
        %v1317 = vsel %vm680, %v931, 0
        %v1320 = vsel %vm680, %v936, 0
        %1322 = vmatprep.subr.mxu0 0.0
        %1323 = vmatpush1.msra.mxu0 0.0
        %1324 = vmatprep.subr.mxu0 0.0
        %1325 = vmatpush1.msra.mxu0 0.0
        %1326 = vmatprep.subr.mxu0 0.0
        %1327 = vmatpush1.msra.mxu0 0.0
        %1328 = vmatprep.subr.mxu0 0.0
        %1329 = vmatpush1.msra.mxu0 0.0
        %1330 = vmatprep.subr.mxu0 0.0
        %1331 = vmatpush1.msra.mxu0 0.0
        %1332 = vmatprep.subr.mxu0 0.0
        %1333 = vmatpush1.msra.mxu0 0.0
        %1334 = vmatprep.subr.mxu0 0.0
        %1335 = vmatpush1.msra.mxu0 0.0
        %1336 = vmatprep.subr.mxu0 0.0
        %1337 = vmatpush1.msra.mxu0 0.0
        %1338 = vmatprep.subr.mxu0 0.0
        %1339 = vmatpush1.msra.mxu0 0.0
        %1340 = vmatprep.subr.mxu0 0.0
        %1341 = vmatpush1.msra.mxu0 0.0
        %1342 = vmatprep.subr.mxu0 0.0
        %1343 = vmatpush1.msra.mxu0 0.0
        %1344 = vmatprep.subr.mxu0 0.0
        %1345 = vmatpush1.msra.mxu0 0.0
        %1346 = vmatprep.subr.mxu0 0.0
        %1347 = vmatpush1.msra.mxu0 0.0
        %1348 = vmatprep.subr.mxu0 0.0
        %1349 = vmatpush1.msra.mxu0 0.0
        %1350 = vmatprep.subr.mxu0 0.0
        %1351 = vmatpush1.msra.mxu0 0.0
        %1352 = vmatprep.subr.mxu0 0.0
        %1353 = vmatpush1.msra.mxu0 %v440
        %1354 = vmatprep.subr.mxu0 0.0
        %1355 = vmatpush2.msra.mxu0 0.0
        %1356 = vmatprep.subr.mxu0 0.0
        %1357 = vmatpush2.msra.mxu0 0.0
        %1358 = vmatprep.subr.mxu0 0.0
        %1359 = vmatpush2.msra.mxu0 0.0
        %1360 = vmatprep.subr.mxu0 0.0
        %1361 = vmatpush2.msra.mxu0 0.0
        %1362 = vmatprep.subr.mxu0 0.0
        %1363 = vmatpush2.msra.mxu0 0.0
        %1364 = vmatprep.subr.mxu0 0.0
        %1365 = vmatpush2.msra.mxu0 0.0
        %1366 = vmatprep.subr.mxu0 0.0
        %1367 = vmatpush2.msra.mxu0 0.0
        %1368 = vmatprep.subr.mxu0 0.0
        %1369 = vmatpush2.msra.mxu0 0.0
        %1370 = vmatprep.subr.mxu0 0.0
        %1371 = vmatpush2.msra.mxu0 0.0
        %1372 = vmatprep.subr.mxu0 0.0
        %1373 = vmatpush2.msra.mxu0 0.0
        %1374 = vmatprep.subr.mxu0 0.0
        %1375 = vmatpush2.msra.mxu0 0.0
        %1376 = vmatprep.subr.mxu0 0.0
        %1377 = vmatpush2.msra.mxu0 0.0
        %1378 = vmatprep.subr.mxu0 0.0
        %1379 = vmatpush2.msra.mxu0 0.0
        %1380 = vmatprep.subr.mxu0 0.0
        %1381 = vmatpush2.msra.mxu0 0.0
        %1382 = vmatprep.subr.mxu0 0.0
        %1383 = vmatpush2.msra.mxu0 0.0
        %1384 = vmatprep.subr.mxu0 0.0
        %1385 = vmatpush2.msra.mxu0 0.0
        %1386 = vmatprep.mubr.f32.mxu0 0.0
        %1387 = vmatmul.mubr.f32.gmra.mxu0 %v1311
        %v1388 = vpop.f32.mrf.mxu0
        %v1389 = vadd.f32 %v1292, %v1388
        %v1390 = vpop.f32.mrf.mxu0
        %1391 = vmatprep.mubr.f32.mxu0 0.0
        %1392 = vmatmul.mubr.f32.gmra.mxu0 %v1314
        %v1393 = vpop.f32.mrf.mxu0
        %v1394 = vadd.f32 %v1297, %v1393
        %v1395 = vpop.f32.mrf.mxu0
        %1396 = vmatprep.mubr.f32.mxu0 0.0
        %1397 = vmatmul.mubr.f32.gmra.mxu0 %v1317
        %v1398 = vpop.f32.mrf.mxu0
        %v1399 = vadd.f32 %v1302, %v1398
        %v1400 = vpop.f32.mrf.mxu0
        %1401 = vmatprep.mubr.f32.mxu0 0.0
        %1402 = vmatmul.mubr.f32.gmra.mxu0 %v1320
        %v1403 = vpop.f32.mrf.mxu0
        %v1404 = vadd.f32 %v1307, %v1403
        %v1405 = vpop.f32.mrf.mxu0
        %1406 = vdwg.mxu0
        %1407 = vrot.lane.b32.xlu0 %v650, 112
        %v1408 = vpop.permute.xlu0 %1407
        %1409 = vrot.lane.b32.xlu0 %v655, 112
        %v1410 = vpop.permute.xlu0 %1409
        %1411 = vrot.lane.b32.xlu0 %v660, 112
        %v1412 = vpop.permute.xlu0 %1411
        %1413 = vrot.lane.b32.xlu0 %v665, 112
        %v1414 = vpop.permute.xlu0 %1413
        %1415 = vrot.lane.b32.xlu0 %v650, 80
        %v1416 = vpop.permute.xlu0 %1415
        %1417 = vrot.lane.b32.xlu0 %v655, 80
        %v1418 = vpop.permute.xlu0 %1417
        %1419 = vrot.lane.b32.xlu0 %v660, 80
        %v1420 = vpop.permute.xlu0 %1419
        %1421 = vrot.lane.b32.xlu0 %v665, 80
        %v1422 = vpop.permute.xlu0 %1421
        %v1423 = vsel %vm680, %v1408, 0
        %v1425 = vsel %vm680, %v1410, 0
        %v1427 = vsel %vm680, %v1412, 0
        %v1429 = vsel %vm680, %v1414, 0
        %v1431 = vsel %vm680, %v1416, 0
        %v1433 = vsel %vm680, %v1418, 0
        %v1435 = vsel %vm680, %v1420, 0
        %v1437 = vsel %vm680, %v1422, 0
        %1439 = vmatprep.subr.mxu0 0.0
        %1440 = vmatpush1.xpose.msra.mxu0 0.0
        %1441 = vmatprep.subr.mxu0 0.0
        %1442 = vmatpush1.xpose.msra.mxu0 0.0
        %1443 = vmatprep.subr.mxu0 0.0
        %1444 = vmatpush1.xpose.msra.mxu0 0.0
        %1445 = vmatprep.subr.mxu0 0.0
        %1446 = vmatpush1.xpose.msra.mxu0 0.0
        %1447 = vmatprep.subr.mxu0 0.0
        %1448 = vmatpush1.xpose.msra.mxu0 0.0
        %1449 = vmatprep.subr.mxu0 0.0
        %1450 = vmatpush1.xpose.msra.mxu0 0.0
        %1451 = vmatprep.subr.mxu0 0.0
        %1452 = vmatpush1.xpose.msra.mxu0 0.0
        %1453 = vmatprep.subr.mxu0 0.0
        %1454 = vmatpush1.xpose.msra.mxu0 0.0
        %1455 = vmatprep.subr.mxu0 0.0
        %1456 = vmatpush1.xpose.msra.mxu0 0.0
        %1457 = vmatprep.subr.mxu0 0.0
        %1458 = vmatpush1.xpose.msra.mxu0 0.0
        %1459 = vmatprep.subr.mxu0 0.0
        %1460 = vmatpush1.xpose.msra.mxu0 0.0
        %1461 = vmatprep.subr.mxu0 0.0
        %1462 = vmatpush1.xpose.msra.mxu0 0.0
        %1463 = vmatprep.subr.mxu0 0.0
        %1464 = vmatpush1.xpose.msra.mxu0 %v1437
        %1465 = vmatprep.subr.mxu0 0.0
        %1466 = vmatpush1.xpose.msra.mxu0 %v1435
        %1467 = vmatprep.subr.mxu0 0.0
        %1468 = vmatpush1.xpose.msra.mxu0 %v1433
        %1469 = vmatprep.subr.mxu0 0.0
        %1470 = vmatpush1.xpose.msra.mxu0 %v1431
        %1471 = vmatprep.subr.mxu0 0.0
        %1472 = vmatpush2.xpose.msra.mxu0 0.0
        %1473 = vmatprep.subr.mxu0 0.0
        %1474 = vmatpush2.xpose.msra.mxu0 0.0
        %1475 = vmatprep.subr.mxu0 0.0
        %1476 = vmatpush2.xpose.msra.mxu0 0.0
        %1477 = vmatprep.subr.mxu0 0.0
        %1478 = vmatpush2.xpose.msra.mxu0 0.0
        %1479 = vmatprep.subr.mxu0 0.0
        %1480 = vmatpush2.xpose.msra.mxu0 0.0
        %1481 = vmatprep.subr.mxu0 0.0
        %1482 = vmatpush2.xpose.msra.mxu0 0.0
        %1483 = vmatprep.subr.mxu0 0.0
        %1484 = vmatpush2.xpose.msra.mxu0 0.0
        %1485 = vmatprep.subr.mxu0 0.0
        %1486 = vmatpush2.xpose.msra.mxu0 0.0
        %1487 = vmatprep.subr.mxu0 0.0
        %1488 = vmatpush2.xpose.msra.mxu0 0.0
        %1489 = vmatprep.subr.mxu0 0.0
        %1490 = vmatpush2.xpose.msra.mxu0 0.0
        %1491 = vmatprep.subr.mxu0 0.0
        %1492 = vmatpush2.xpose.msra.mxu0 0.0
        %1493 = vmatprep.subr.mxu0 0.0
        %1494 = vmatpush2.xpose.msra.mxu0 0.0
        %1495 = vmatprep.subr.mxu0 0.0
        %1496 = vmatpush2.xpose.msra.mxu0 0.0
        %1497 = vmatprep.subr.mxu0 0.0
        %1498 = vmatpush2.xpose.msra.mxu0 0.0
        %1499 = vmatprep.subr.mxu0 0.0
        %1500 = vmatpush2.xpose.msra.mxu0 0.0
        %1501 = vmatprep.subr.mxu0 0.0
        %1502 = vmatpush2.xpose.msra.mxu0 0.0
        %1503 = vmatprep.mubr.f32.mxu0 0.0
        %1504 = vmatmul.mubr.f32.gmra.mxu0 %v1423
        %v1505 = vpop.f32.mrf.mxu0
        %v1506 = vadd.f32 0.0, %v1505
        %v1507 = vpop.f32.mrf.mxu0
        %1508 = vmatprep.mubr.f32.mxu0 0.0
        %1509 = vmatmul.mubr.f32.gmra.mxu0 %v1425
        %v1510 = vpop.f32.mrf.mxu0
        %v1511 = vadd.f32 0.0, %v1510
        %v1512 = vpop.f32.mrf.mxu0
        %1513 = vmatprep.mubr.f32.mxu0 0.0
        %1514 = vmatmul.mubr.f32.gmra.mxu0 %v1427
        %v1515 = vpop.f32.mrf.mxu0
        %v1516 = vadd.f32 0.0, %v1515
        %v1517 = vpop.f32.mrf.mxu0
        %1518 = vmatprep.mubr.f32.mxu0 0.0
        %1519 = vmatmul.mubr.f32.gmra.mxu0 %v1429
        %v1520 = vpop.f32.mrf.mxu0
        %v1521 = vadd.f32 0.0, %v1520
        %v1522 = vpop.f32.mrf.mxu0
        %1523 = vdwg.mxu0
        %v1524 = vsel %vm537, %v1506, -1e+30
        %v1525 = vsel %vm538, %v1511, -1e+30
        %v1526 = vsel %vm539, %v1516, -1e+30
        %v1527 = vsel %vm540, %v1521, -1e+30
        %v1528 = vsel %vm561, %v1524, -inf
        %1529 = vmax.xlane.f32.xlu0 %v1528
        %v1530 = vpop.xlane.xlu0 %1529
        %v1531 = vsel %vm561, %v1525, -inf
        %1532 = vmax.xlane.f32.xlu0 %v1531
        %v1533 = vpop.xlane.xlu0 %1532
        %v1534 = vsel %vm561, %v1526, -inf
        %1535 = vmax.xlane.f32.xlu0 %v1534
        %v1536 = vpop.xlane.xlu0 %1535
        %v1537 = vsel %vm561, %v1527, -inf
        %1538 = vmax.xlane.f32.xlu0 %v1537
        %v1539 = vpop.xlane.xlu0 %1538
        %v1540 = vsub.f32 %v1524, %v1530
        %v1541 = vsub.f32 %v1525, %v1533
        %v1542 = vsub.f32 %v1526, %v1536
        %v1543 = vsub.f32 %v1527, %v1539
        %v1544 = vmul.f32 %v1540, 1.442695
        %v1545 = vpow.pop %v1544
        %v1546 = vmul.f32 %v1541, 1.442695
        %v1547 = vpow.pop %v1546
        %v1548 = vmul.f32 %v1542, 1.442695
        %v1549 = vpow.pop %v1548
        %v1550 = vmul.f32 %v1543, 1.442695
        %v1551 = vpow.pop %v1550
        %v1552 = vsel %vm561, %v1545, 0.0
        %1553 = vadd.xlane.f32.xlu0 %v1552
        %v1554 = vpop.xlane.xlu0 %1553
        %v1555 = vsel %vm561, %v1547, 0.0
        %1556 = vadd.xlane.f32.xlu0 %v1555
        %v1557 = vpop.xlane.xlu0 %1556
        %v1558 = vsel %vm561, %v1549, 0.0
        %1559 = vadd.xlane.f32.xlu0 %v1558
        %v1560 = vpop.xlane.xlu0 %1559
        %v1561 = vsel %vm561, %v1551, 0.0
        %1562 = vadd.xlane.f32.xlu0 %v1561
        %v1563 = vpop.xlane.xlu0 %1562
        %v1564 = vrcp.pop %v1554
        %v1565 = vrcp.pop %v1557
        %v1566 = vrcp.pop %v1560
        %v1567 = vrcp.pop %v1563
        %v1568 = vmul.f32 %v1545, %v1564
        %v1569 = vmul.f32 %v1547, %v1565
        %v1570 = vmul.f32 %v1549, %v1566
        %v1571 = vmul.f32 %v1551, %v1567
        %1572 = vrot.lane.b32.xlu0 %v650, 48
        %v1573 = vpop.permute.xlu0 %1572
        %1574 = vrot.lane.b32.xlu0 %v655, 48
        %v1575 = vpop.permute.xlu0 %1574
        %1576 = vrot.lane.b32.xlu0 %v660, 48
        %v1577 = vpop.permute.xlu0 %1576
        %1578 = vrot.lane.b32.xlu0 %v665, 48
        %v1579 = vpop.permute.xlu0 %1578
        %v1585 = vsel %vm561, %v1568, 0
        %v1588 = vsel %vm561, %v1569, 0
        %v1591 = vsel %vm561, %v1570, 0
        %v1594 = vsel %vm561, %v1571, 0
        %1596 = vmatprep.subr.mxu0 0.0
        %1597 = vmatpush1.msra.mxu0 0.0
        %1598 = vmatprep.subr.mxu0 0.0
        %1599 = vmatpush1.msra.mxu0 0.0
        %1600 = vmatprep.subr.mxu0 0.0
        %1601 = vmatpush1.msra.mxu0 0.0
        %1602 = vmatprep.subr.mxu0 0.0
        %1603 = vmatpush1.msra.mxu0 0.0
        %1604 = vmatprep.subr.mxu0 0.0
        %1605 = vmatpush1.msra.mxu0 0.0
        %1606 = vmatprep.subr.mxu0 0.0
        %1607 = vmatpush1.msra.mxu0 0.0
        %1608 = vmatprep.subr.mxu0 0.0
        %1609 = vmatpush1.msra.mxu0 0.0
        %1610 = vmatprep.subr.mxu0 0.0
        %1611 = vmatpush1.msra.mxu0 0.0
        %1612 = vmatprep.subr.mxu0 0.0
        %1613 = vmatpush1.msra.mxu0 0.0
        %1614 = vmatprep.subr.mxu0 0.0
        %1615 = vmatpush1.msra.mxu0 0.0
        %1616 = vmatprep.subr.mxu0 0.0
        %1617 = vmatpush1.msra.mxu0 0.0
        %1618 = vmatprep.subr.mxu0 0.0
        %1619 = vmatpush1.msra.mxu0 0.0
        %1620 = vmatprep.subr.mxu0 0.0
        %1621 = vmatpush1.msra.mxu0 %v1579
        %1622 = vmatprep.subr.mxu0 0.0
        %1623 = vmatpush1.msra.mxu0 %v1577
        %1624 = vmatprep.subr.mxu0 0.0
        %1625 = vmatpush1.msra.mxu0 %v1575
        %1626 = vmatprep.subr.mxu0 0.0
        %1627 = vmatpush1.msra.mxu0 %v1573
        %1628 = vmatprep.subr.mxu0 0.0
        %1629 = vmatpush2.msra.mxu0 0.0
        %1630 = vmatprep.subr.mxu0 0.0
        %1631 = vmatpush2.msra.mxu0 0.0
        %1632 = vmatprep.subr.mxu0 0.0
        %1633 = vmatpush2.msra.mxu0 0.0
        %1634 = vmatprep.subr.mxu0 0.0
        %1635 = vmatpush2.msra.mxu0 0.0
        %1636 = vmatprep.subr.mxu0 0.0
        %1637 = vmatpush2.msra.mxu0 0.0
        %1638 = vmatprep.subr.mxu0 0.0
        %1639 = vmatpush2.msra.mxu0 0.0
        %1640 = vmatprep.subr.mxu0 0.0
        %1641 = vmatpush2.msra.mxu0 0.0
        %1642 = vmatprep.subr.mxu0 0.0
        %1643 = vmatpush2.msra.mxu0 0.0
        %1644 = vmatprep.subr.mxu0 0.0
        %1645 = vmatpush2.msra.mxu0 0.0
        %1646 = vmatprep.subr.mxu0 0.0
        %1647 = vmatpush2.msra.mxu0 0.0
        %1648 = vmatprep.subr.mxu0 0.0
        %1649 = vmatpush2.msra.mxu0 0.0
        %1650 = vmatprep.subr.mxu0 0.0
        %1651 = vmatpush2.msra.mxu0 0.0
        %1652 = vmatprep.subr.mxu0 0.0
        %1653 = vmatpush2.msra.mxu0 0.0
        %1654 = vmatprep.subr.mxu0 0.0
        %1655 = vmatpush2.msra.mxu0 0.0
        %1656 = vmatprep.subr.mxu0 0.0
        %1657 = vmatpush2.msra.mxu0 0.0
        %1658 = vmatprep.subr.mxu0 0.0
        %1659 = vmatpush2.msra.mxu0 0.0
        %1660 = vmatprep.mubr.f32.mxu0 0.0
        %1661 = vmatmul.mubr.f32.gmra.mxu0 %v1585
        %v1662 = vpop.f32.mrf.mxu0
        %v1663 = vadd.f32 0.0, %v1662
        %v1664 = vpop.f32.mrf.mxu0
        %1665 = vmatprep.mubr.f32.mxu0 0.0
        %1666 = vmatmul.mubr.f32.gmra.mxu0 %v1588
        %v1667 = vpop.f32.mrf.mxu0
        %v1668 = vadd.f32 0.0, %v1667
        %v1669 = vpop.f32.mrf.mxu0
        %1670 = vmatprep.mubr.f32.mxu0 0.0
        %1671 = vmatmul.mubr.f32.gmra.mxu0 %v1591
        %v1672 = vpop.f32.mrf.mxu0
        %v1673 = vadd.f32 0.0, %v1672
        %v1674 = vpop.f32.mrf.mxu0
        %1675 = vmatprep.mubr.f32.mxu0 0.0
        %1676 = vmatmul.mubr.f32.gmra.mxu0 %v1594
        %v1677 = vpop.f32.mrf.mxu0
        %v1678 = vadd.f32 0.0, %v1677
        %v1679 = vpop.f32.mrf.mxu0
        %1680 = vdwg.mxu0
        %v1682 = vsel %vm680, %v1663, 0
        %v1685 = vsel %vm680, %v1668, 0
        %v1688 = vsel %vm680, %v1673, 0
        %v1691 = vsel %vm680, %v1678, 0
        %1693 = vmatprep.subr.mxu0 0.0
        %1694 = vmatpush1.msra.mxu0 0.0
        %1695 = vmatprep.subr.mxu0 0.0
        %1696 = vmatpush1.msra.mxu0 0.0
        %1697 = vmatprep.subr.mxu0 0.0
        %1698 = vmatpush1.msra.mxu0 0.0
        %1699 = vmatprep.subr.mxu0 0.0
        %1700 = vmatpush1.msra.mxu0 0.0
        %1701 = vmatprep.subr.mxu0 0.0
        %1702 = vmatpush1.msra.mxu0 0.0
        %1703 = vmatprep.subr.mxu0 0.0
        %1704 = vmatpush1.msra.mxu0 0.0
        %1705 = vmatprep.subr.mxu0 0.0
        %1706 = vmatpush1.msra.mxu0 0.0
        %1707 = vmatprep.subr.mxu0 0.0
        %1708 = vmatpush1.msra.mxu0 0.0
        %1709 = vmatprep.subr.mxu0 0.0
        %1710 = vmatpush1.msra.mxu0 0.0
        %1711 = vmatprep.subr.mxu0 0.0
        %1712 = vmatpush1.msra.mxu0 0.0
        %1713 = vmatprep.subr.mxu0 0.0
        %1714 = vmatpush1.msra.mxu0 0.0
        %1715 = vmatprep.subr.mxu0 0.0
        %1716 = vmatpush1.msra.mxu0 0.0
        %1717 = vmatprep.subr.mxu0 0.0
        %1718 = vmatpush1.msra.mxu0 0.0
        %1719 = vmatprep.subr.mxu0 0.0
        %1720 = vmatpush1.msra.mxu0 0.0
        %1721 = vmatprep.subr.mxu0 0.0
        %1722 = vmatpush1.msra.mxu0 0.0
        %1723 = vmatprep.subr.mxu0 0.0
        %1724 = vmatpush1.msra.mxu0 %v442
        %1725 = vmatprep.subr.mxu0 0.0
        %1726 = vmatpush2.msra.mxu0 0.0
        %1727 = vmatprep.subr.mxu0 0.0
        %1728 = vmatpush2.msra.mxu0 0.0
        %1729 = vmatprep.subr.mxu0 0.0
        %1730 = vmatpush2.msra.mxu0 0.0
        %1731 = vmatprep.subr.mxu0 0.0
        %1732 = vmatpush2.msra.mxu0 0.0
        %1733 = vmatprep.subr.mxu0 0.0
        %1734 = vmatpush2.msra.mxu0 0.0
        %1735 = vmatprep.subr.mxu0 0.0
        %1736 = vmatpush2.msra.mxu0 0.0
        %1737 = vmatprep.subr.mxu0 0.0
        %1738 = vmatpush2.msra.mxu0 0.0
        %1739 = vmatprep.subr.mxu0 0.0
        %1740 = vmatpush2.msra.mxu0 0.0
        %1741 = vmatprep.subr.mxu0 0.0
        %1742 = vmatpush2.msra.mxu0 0.0
        %1743 = vmatprep.subr.mxu0 0.0
        %1744 = vmatpush2.msra.mxu0 0.0
        %1745 = vmatprep.subr.mxu0 0.0
        %1746 = vmatpush2.msra.mxu0 0.0
        %1747 = vmatprep.subr.mxu0 0.0
        %1748 = vmatpush2.msra.mxu0 0.0
        %1749 = vmatprep.subr.mxu0 0.0
        %1750 = vmatpush2.msra.mxu0 0.0
        %1751 = vmatprep.subr.mxu0 0.0
        %1752 = vmatpush2.msra.mxu0 0.0
        %1753 = vmatprep.subr.mxu0 0.0
        %1754 = vmatpush2.msra.mxu0 0.0
        %1755 = vmatprep.subr.mxu0 0.0
        %1756 = vmatpush2.msra.mxu0 0.0
        %1757 = vmatprep.mubr.f32.mxu0 0.0
        %1758 = vmatmul.mubr.f32.gmra.mxu0 %v1682
        %v1759 = vpop.f32.mrf.mxu0
        %v1760 = vadd.f32 0.0, %v1759
        %v1761 = vpop.f32.mrf.mxu0
        %1762 = vmatprep.mubr.f32.mxu0 0.0
        %1763 = vmatmul.mubr.f32.gmra.mxu0 %v1685
        %v1764 = vpop.f32.mrf.mxu0
        %v1765 = vadd.f32 0.0, %v1764
        %v1766 = vpop.f32.mrf.mxu0
        %1767 = vmatprep.mubr.f32.mxu0 0.0
        %1768 = vmatmul.mubr.f32.gmra.mxu0 %v1688
        %v1769 = vpop.f32.mrf.mxu0
        %v1770 = vadd.f32 0.0, %v1769
        %v1771 = vpop.f32.mrf.mxu0
        %1772 = vmatprep.mubr.f32.mxu0 0.0
        %1773 = vmatmul.mubr.f32.gmra.mxu0 %v1691
        %v1774 = vpop.f32.mrf.mxu0
        %v1775 = vadd.f32 0.0, %v1774
        %v1776 = vpop.f32.mrf.mxu0
        %1777 = vdwg.mxu0
        %v1778 = vadd.f32 %v1389, %v1760
        %v1779 = vadd.f32 %v1394, %v1765
        %v1780 = vadd.f32 %v1399, %v1770
        %v1781 = vadd.f32 %v1404, %v1775
        %1782 = vrot.lane.b32.xlu0 %v650, 104
        %v1783 = vpop.permute.xlu0 %1782
        %1784 = vrot.lane.b32.xlu0 %v655, 104
        %v1785 = vpop.permute.xlu0 %1784
        %1786 = vrot.lane.b32.xlu0 %v660, 104
        %v1787 = vpop.permute.xlu0 %1786
        %1788 = vrot.lane.b32.xlu0 %v665, 104
        %v1789 = vpop.permute.xlu0 %1788
        %1790 = vrot.lane.b32.xlu0 %v650, 72
        %v1791 = vpop.permute.xlu0 %1790
        %1792 = vrot.lane.b32.xlu0 %v655, 72
        %v1793 = vpop.permute.xlu0 %1792
        %1794 = vrot.lane.b32.xlu0 %v660, 72
        %v1795 = vpop.permute.xlu0 %1794
        %1796 = vrot.lane.b32.xlu0 %v665, 72
        %v1797 = vpop.permute.xlu0 %1796
        %v1798 = vsel %vm680, %v1783, 0
        %v1800 = vsel %vm680, %v1785, 0
        %v1802 = vsel %vm680, %v1787, 0
        %v1804 = vsel %vm680, %v1789, 0
        %v1806 = vsel %vm680, %v1791, 0
        %v1808 = vsel %vm680, %v1793, 0
        %v1810 = vsel %vm680, %v1795, 0
        %v1812 = vsel %vm680, %v1797, 0
        %1814 = vmatprep.subr.mxu0 0.0
        %1815 = vmatpush1.xpose.msra.mxu0 0.0
        %1816 = vmatprep.subr.mxu0 0.0
        %1817 = vmatpush1.xpose.msra.mxu0 0.0
        %1818 = vmatprep.subr.mxu0 0.0
        %1819 = vmatpush1.xpose.msra.mxu0 0.0
        %1820 = vmatprep.subr.mxu0 0.0
        %1821 = vmatpush1.xpose.msra.mxu0 0.0
        %1822 = vmatprep.subr.mxu0 0.0
        %1823 = vmatpush1.xpose.msra.mxu0 0.0
        %1824 = vmatprep.subr.mxu0 0.0
        %1825 = vmatpush1.xpose.msra.mxu0 0.0
        %1826 = vmatprep.subr.mxu0 0.0
        %1827 = vmatpush1.xpose.msra.mxu0 0.0
        %1828 = vmatprep.subr.mxu0 0.0
        %1829 = vmatpush1.xpose.msra.mxu0 0.0
        %1830 = vmatprep.subr.mxu0 0.0
        %1831 = vmatpush1.xpose.msra.mxu0 0.0
        %1832 = vmatprep.subr.mxu0 0.0
        %1833 = vmatpush1.xpose.msra.mxu0 0.0
        %1834 = vmatprep.subr.mxu0 0.0
        %1835 = vmatpush1.xpose.msra.mxu0 0.0
        %1836 = vmatprep.subr.mxu0 0.0
        %1837 = vmatpush1.xpose.msra.mxu0 0.0
        %1838 = vmatprep.subr.mxu0 0.0
        %1839 = vmatpush1.xpose.msra.mxu0 %v1812
        %1840 = vmatprep.subr.mxu0 0.0
        %1841 = vmatpush1.xpose.msra.mxu0 %v1810
        %1842 = vmatprep.subr.mxu0 0.0
        %1843 = vmatpush1.xpose.msra.mxu0 %v1808
        %1844 = vmatprep.subr.mxu0 0.0
        %1845 = vmatpush1.xpose.msra.mxu0 %v1806
        %1846 = vmatprep.subr.mxu0 0.0
        %1847 = vmatpush2.xpose.msra.mxu0 0.0
        %1848 = vmatprep.subr.mxu0 0.0
        %1849 = vmatpush2.xpose.msra.mxu0 0.0
        %1850 = vmatprep.subr.mxu0 0.0
        %1851 = vmatpush2.xpose.msra.mxu0 0.0
        %1852 = vmatprep.subr.mxu0 0.0
        %1853 = vmatpush2.xpose.msra.mxu0 0.0
        %1854 = vmatprep.subr.mxu0 0.0
        %1855 = vmatpush2.xpose.msra.mxu0 0.0
        %1856 = vmatprep.subr.mxu0 0.0
        %1857 = vmatpush2.xpose.msra.mxu0 0.0
        %1858 = vmatprep.subr.mxu0 0.0
        %1859 = vmatpush2.xpose.msra.mxu0 0.0
        %1860 = vmatprep.subr.mxu0 0.0
        %1861 = vmatpush2.xpose.msra.mxu0 0.0
        %1862 = vmatprep.subr.mxu0 0.0
        %1863 = vmatpush2.xpose.msra.mxu0 0.0
        %1864 = vmatprep.subr.mxu0 0.0
        %1865 = vmatpush2.xpose.msra.mxu0 0.0
        %1866 = vmatprep.subr.mxu0 0.0
        %1867 = vmatpush2.xpose.msra.mxu0 0.0
        %1868 = vmatprep.subr.mxu0 0.0
        %1869 = vmatpush2.xpose.msra.mxu0 0.0
        %1870 = vmatprep.subr.mxu0 0.0
        %1871 = vmatpush2.xpose.msra.mxu0 0.0
        %1872 = vmatprep.subr.mxu0 0.0
        %1873 = vmatpush2.xpose.msra.mxu0 0.0
        %1874 = vmatprep.subr.mxu0 0.0
        %1875 = vmatpush2.xpose.msra.mxu0 0.0
        %1876 = vmatprep.subr.mxu0 0.0
        %1877 = vmatpush2.xpose.msra.mxu0 0.0
        %1878 = vmatprep.mubr.f32.mxu0 0.0
        %1879 = vmatmul.mubr.f32.gmra.mxu0 %v1798
        %v1880 = vpop.f32.mrf.mxu0
        %v1881 = vadd.f32 0.0, %v1880
        %v1882 = vpop.f32.mrf.mxu0
        %1883 = vmatprep.mubr.f32.mxu0 0.0
        %1884 = vmatmul.mubr.f32.gmra.mxu0 %v1800
        %v1885 = vpop.f32.mrf.mxu0
        %v1886 = vadd.f32 0.0, %v1885
        %v1887 = vpop.f32.mrf.mxu0
        %1888 = vmatprep.mubr.f32.mxu0 0.0
        %1889 = vmatmul.mubr.f32.gmra.mxu0 %v1802
        %v1890 = vpop.f32.mrf.mxu0
        %v1891 = vadd.f32 0.0, %v1890
        %v1892 = vpop.f32.mrf.mxu0
        %1893 = vmatprep.mubr.f32.mxu0 0.0
        %1894 = vmatmul.mubr.f32.gmra.mxu0 %v1804
        %v1895 = vpop.f32.mrf.mxu0
        %v1896 = vadd.f32 0.0, %v1895
        %v1897 = vpop.f32.mrf.mxu0
        %1898 = vdwg.mxu0
        %v1899 = vsel %vm537, %v1881, -1e+30
        %v1900 = vsel %vm538, %v1886, -1e+30
        %v1901 = vsel %vm539, %v1891, -1e+30
        %v1902 = vsel %vm540, %v1896, -1e+30
        %v1903 = vsel %vm561, %v1899, -inf
        %1904 = vmax.xlane.f32.xlu0 %v1903
        %v1905 = vpop.xlane.xlu0 %1904
        %v1906 = vsel %vm561, %v1900, -inf
        %1907 = vmax.xlane.f32.xlu0 %v1906
        %v1908 = vpop.xlane.xlu0 %1907
        %v1909 = vsel %vm561, %v1901, -inf
        %1910 = vmax.xlane.f32.xlu0 %v1909
        %v1911 = vpop.xlane.xlu0 %1910
        %v1912 = vsel %vm561, %v1902, -inf
        %1913 = vmax.xlane.f32.xlu0 %v1912
        %v1914 = vpop.xlane.xlu0 %1913
        %v1915 = vsub.f32 %v1899, %v1905
        %v1916 = vsub.f32 %v1900, %v1908
        %v1917 = vsub.f32 %v1901, %v1911
        %v1918 = vsub.f32 %v1902, %v1914
        %v1919 = vmul.f32 %v1915, 1.442695
        %v1920 = vpow.pop %v1919
        %v1921 = vmul.f32 %v1916, 1.442695
        %v1922 = vpow.pop %v1921
        %v1923 = vmul.f32 %v1917, 1.442695
        %v1924 = vpow.pop %v1923
        %v1925 = vmul.f32 %v1918, 1.442695
        %v1926 = vpow.pop %v1925
        %v1927 = vsel %vm561, %v1920, 0.0
        %1928 = vadd.xlane.f32.xlu0 %v1927
        %v1929 = vpop.xlane.xlu0 %1928
        %v1930 = vsel %vm561, %v1922, 0.0
        %1931 = vadd.xlane.f32.xlu0 %v1930
        %v1932 = vpop.xlane.xlu0 %1931
        %v1933 = vsel %vm561, %v1924, 0.0
        %1934 = vadd.xlane.f32.xlu0 %v1933
        %v1935 = vpop.xlane.xlu0 %1934
        %v1936 = vsel %vm561, %v1926, 0.0
        %1937 = vadd.xlane.f32.xlu0 %v1936
        %v1938 = vpop.xlane.xlu0 %1937
        %v1939 = vrcp.pop %v1929
        %v1940 = vrcp.pop %v1932
        %v1941 = vrcp.pop %v1935
        %v1942 = vrcp.pop %v1938
        %v1943 = vmul.f32 %v1920, %v1939
        %v1944 = vmul.f32 %v1922, %v1940
        %v1945 = vmul.f32 %v1924, %v1941
        %v1946 = vmul.f32 %v1926, %v1942
        %1947 = vrot.lane.b32.xlu0 %v650, 40
        %v1948 = vpop.permute.xlu0 %1947
        %1949 = vrot.lane.b32.xlu0 %v655, 40
        %v1950 = vpop.permute.xlu0 %1949
        %1951 = vrot.lane.b32.xlu0 %v660, 40
        %v1952 = vpop.permute.xlu0 %1951
        %1953 = vrot.lane.b32.xlu0 %v665, 40
        %v1954 = vpop.permute.xlu0 %1953
        %v1960 = vsel %vm561, %v1943, 0
        %v1963 = vsel %vm561, %v1944, 0
        %v1966 = vsel %vm561, %v1945, 0
        %v1969 = vsel %vm561, %v1946, 0
        %1971 = vmatprep.subr.mxu0 0.0
        %1972 = vmatpush1.msra.mxu0 0.0
        %1973 = vmatprep.subr.mxu0 0.0
        %1974 = vmatpush1.msra.mxu0 0.0
        %1975 = vmatprep.subr.mxu0 0.0
        %1976 = vmatpush1.msra.mxu0 0.0
        %1977 = vmatprep.subr.mxu0 0.0
        %1978 = vmatpush1.msra.mxu0 0.0
        %1979 = vmatprep.subr.mxu0 0.0
        %1980 = vmatpush1.msra.mxu0 0.0
        %1981 = vmatprep.subr.mxu0 0.0
        %1982 = vmatpush1.msra.mxu0 0.0
        %1983 = vmatprep.subr.mxu0 0.0
        %1984 = vmatpush1.msra.mxu0 0.0
        %1985 = vmatprep.subr.mxu0 0.0
        %1986 = vmatpush1.msra.mxu0 0.0
        %1987 = vmatprep.subr.mxu0 0.0
        %1988 = vmatpush1.msra.mxu0 0.0
        %1989 = vmatprep.subr.mxu0 0.0
        %1990 = vmatpush1.msra.mxu0 0.0
        %1991 = vmatprep.subr.mxu0 0.0
        %1992 = vmatpush1.msra.mxu0 0.0
        %1993 = vmatprep.subr.mxu0 0.0
        %1994 = vmatpush1.msra.mxu0 0.0
        %1995 = vmatprep.subr.mxu0 0.0
        %1996 = vmatpush1.msra.mxu0 %v1954
        %1997 = vmatprep.subr.mxu0 0.0
        %1998 = vmatpush1.msra.mxu0 %v1952
        %1999 = vmatprep.subr.mxu0 0.0
        %2000 = vmatpush1.msra.mxu0 %v1950
        %2001 = vmatprep.subr.mxu0 0.0
        %2002 = vmatpush1.msra.mxu0 %v1948
        %2003 = vmatprep.subr.mxu0 0.0
        %2004 = vmatpush2.msra.mxu0 0.0
        %2005 = vmatprep.subr.mxu0 0.0
        %2006 = vmatpush2.msra.mxu0 0.0
        %2007 = vmatprep.subr.mxu0 0.0
        %2008 = vmatpush2.msra.mxu0 0.0
        %2009 = vmatprep.subr.mxu0 0.0
        %2010 = vmatpush2.msra.mxu0 0.0
        %2011 = vmatprep.subr.mxu0 0.0
        %2012 = vmatpush2.msra.mxu0 0.0
        %2013 = vmatprep.subr.mxu0 0.0
        %2014 = vmatpush2.msra.mxu0 0.0
        %2015 = vmatprep.subr.mxu0 0.0
        %2016 = vmatpush2.msra.mxu0 0.0
        %2017 = vmatprep.subr.mxu0 0.0
        %2018 = vmatpush2.msra.mxu0 0.0
        %2019 = vmatprep.subr.mxu0 0.0
        %2020 = vmatpush2.msra.mxu0 0.0
        %2021 = vmatprep.subr.mxu0 0.0
        %2022 = vmatpush2.msra.mxu0 0.0
        %2023 = vmatprep.subr.mxu0 0.0
        %2024 = vmatpush2.msra.mxu0 0.0
        %2025 = vmatprep.subr.mxu0 0.0
        %2026 = vmatpush2.msra.mxu0 0.0
        %2027 = vmatprep.subr.mxu0 0.0
        %2028 = vmatpush2.msra.mxu0 0.0
        %2029 = vmatprep.subr.mxu0 0.0
        %2030 = vmatpush2.msra.mxu0 0.0
        %2031 = vmatprep.subr.mxu0 0.0
        %2032 = vmatpush2.msra.mxu0 0.0
        %2033 = vmatprep.subr.mxu0 0.0
        %2034 = vmatpush2.msra.mxu0 0.0
        %2035 = vmatprep.mubr.f32.mxu0 0.0
        %2036 = vmatmul.mubr.f32.gmra.mxu0 %v1960
        %v2037 = vpop.f32.mrf.mxu0
        %v2038 = vadd.f32 0.0, %v2037
        %v2039 = vpop.f32.mrf.mxu0
        %2040 = vmatprep.mubr.f32.mxu0 0.0
        %2041 = vmatmul.mubr.f32.gmra.mxu0 %v1963
        %v2042 = vpop.f32.mrf.mxu0
        %v2043 = vadd.f32 0.0, %v2042
        %v2044 = vpop.f32.mrf.mxu0
        %2045 = vmatprep.mubr.f32.mxu0 0.0
        %2046 = vmatmul.mubr.f32.gmra.mxu0 %v1966
        %v2047 = vpop.f32.mrf.mxu0
        %v2048 = vadd.f32 0.0, %v2047
        %v2049 = vpop.f32.mrf.mxu0
        %2050 = vmatprep.mubr.f32.mxu0 0.0
        %2051 = vmatmul.mubr.f32.gmra.mxu0 %v1969
        %v2052 = vpop.f32.mrf.mxu0
        %v2053 = vadd.f32 0.0, %v2052
        %v2054 = vpop.f32.mrf.mxu0
        %2055 = vdwg.mxu0
        %v2057 = vsel %vm680, %v2038, 0
        %v2060 = vsel %vm680, %v2043, 0
        %v2063 = vsel %vm680, %v2048, 0
        %v2066 = vsel %vm680, %v2053, 0
        %2068 = vmatprep.subr.mxu0 0.0
        %2069 = vmatpush1.msra.mxu0 0.0
        %2070 = vmatprep.subr.mxu0 0.0
        %2071 = vmatpush1.msra.mxu0 0.0
        %2072 = vmatprep.subr.mxu0 0.0
        %2073 = vmatpush1.msra.mxu0 0.0
        %2074 = vmatprep.subr.mxu0 0.0
        %2075 = vmatpush1.msra.mxu0 0.0
        %2076 = vmatprep.subr.mxu0 0.0
        %2077 = vmatpush1.msra.mxu0 0.0
        %2078 = vmatprep.subr.mxu0 0.0
        %2079 = vmatpush1.msra.mxu0 0.0
        %2080 = vmatprep.subr.mxu0 0.0
        %2081 = vmatpush1.msra.mxu0 0.0
        %2082 = vmatprep.subr.mxu0 0.0
        %2083 = vmatpush1.msra.mxu0 0.0
        %2084 = vmatprep.subr.mxu0 0.0
        %2085 = vmatpush1.msra.mxu0 0.0
        %2086 = vmatprep.subr.mxu0 0.0
        %2087 = vmatpush1.msra.mxu0 0.0
        %2088 = vmatprep.subr.mxu0 0.0
        %2089 = vmatpush1.msra.mxu0 0.0
        %2090 = vmatprep.subr.mxu0 0.0
        %2091 = vmatpush1.msra.mxu0 0.0
        %2092 = vmatprep.subr.mxu0 0.0
        %2093 = vmatpush1.msra.mxu0 0.0
        %2094 = vmatprep.subr.mxu0 0.0
        %2095 = vmatpush1.msra.mxu0 0.0
        %2096 = vmatprep.subr.mxu0 0.0
        %2097 = vmatpush1.msra.mxu0 0.0
        %2098 = vmatprep.subr.mxu0 0.0
        %2099 = vmatpush1.msra.mxu0 %v443
        %2100 = vmatprep.subr.mxu0 0.0
        %2101 = vmatpush2.msra.mxu0 0.0
        %2102 = vmatprep.subr.mxu0 0.0
        %2103 = vmatpush2.msra.mxu0 0.0
        %2104 = vmatprep.subr.mxu0 0.0
        %2105 = vmatpush2.msra.mxu0 0.0
        %2106 = vmatprep.subr.mxu0 0.0
        %2107 = vmatpush2.msra.mxu0 0.0
        %2108 = vmatprep.subr.mxu0 0.0
        %2109 = vmatpush2.msra.mxu0 0.0
        %2110 = vmatprep.subr.mxu0 0.0
        %2111 = vmatpush2.msra.mxu0 0.0
        %2112 = vmatprep.subr.mxu0 0.0
        %2113 = vmatpush2.msra.mxu0 0.0
        %2114 = vmatprep.subr.mxu0 0.0
        %2115 = vmatpush2.msra.mxu0 0.0
        %2116 = vmatprep.subr.mxu0 0.0
        %2117 = vmatpush2.msra.mxu0 0.0
        %2118 = vmatprep.subr.mxu0 0.0
        %2119 = vmatpush2.msra.mxu0 0.0
        %2120 = vmatprep.subr.mxu0 0.0
        %2121 = vmatpush2.msra.mxu0 0.0
        %2122 = vmatprep.subr.mxu0 0.0
        %2123 = vmatpush2.msra.mxu0 0.0
        %2124 = vmatprep.subr.mxu0 0.0
        %2125 = vmatpush2.msra.mxu0 0.0
        %2126 = vmatprep.subr.mxu0 0.0
        %2127 = vmatpush2.msra.mxu0 0.0
        %2128 = vmatprep.subr.mxu0 0.0
        %2129 = vmatpush2.msra.mxu0 0.0
        %2130 = vmatprep.subr.mxu0 0.0
        %2131 = vmatpush2.msra.mxu0 0.0
        %2132 = vmatprep.mubr.f32.mxu0 0.0
        %2133 = vmatmul.mubr.f32.gmra.mxu0 %v2057
        %v2134 = vpop.f32.mrf.mxu0
        %v2135 = vadd.f32 0.0, %v2134
        %v2136 = vpop.f32.mrf.mxu0
        %2137 = vmatprep.mubr.f32.mxu0 0.0
        %2138 = vmatmul.mubr.f32.gmra.mxu0 %v2060
        %v2139 = vpop.f32.mrf.mxu0
        %v2140 = vadd.f32 0.0, %v2139
        %v2141 = vpop.f32.mrf.mxu0
        %2142 = vmatprep.mubr.f32.mxu0 0.0
        %2143 = vmatmul.mubr.f32.gmra.mxu0 %v2063
        %v2144 = vpop.f32.mrf.mxu0
        %v2145 = vadd.f32 0.0, %v2144
        %v2146 = vpop.f32.mrf.mxu0
        %2147 = vmatprep.mubr.f32.mxu0 0.0
        %2148 = vmatmul.mubr.f32.gmra.mxu0 %v2066
        %v2149 = vpop.f32.mrf.mxu0
        %v2150 = vadd.f32 0.0, %v2149
        %v2151 = vpop.f32.mrf.mxu0
        %2152 = vdwg.mxu0
        %v2153 = vadd.f32 %v1778, %v2135
        %v2154 = vadd.f32 %v1779, %v2140
        %v2155 = vadd.f32 %v1780, %v2145
        %v2156 = vadd.f32 %v1781, %v2150
        %v2157 = vlaneseq
        %v2158 = vshrl.u32 %v2157, 7
        %v2159 = vsub.s32 2, %v2158
        %v2160 = vrot.slane %v452, %v2159
        %v2161 = vadd.f32 %v2153, %v2160
        %v2162 = vadd.f32 %v2154, %v2160
        %v2163 = vadd.f32 %v2155, %v2160
        %v2164 = vadd.f32 %v2156, %v2160
        %v2165 = vadd.f32 %v416, %v2161
        %v2166 = vadd.f32 %v417, %v2162
        %v2167 = vadd.f32 %v418, %v2163
        %v2168 = vadd.f32 %v419, %v2164
        %v2169 = vsel %vm561, %v2165, 0.0
        %2170 = vadd.xlane.f32.xlu0 %v2169
        %v2171 = vpop.xlane.xlu0 %2170
        %v2172 = vsel %vm561, %v2166, 0.0
        %2173 = vadd.xlane.f32.xlu0 %v2172
        %v2174 = vpop.xlane.xlu0 %2173
        %v2175 = vsel %vm561, %v2167, 0.0
        %2176 = vadd.xlane.f32.xlu0 %v2175
        %v2177 = vpop.xlane.xlu0 %2176
        %v2178 = vsel %vm561, %v2168, 0.0
        %2179 = vadd.xlane.f32.xlu0 %v2178
        %v2180 = vpop.xlane.xlu0 %2179
        %v2181 = vrcp.pop 32.0
        %v2182 = vmul.f32 %v2171, %v2181
        %v2183 = vmul.f32 %v2174, %v2181
        %v2184 = vmul.f32 %v2177, %v2181
        %v2185 = vmul.f32 %v2180, %v2181
        %v2186 = vmul.f32 %v2165, %v2165
        %v2187 = vmul.f32 %v2166, %v2166
        %v2188 = vmul.f32 %v2167, %v2167
        %v2189 = vmul.f32 %v2168, %v2168
        %v2190 = vsel %vm561, %v2186, 0.0
        %2191 = vadd.xlane.f32.xlu0 %v2190
        %v2192 = vpop.xlane.xlu0 %2191
        %v2193 = vsel %vm561, %v2187, 0.0
        %2194 = vadd.xlane.f32.xlu0 %v2193
        %v2195 = vpop.xlane.xlu0 %2194
        %v2196 = vsel %vm561, %v2188, 0.0
        %2197 = vadd.xlane.f32.xlu0 %v2196
        %v2198 = vpop.xlane.xlu0 %2197
        %v2199 = vsel %vm561, %v2189, 0.0
        %2200 = vadd.xlane.f32.xlu0 %v2199
        %v2201 = vpop.xlane.xlu0 %2200
        %v2202 = vmul.f32 %v2192, %v2181
        %v2203 = vmul.f32 %v2195, %v2181
        %v2204 = vmul.f32 %v2198, %v2181
        %v2205 = vmul.f32 %v2201, %v2181
        %v2206 = vmul.f32 %v2182, %v2182
        %v2207 = vmul.f32 %v2183, %v2183
        %v2208 = vmul.f32 %v2184, %v2184
        %v2209 = vmul.f32 %v2185, %v2185
        %v2210 = vsub.f32 %v2202, %v2206
        %v2211 = vsub.f32 %v2203, %v2207
        %v2212 = vsub.f32 %v2204, %v2208
        %v2213 = vsub.f32 %v2205, %v2209
        %v2214 = vadd.f32 %v2210, 1e-05
        %v2215 = vadd.f32 %v2211, 1e-05
        %v2216 = vadd.f32 %v2212, 1e-05
        %v2217 = vadd.f32 %v2213, 1e-05
        %v2218 = vrsqrt.pop %v2214
        %v2219 = vrsqrt.pop %v2215
        %v2220 = vrsqrt.pop %v2216
        %v2221 = vrsqrt.pop %v2217
        %v2222 = vsub.f32 %v2165, %v2182
        %v2223 = vsub.f32 %v2166, %v2183
        %v2224 = vsub.f32 %v2167, %v2184
        %v2225 = vsub.f32 %v2168, %v2185
        %v2226 = vmul.f32 %v2222, %v2218
        %v2227 = vmul.f32 %v2223, %v2219
        %v2228 = vmul.f32 %v2224, %v2220
        %v2229 = vmul.f32 %v2225, %v2221
        %v2230 = vlaneseq
        %v2231 = vshrl.u32 %v2230, 7
        %v2232 = vsub.s32 3, %v2231
        %v2233 = vrot.slane %v452, %v2232
        %2235 = vrot.lane.b32.xlu0 %v2233, 96
        %v2236 = vpop.permute.xlu0 %2235
        %v2238 = vmul.f32 %v2226, %v2236
        %v2239 = vmul.f32 %v2227, %v2236
        %v2240 = vmul.f32 %v2228, %v2236
        %v2241 = vmul.f32 %v2229, %v2236
        %2242 = vrot.lane.b32.xlu0 %v2233, 64
        %v2243 = vpop.permute.xlu0 %2242
        %v2245 = vadd.f32 %v2238, %v2243
        %v2246 = vadd.f32 %v2239, %v2243
        %v2247 = vadd.f32 %v2240, %v2243
        %v2248 = vadd.f32 %v2241, %v2243
        %v2249 = vsel %vm561, %v2245, %v550
        %v2250 = vsel %vm561, %v2246, %v552
        %v2251 = vsel %vm561, %v2247, %v554
        %v2252 = vsel %vm561, %v2248, %v556
        %v2253 = vlaneseq
        %v2254 = vshrl.u32 %v2253, 7
        %v2255 = vsub.s32 1, %v2254
        %v2256 = vrot.slane %v452, %v2255
        %2273 = vrot.lane.b32.xlu0 %v424, 32
        %v2274 = vpop.permute.xlu0 %2273
        %2275 = vrot.lane.b32.xlu0 %v425, 32
        %v2276 = vpop.permute.xlu0 %2275
        %2277 = vrot.lane.b32.xlu0 %v426, 32
        %v2278 = vpop.permute.xlu0 %2277
        %2279 = vrot.lane.b32.xlu0 %v427, 32
        %v2280 = vpop.permute.xlu0 %2279
        %2281 = vrot.lane.b32.xlu0 %v428, 32
        %v2282 = vpop.permute.xlu0 %2281
        %2283 = vrot.lane.b32.xlu0 %v429, 32
        %v2284 = vpop.permute.xlu0 %2283
        %2285 = vrot.lane.b32.xlu0 %v430, 32
        %v2286 = vpop.permute.xlu0 %2285
        %2287 = vrot.lane.b32.xlu0 %v431, 32
        %v2288 = vpop.permute.xlu0 %2287
        %2289 = vrot.lane.b32.xlu0 %v432, 32
        %v2290 = vpop.permute.xlu0 %2289
        %2291 = vrot.lane.b32.xlu0 %v433, 32
        %v2292 = vpop.permute.xlu0 %2291
        %2293 = vrot.lane.b32.xlu0 %v434, 32
        %v2294 = vpop.permute.xlu0 %2293
        %2295 = vrot.lane.b32.xlu0 %v435, 32
        %v2296 = vpop.permute.xlu0 %2295
        %2297 = vrot.lane.b32.xlu0 %v436, 32
        %v2298 = vpop.permute.xlu0 %2297
        %2299 = vrot.lane.b32.xlu0 %v437, 32
        %v2300 = vpop.permute.xlu0 %2299
        %2301 = vrot.lane.b32.xlu0 %v438, 32
        %v2302 = vpop.permute.xlu0 %2301
        %2303 = vrot.lane.b32.xlu0 %v439, 32
        %v2304 = vpop.permute.xlu0 %2303
        %v2305 = vsel %vm561, %v2274, %v2276
        %v2306 = vsel %vm561, %v2278, %v2280
        %v2307 = vsel %vm561, %v2282, %v2284
        %v2308 = vsel %vm561, %v2286, %v2288
        %v2309 = vsel %vm561, %v2290, %v2292
        %v2310 = vsel %vm561, %v2294, %v2296
        %v2311 = vsel %vm561, %v2298, %v2300
        %v2312 = vsel %vm561, %v2302, %v2304
        %v2322 = vsel %vm570, %v2249, 0
        %v2325 = vsel %vm570, %v2250, 0
        %v2328 = vsel %vm570, %v2251, 0
        %v2331 = vsel %vm570, %v2252, 0
        %2333 = vmatprep.subr.mxu0 0.0
        %2334 = vmatpush1.msra.mxu0 0.0
        %2335 = vmatprep.subr.mxu0 0.0
        %2336 = vmatpush1.msra.mxu0 0.0
        %2337 = vmatprep.subr.mxu0 0.0
        %2338 = vmatpush1.msra.mxu0 0.0
        %2339 = vmatprep.subr.mxu0 0.0
        %2340 = vmatpush1.msra.mxu0 0.0
        %2341 = vmatprep.subr.mxu0 0.0
        %2342 = vmatpush1.msra.mxu0 0.0
        %2343 = vmatprep.subr.mxu0 0.0
        %2344 = vmatpush1.msra.mxu0 0.0
        %2345 = vmatprep.subr.mxu0 0.0
        %2346 = vmatpush1.msra.mxu0 0.0
        %2347 = vmatprep.subr.mxu0 0.0
        %2348 = vmatpush1.msra.mxu0 0.0
        %2349 = vmatprep.subr.mxu0 0.0
        %2350 = vmatpush1.msra.mxu0 %v2312
        %2351 = vmatprep.subr.mxu0 0.0
        %2352 = vmatpush1.msra.mxu0 %v2311
        %2353 = vmatprep.subr.mxu0 0.0
        %2354 = vmatpush1.msra.mxu0 %v2310
        %2355 = vmatprep.subr.mxu0 0.0
        %2356 = vmatpush1.msra.mxu0 %v2309
        %2357 = vmatprep.subr.mxu0 0.0
        %2358 = vmatpush1.msra.mxu0 %v2308
        %2359 = vmatprep.subr.mxu0 0.0
        %2360 = vmatpush1.msra.mxu0 %v2307
        %2361 = vmatprep.subr.mxu0 0.0
        %2362 = vmatpush1.msra.mxu0 %v2306
        %2363 = vmatprep.subr.mxu0 0.0
        %2364 = vmatpush1.msra.mxu0 %v2305
        %2365 = vmatprep.subr.mxu0 0.0
        %2366 = vmatpush2.msra.mxu0 0.0
        %2367 = vmatprep.subr.mxu0 0.0
        %2368 = vmatpush2.msra.mxu0 0.0
        %2369 = vmatprep.subr.mxu0 0.0
        %2370 = vmatpush2.msra.mxu0 0.0
        %2371 = vmatprep.subr.mxu0 0.0
        %2372 = vmatpush2.msra.mxu0 0.0
        %2373 = vmatprep.subr.mxu0 0.0
        %2374 = vmatpush2.msra.mxu0 0.0
        %2375 = vmatprep.subr.mxu0 0.0
        %2376 = vmatpush2.msra.mxu0 0.0
        %2377 = vmatprep.subr.mxu0 0.0
        %2378 = vmatpush2.msra.mxu0 0.0
        %2379 = vmatprep.subr.mxu0 0.0
        %2380 = vmatpush2.msra.mxu0 0.0
        %2381 = vmatprep.subr.mxu0 0.0
        %2382 = vmatpush2.msra.mxu0 0.0
        %2383 = vmatprep.subr.mxu0 0.0
        %2384 = vmatpush2.msra.mxu0 0.0
        %2385 = vmatprep.subr.mxu0 0.0
        %2386 = vmatpush2.msra.mxu0 0.0
        %2387 = vmatprep.subr.mxu0 0.0
        %2388 = vmatpush2.msra.mxu0 0.0
        %2389 = vmatprep.subr.mxu0 0.0
        %2390 = vmatpush2.msra.mxu0 0.0
        %2391 = vmatprep.subr.mxu0 0.0
        %2392 = vmatpush2.msra.mxu0 0.0
        %2393 = vmatprep.subr.mxu0 0.0
        %2394 = vmatpush2.msra.mxu0 0.0
        %2395 = vmatprep.subr.mxu0 0.0
        %2396 = vmatpush2.msra.mxu0 0.0
        %2397 = vmatprep.mubr.f32.mxu0 0.0
        %2398 = vmatmul.mubr.f32.gmra.mxu0 %v2322
        %v2399 = vpop.f32.mrf.mxu0
        %v2400 = vadd.f32 %v2256, %v2399
        %v2401 = vpop.f32.mrf.mxu0
        %2402 = vmatprep.mubr.f32.mxu0 0.0
        %2403 = vmatmul.mubr.f32.gmra.mxu0 %v2325
        %v2404 = vpop.f32.mrf.mxu0
        %v2405 = vadd.f32 %v2256, %v2404
        %v2406 = vpop.f32.mrf.mxu0
        %2407 = vmatprep.mubr.f32.mxu0 0.0
        %2408 = vmatmul.mubr.f32.gmra.mxu0 %v2328
        %v2409 = vpop.f32.mrf.mxu0
        %v2410 = vadd.f32 %v2256, %v2409
        %v2411 = vpop.f32.mrf.mxu0
        %2412 = vmatprep.mubr.f32.mxu0 0.0
        %2413 = vmatmul.mubr.f32.gmra.mxu0 %v2331
        %v2414 = vpop.f32.mrf.mxu0
        %v2415 = vadd.f32 %v2256, %v2414
        %v2416 = vpop.f32.mrf.mxu0
        %2417 = vdwg.mxu0
        %2422 = vrot.lane.b32.xlu0 %v2400, 96
        %v2423 = vpop.permute.xlu0 %2422
        %2424 = vrot.lane.b32.xlu0 %v2405, 96
        %v2425 = vpop.permute.xlu0 %2424
        %2426 = vrot.lane.b32.xlu0 %v2410, 96
        %v2427 = vpop.permute.xlu0 %2426
        %2428 = vrot.lane.b32.xlu0 %v2415, 96
        %v2429 = vpop.permute.xlu0 %2428
        %v2430 = vsel %vm680, %v2400, 0
        %v2432 = vsel %vm680, %v2405, 0
        %v2434 = vsel %vm680, %v2410, 0
        %v2436 = vsel %vm680, %v2415, 0
        %v2438 = vsel %vm680, %v2423, 0
        %v2440 = vsel %vm680, %v2425, 0
        %v2442 = vsel %vm680, %v2427, 0
        %v2444 = vsel %vm680, %v2429, 0
        %2446 = vmatprep.subr.mxu0 0.0
        %2447 = vmatpush1.xpose.msra.mxu0 0.0
        %2448 = vmatprep.subr.mxu0 0.0
        %2449 = vmatpush1.xpose.msra.mxu0 0.0
        %2450 = vmatprep.subr.mxu0 0.0
        %2451 = vmatpush1.xpose.msra.mxu0 0.0
        %2452 = vmatprep.subr.mxu0 0.0
        %2453 = vmatpush1.xpose.msra.mxu0 0.0
        %2454 = vmatprep.subr.mxu0 0.0
        %2455 = vmatpush1.xpose.msra.mxu0 0.0
        %2456 = vmatprep.subr.mxu0 0.0
        %2457 = vmatpush1.xpose.msra.mxu0 0.0
        %2458 = vmatprep.subr.mxu0 0.0
        %2459 = vmatpush1.xpose.msra.mxu0 0.0
        %2460 = vmatprep.subr.mxu0 0.0
        %2461 = vmatpush1.xpose.msra.mxu0 0.0
        %2462 = vmatprep.subr.mxu0 0.0
        %2463 = vmatpush1.xpose.msra.mxu0 0.0
        %2464 = vmatprep.subr.mxu0 0.0
        %2465 = vmatpush1.xpose.msra.mxu0 0.0
        %2466 = vmatprep.subr.mxu0 0.0
        %2467 = vmatpush1.xpose.msra.mxu0 0.0
        %2468 = vmatprep.subr.mxu0 0.0
        %2469 = vmatpush1.xpose.msra.mxu0 0.0
        %2470 = vmatprep.subr.mxu0 0.0
        %2471 = vmatpush1.xpose.msra.mxu0 %v2444
        %2472 = vmatprep.subr.mxu0 0.0
        %2473 = vmatpush1.xpose.msra.mxu0 %v2442
        %2474 = vmatprep.subr.mxu0 0.0
        %2475 = vmatpush1.xpose.msra.mxu0 %v2440
        %2476 = vmatprep.subr.mxu0 0.0
        %2477 = vmatpush1.xpose.msra.mxu0 %v2438
        %2478 = vmatprep.subr.mxu0 0.0
        %2479 = vmatpush2.xpose.msra.mxu0 0.0
        %2480 = vmatprep.subr.mxu0 0.0
        %2481 = vmatpush2.xpose.msra.mxu0 0.0
        %2482 = vmatprep.subr.mxu0 0.0
        %2483 = vmatpush2.xpose.msra.mxu0 0.0
        %2484 = vmatprep.subr.mxu0 0.0
        %2485 = vmatpush2.xpose.msra.mxu0 0.0
        %2486 = vmatprep.subr.mxu0 0.0
        %2487 = vmatpush2.xpose.msra.mxu0 0.0
        %2488 = vmatprep.subr.mxu0 0.0
        %2489 = vmatpush2.xpose.msra.mxu0 0.0
        %2490 = vmatprep.subr.mxu0 0.0
        %2491 = vmatpush2.xpose.msra.mxu0 0.0
        %2492 = vmatprep.subr.mxu0 0.0
        %2493 = vmatpush2.xpose.msra.mxu0 0.0
        %2494 = vmatprep.subr.mxu0 0.0
        %2495 = vmatpush2.xpose.msra.mxu0 0.0
        %2496 = vmatprep.subr.mxu0 0.0
        %2497 = vmatpush2.xpose.msra.mxu0 0.0
        %2498 = vmatprep.subr.mxu0 0.0
        %2499 = vmatpush2.xpose.msra.mxu0 0.0
        %2500 = vmatprep.subr.mxu0 0.0
        %2501 = vmatpush2.xpose.msra.mxu0 0.0
        %2502 = vmatprep.subr.mxu0 0.0
        %2503 = vmatpush2.xpose.msra.mxu0 0.0
        %2504 = vmatprep.subr.mxu0 0.0
        %2505 = vmatpush2.xpose.msra.mxu0 0.0
        %2506 = vmatprep.subr.mxu0 0.0
        %2507 = vmatpush2.xpose.msra.mxu0 0.0
        %2508 = vmatprep.subr.mxu0 0.0
        %2509 = vmatpush2.xpose.msra.mxu0 0.0
        %2510 = vmatprep.mubr.f32.mxu0 0.0
        %2511 = vmatmul.mubr.f32.gmra.mxu0 %v2430
        %v2512 = vpop.f32.mrf.mxu0
        %v2513 = vadd.f32 0.0, %v2512
        %v2514 = vpop.f32.mrf.mxu0
        %2515 = vmatprep.mubr.f32.mxu0 0.0
        %2516 = vmatmul.mubr.f32.gmra.mxu0 %v2432
        %v2517 = vpop.f32.mrf.mxu0
        %v2518 = vadd.f32 0.0, %v2517
        %v2519 = vpop.f32.mrf.mxu0
        %2520 = vmatprep.mubr.f32.mxu0 0.0
        %2521 = vmatmul.mubr.f32.gmra.mxu0 %v2434
        %v2522 = vpop.f32.mrf.mxu0
        %v2523 = vadd.f32 0.0, %v2522
        %v2524 = vpop.f32.mrf.mxu0
        %2525 = vmatprep.mubr.f32.mxu0 0.0
        %2526 = vmatmul.mubr.f32.gmra.mxu0 %v2436
        %v2527 = vpop.f32.mrf.mxu0
        %v2528 = vadd.f32 0.0, %v2527
        %v2529 = vpop.f32.mrf.mxu0
        %2530 = vdwg.mxu0
        %v2531 = vsel %vm541, %v2513, -1e+30
        %v2532 = vsel %vm542, %v2518, -1e+30
        %v2533 = vsel %vm543, %v2523, -1e+30
        %v2534 = vsel %vm544, %v2528, -1e+30
        %v2535 = vsel %vm561, %v2531, -inf
        %2536 = vmax.xlane.f32.xlu0 %v2535
        %v2537 = vpop.xlane.xlu0 %2536
        %v2538 = vsel %vm561, %v2532, -inf
        %2539 = vmax.xlane.f32.xlu0 %v2538
        %v2540 = vpop.xlane.xlu0 %2539
        %v2541 = vsel %vm561, %v2533, -inf
        %2542 = vmax.xlane.f32.xlu0 %v2541
        %v2543 = vpop.xlane.xlu0 %2542
        %v2544 = vsel %vm561, %v2534, -inf
        %2545 = vmax.xlane.f32.xlu0 %v2544
        %v2546 = vpop.xlane.xlu0 %2545
        %v2547 = vsub.f32 %v2531, %v2537
        %v2548 = vsub.f32 %v2532, %v2540
        %v2549 = vsub.f32 %v2533, %v2543
        %v2550 = vsub.f32 %v2534, %v2546
        %v2551 = vmul.f32 %v2547, 1.442695
        %v2552 = vpow.pop %v2551
        %v2553 = vmul.f32 %v2548, 1.442695
        %v2554 = vpow.pop %v2553
        %v2555 = vmul.f32 %v2549, 1.442695
        %v2556 = vpow.pop %v2555
        %v2557 = vmul.f32 %v2550, 1.442695
        %v2558 = vpow.pop %v2557
        %v2559 = vsel %vm561, %v2552, 0.0
        %2560 = vadd.xlane.f32.xlu0 %v2559
        %v2561 = vpop.xlane.xlu0 %2560
        %v2562 = vsel %vm561, %v2554, 0.0
        %2563 = vadd.xlane.f32.xlu0 %v2562
        %v2564 = vpop.xlane.xlu0 %2563
        %v2565 = vsel %vm561, %v2556, 0.0
        %2566 = vadd.xlane.f32.xlu0 %v2565
        %v2567 = vpop.xlane.xlu0 %2566
        %v2568 = vsel %vm561, %v2558, 0.0
        %2569 = vadd.xlane.f32.xlu0 %v2568
        %v2570 = vpop.xlane.xlu0 %2569
        %v2571 = vrcp.pop %v2561
        %v2572 = vrcp.pop %v2564
        %v2573 = vrcp.pop %v2567
        %v2574 = vrcp.pop %v2570
        %v2575 = vmul.f32 %v2552, %v2571
        %v2576 = vmul.f32 %v2554, %v2572
        %v2577 = vmul.f32 %v2556, %v2573
        %v2578 = vmul.f32 %v2558, %v2574
        %2579 = vrot.lane.b32.xlu0 %v2400, 64
        %v2580 = vpop.permute.xlu0 %2579
        %2581 = vrot.lane.b32.xlu0 %v2405, 64
        %v2582 = vpop.permute.xlu0 %2581
        %2583 = vrot.lane.b32.xlu0 %v2410, 64
        %v2584 = vpop.permute.xlu0 %2583
        %2585 = vrot.lane.b32.xlu0 %v2415, 64
        %v2586 = vpop.permute.xlu0 %2585
        %v2592 = vsel %vm561, %v2575, 0
        %v2595 = vsel %vm561, %v2576, 0
        %v2598 = vsel %vm561, %v2577, 0
        %v2601 = vsel %vm561, %v2578, 0
        %2603 = vmatprep.subr.mxu0 0.0
        %2604 = vmatpush1.msra.mxu0 0.0
        %2605 = vmatprep.subr.mxu0 0.0
        %2606 = vmatpush1.msra.mxu0 0.0
        %2607 = vmatprep.subr.mxu0 0.0
        %2608 = vmatpush1.msra.mxu0 0.0
        %2609 = vmatprep.subr.mxu0 0.0
        %2610 = vmatpush1.msra.mxu0 0.0
        %2611 = vmatprep.subr.mxu0 0.0
        %2612 = vmatpush1.msra.mxu0 0.0
        %2613 = vmatprep.subr.mxu0 0.0
        %2614 = vmatpush1.msra.mxu0 0.0
        %2615 = vmatprep.subr.mxu0 0.0
        %2616 = vmatpush1.msra.mxu0 0.0
        %2617 = vmatprep.subr.mxu0 0.0
        %2618 = vmatpush1.msra.mxu0 0.0
        %2619 = vmatprep.subr.mxu0 0.0
        %2620 = vmatpush1.msra.mxu0 0.0
        %2621 = vmatprep.subr.mxu0 0.0
        %2622 = vmatpush1.msra.mxu0 0.0
        %2623 = vmatprep.subr.mxu0 0.0
        %2624 = vmatpush1.msra.mxu0 0.0
        %2625 = vmatprep.subr.mxu0 0.0
        %2626 = vmatpush1.msra.mxu0 0.0
        %2627 = vmatprep.subr.mxu0 0.0
        %2628 = vmatpush1.msra.mxu0 %v2586
        %2629 = vmatprep.subr.mxu0 0.0
        %2630 = vmatpush1.msra.mxu0 %v2584
        %2631 = vmatprep.subr.mxu0 0.0
        %2632 = vmatpush1.msra.mxu0 %v2582
        %2633 = vmatprep.subr.mxu0 0.0
        %2634 = vmatpush1.msra.mxu0 %v2580
        %2635 = vmatprep.subr.mxu0 0.0
        %2636 = vmatpush2.msra.mxu0 0.0
        %2637 = vmatprep.subr.mxu0 0.0
        %2638 = vmatpush2.msra.mxu0 0.0
        %2639 = vmatprep.subr.mxu0 0.0
        %2640 = vmatpush2.msra.mxu0 0.0
        %2641 = vmatprep.subr.mxu0 0.0
        %2642 = vmatpush2.msra.mxu0 0.0
        %2643 = vmatprep.subr.mxu0 0.0
        %2644 = vmatpush2.msra.mxu0 0.0
        %2645 = vmatprep.subr.mxu0 0.0
        %2646 = vmatpush2.msra.mxu0 0.0
        %2647 = vmatprep.subr.mxu0 0.0
        %2648 = vmatpush2.msra.mxu0 0.0
        %2649 = vmatprep.subr.mxu0 0.0
        %2650 = vmatpush2.msra.mxu0 0.0
        %2651 = vmatprep.subr.mxu0 0.0
        %2652 = vmatpush2.msra.mxu0 0.0
        %2653 = vmatprep.subr.mxu0 0.0
        %2654 = vmatpush2.msra.mxu0 0.0
        %2655 = vmatprep.subr.mxu0 0.0
        %2656 = vmatpush2.msra.mxu0 0.0
        %2657 = vmatprep.subr.mxu0 0.0
        %2658 = vmatpush2.msra.mxu0 0.0
        %2659 = vmatprep.subr.mxu0 0.0
        %2660 = vmatpush2.msra.mxu0 0.0
        %2661 = vmatprep.subr.mxu0 0.0
        %2662 = vmatpush2.msra.mxu0 0.0
        %2663 = vmatprep.subr.mxu0 0.0
        %2664 = vmatpush2.msra.mxu0 0.0
        %2665 = vmatprep.subr.mxu0 0.0
        %2666 = vmatpush2.msra.mxu0 0.0
        %2667 = vmatprep.mubr.f32.mxu0 0.0
        %2668 = vmatmul.mubr.f32.gmra.mxu0 %v2592
        %v2669 = vpop.f32.mrf.mxu0
        %v2670 = vadd.f32 0.0, %v2669
        %v2671 = vpop.f32.mrf.mxu0
        %2672 = vmatprep.mubr.f32.mxu0 0.0
        %2673 = vmatmul.mubr.f32.gmra.mxu0 %v2595
        %v2674 = vpop.f32.mrf.mxu0
        %v2675 = vadd.f32 0.0, %v2674
        %v2676 = vpop.f32.mrf.mxu0
        %2677 = vmatprep.mubr.f32.mxu0 0.0
        %2678 = vmatmul.mubr.f32.gmra.mxu0 %v2598
        %v2679 = vpop.f32.mrf.mxu0
        %v2680 = vadd.f32 0.0, %v2679
        %v2681 = vpop.f32.mrf.mxu0
        %2682 = vmatprep.mubr.f32.mxu0 0.0
        %2683 = vmatmul.mubr.f32.gmra.mxu0 %v2601
        %v2684 = vpop.f32.mrf.mxu0
        %v2685 = vadd.f32 0.0, %v2684
        %v2686 = vpop.f32.mrf.mxu0
        %2687 = vdwg.mxu0
        %2688 = vrot.lane.b32.xlu0 %v2400, 120
        %v2689 = vpop.permute.xlu0 %2688
        %2690 = vrot.lane.b32.xlu0 %v2405, 120
        %v2691 = vpop.permute.xlu0 %2690
        %2692 = vrot.lane.b32.xlu0 %v2410, 120
        %v2693 = vpop.permute.xlu0 %2692
        %2694 = vrot.lane.b32.xlu0 %v2415, 120
        %v2695 = vpop.permute.xlu0 %2694
        %2696 = vrot.lane.b32.xlu0 %v2400, 88
        %v2697 = vpop.permute.xlu0 %2696
        %2698 = vrot.lane.b32.xlu0 %v2405, 88
        %v2699 = vpop.permute.xlu0 %2698
        %2700 = vrot.lane.b32.xlu0 %v2410, 88
        %v2701 = vpop.permute.xlu0 %2700
        %2702 = vrot.lane.b32.xlu0 %v2415, 88
        %v2703 = vpop.permute.xlu0 %2702
        %v2704 = vsel %vm680, %v2689, 0
        %v2706 = vsel %vm680, %v2691, 0
        %v2708 = vsel %vm680, %v2693, 0
        %v2710 = vsel %vm680, %v2695, 0
        %v2712 = vsel %vm680, %v2697, 0
        %v2714 = vsel %vm680, %v2699, 0
        %v2716 = vsel %vm680, %v2701, 0
        %v2718 = vsel %vm680, %v2703, 0
        %2720 = vmatprep.subr.mxu0 0.0
        %2721 = vmatpush1.xpose.msra.mxu0 0.0
        %2722 = vmatprep.subr.mxu0 0.0
        %2723 = vmatpush1.xpose.msra.mxu0 0.0
        %2724 = vmatprep.subr.mxu0 0.0
        %2725 = vmatpush1.xpose.msra.mxu0 0.0
        %2726 = vmatprep.subr.mxu0 0.0
        %2727 = vmatpush1.xpose.msra.mxu0 0.0
        %2728 = vmatprep.subr.mxu0 0.0
        %2729 = vmatpush1.xpose.msra.mxu0 0.0
        %2730 = vmatprep.subr.mxu0 0.0
        %2731 = vmatpush1.xpose.msra.mxu0 0.0
        %2732 = vmatprep.subr.mxu0 0.0
        %2733 = vmatpush1.xpose.msra.mxu0 0.0
        %2734 = vmatprep.subr.mxu0 0.0
        %2735 = vmatpush1.xpose.msra.mxu0 0.0
        %2736 = vmatprep.subr.mxu0 0.0
        %2737 = vmatpush1.xpose.msra.mxu0 0.0
        %2738 = vmatprep.subr.mxu0 0.0
        %2739 = vmatpush1.xpose.msra.mxu0 0.0
        %2740 = vmatprep.subr.mxu0 0.0
        %2741 = vmatpush1.xpose.msra.mxu0 0.0
        %2742 = vmatprep.subr.mxu0 0.0
        %2743 = vmatpush1.xpose.msra.mxu0 0.0
        %2744 = vmatprep.subr.mxu0 0.0
        %2745 = vmatpush1.xpose.msra.mxu0 %v2718
        %2746 = vmatprep.subr.mxu0 0.0
        %2747 = vmatpush1.xpose.msra.mxu0 %v2716
        %2748 = vmatprep.subr.mxu0 0.0
        %2749 = vmatpush1.xpose.msra.mxu0 %v2714
        %2750 = vmatprep.subr.mxu0 0.0
        %2751 = vmatpush1.xpose.msra.mxu0 %v2712
        %2752 = vmatprep.subr.mxu0 0.0
        %2753 = vmatpush2.xpose.msra.mxu0 0.0
        %2754 = vmatprep.subr.mxu0 0.0
        %2755 = vmatpush2.xpose.msra.mxu0 0.0
        %2756 = vmatprep.subr.mxu0 0.0
        %2757 = vmatpush2.xpose.msra.mxu0 0.0
        %2758 = vmatprep.subr.mxu0 0.0
        %2759 = vmatpush2.xpose.msra.mxu0 0.0
        %2760 = vmatprep.subr.mxu0 0.0
        %2761 = vmatpush2.xpose.msra.mxu0 0.0
        %2762 = vmatprep.subr.mxu0 0.0
        %2763 = vmatpush2.xpose.msra.mxu0 0.0
        %2764 = vmatprep.subr.mxu0 0.0
        %2765 = vmatpush2.xpose.msra.mxu0 0.0
        %2766 = vmatprep.subr.mxu0 0.0
        %2767 = vmatpush2.xpose.msra.mxu0 0.0
        %2768 = vmatprep.subr.mxu0 0.0
        %2769 = vmatpush2.xpose.msra.mxu0 0.0
        %2770 = vmatprep.subr.mxu0 0.0
        %2771 = vmatpush2.xpose.msra.mxu0 0.0
        %2772 = vmatprep.subr.mxu0 0.0
        %2773 = vmatpush2.xpose.msra.mxu0 0.0
        %2774 = vmatprep.subr.mxu0 0.0
        %2775 = vmatpush2.xpose.msra.mxu0 0.0
        %2776 = vmatprep.subr.mxu0 0.0
        %2777 = vmatpush2.xpose.msra.mxu0 0.0
        %2778 = vmatprep.subr.mxu0 0.0
        %2779 = vmatpush2.xpose.msra.mxu0 0.0
        %2780 = vmatprep.subr.mxu0 0.0
        %2781 = vmatpush2.xpose.msra.mxu0 0.0
        %2782 = vmatprep.subr.mxu0 0.0
        %2783 = vmatpush2.xpose.msra.mxu0 0.0
        %2784 = vmatprep.mubr.f32.mxu0 0.0
        %2785 = vmatmul.mubr.f32.gmra.mxu0 %v2704
        %v2786 = vpop.f32.mrf.mxu0
        %v2787 = vadd.f32 0.0, %v2786
        %v2788 = vpop.f32.mrf.mxu0
        %2789 = vmatprep.mubr.f32.mxu0 0.0
        %2790 = vmatmul.mubr.f32.gmra.mxu0 %v2706
        %v2791 = vpop.f32.mrf.mxu0
        %v2792 = vadd.f32 0.0, %v2791
        %v2793 = vpop.f32.mrf.mxu0
        %2794 = vmatprep.mubr.f32.mxu0 0.0
        %2795 = vmatmul.mubr.f32.gmra.mxu0 %v2708
        %v2796 = vpop.f32.mrf.mxu0
        %v2797 = vadd.f32 0.0, %v2796
        %v2798 = vpop.f32.mrf.mxu0
        %2799 = vmatprep.mubr.f32.mxu0 0.0
        %2800 = vmatmul.mubr.f32.gmra.mxu0 %v2710
        %v2801 = vpop.f32.mrf.mxu0
        %v2802 = vadd.f32 0.0, %v2801
        %v2803 = vpop.f32.mrf.mxu0
        %2804 = vdwg.mxu0
        %v2805 = vsel %vm541, %v2787, -1e+30
        %v2806 = vsel %vm542, %v2792, -1e+30
        %v2807 = vsel %vm543, %v2797, -1e+30
        %v2808 = vsel %vm544, %v2802, -1e+30
        %v2809 = vsel %vm561, %v2805, -inf
        %2810 = vmax.xlane.f32.xlu0 %v2809
        %v2811 = vpop.xlane.xlu0 %2810
        %v2812 = vsel %vm561, %v2806, -inf
        %2813 = vmax.xlane.f32.xlu0 %v2812
        %v2814 = vpop.xlane.xlu0 %2813
        %v2815 = vsel %vm561, %v2807, -inf
        %2816 = vmax.xlane.f32.xlu0 %v2815
        %v2817 = vpop.xlane.xlu0 %2816
        %v2818 = vsel %vm561, %v2808, -inf
        %2819 = vmax.xlane.f32.xlu0 %v2818
        %v2820 = vpop.xlane.xlu0 %2819
        %v2821 = vsub.f32 %v2805, %v2811
        %v2822 = vsub.f32 %v2806, %v2814
        %v2823 = vsub.f32 %v2807, %v2817
        %v2824 = vsub.f32 %v2808, %v2820
        %v2825 = vmul.f32 %v2821, 1.442695
        %v2826 = vpow.pop %v2825
        %v2827 = vmul.f32 %v2822, 1.442695
        %v2828 = vpow.pop %v2827
        %v2829 = vmul.f32 %v2823, 1.442695
        %v2830 = vpow.pop %v2829
        %v2831 = vmul.f32 %v2824, 1.442695
        %v2832 = vpow.pop %v2831
        %v2833 = vsel %vm561, %v2826, 0.0
        %2834 = vadd.xlane.f32.xlu0 %v2833
        %v2835 = vpop.xlane.xlu0 %2834
        %v2836 = vsel %vm561, %v2828, 0.0
        %2837 = vadd.xlane.f32.xlu0 %v2836
        %v2838 = vpop.xlane.xlu0 %2837
        %v2839 = vsel %vm561, %v2830, 0.0
        %2840 = vadd.xlane.f32.xlu0 %v2839
        %v2841 = vpop.xlane.xlu0 %2840
        %v2842 = vsel %vm561, %v2832, 0.0
        %2843 = vadd.xlane.f32.xlu0 %v2842
        %v2844 = vpop.xlane.xlu0 %2843
        %v2845 = vrcp.pop %v2835
        %v2846 = vrcp.pop %v2838
        %v2847 = vrcp.pop %v2841
        %v2848 = vrcp.pop %v2844
        %v2849 = vmul.f32 %v2826, %v2845
        %v2850 = vmul.f32 %v2828, %v2846
        %v2851 = vmul.f32 %v2830, %v2847
        %v2852 = vmul.f32 %v2832, %v2848
        %2853 = vrot.lane.b32.xlu0 %v2400, 56
        %v2854 = vpop.permute.xlu0 %2853
        %2855 = vrot.lane.b32.xlu0 %v2405, 56
        %v2856 = vpop.permute.xlu0 %2855
        %2857 = vrot.lane.b32.xlu0 %v2410, 56
        %v2858 = vpop.permute.xlu0 %2857
        %2859 = vrot.lane.b32.xlu0 %v2415, 56
        %v2860 = vpop.permute.xlu0 %2859
        %v2866 = vsel %vm561, %v2849, 0
        %v2869 = vsel %vm561, %v2850, 0
        %v2872 = vsel %vm561, %v2851, 0
        %v2875 = vsel %vm561, %v2852, 0
        %2877 = vmatprep.subr.mxu0 0.0
        %2878 = vmatpush1.msra.mxu0 0.0
        %2879 = vmatprep.subr.mxu0 0.0
        %2880 = vmatpush1.msra.mxu0 0.0
        %2881 = vmatprep.subr.mxu0 0.0
        %2882 = vmatpush1.msra.mxu0 0.0
        %2883 = vmatprep.subr.mxu0 0.0
        %2884 = vmatpush1.msra.mxu0 0.0
        %2885 = vmatprep.subr.mxu0 0.0
        %2886 = vmatpush1.msra.mxu0 0.0
        %2887 = vmatprep.subr.mxu0 0.0
        %2888 = vmatpush1.msra.mxu0 0.0
        %2889 = vmatprep.subr.mxu0 0.0
        %2890 = vmatpush1.msra.mxu0 0.0
        %2891 = vmatprep.subr.mxu0 0.0
        %2892 = vmatpush1.msra.mxu0 0.0
        %2893 = vmatprep.subr.mxu0 0.0
        %2894 = vmatpush1.msra.mxu0 0.0
        %2895 = vmatprep.subr.mxu0 0.0
        %2896 = vmatpush1.msra.mxu0 0.0
        %2897 = vmatprep.subr.mxu0 0.0
        %2898 = vmatpush1.msra.mxu0 0.0
        %2899 = vmatprep.subr.mxu0 0.0
        %2900 = vmatpush1.msra.mxu0 0.0
        %2901 = vmatprep.subr.mxu0 0.0
        %2902 = vmatpush1.msra.mxu0 %v2860
        %2903 = vmatprep.subr.mxu0 0.0
        %2904 = vmatpush1.msra.mxu0 %v2858
        %2905 = vmatprep.subr.mxu0 0.0
        %2906 = vmatpush1.msra.mxu0 %v2856
        %2907 = vmatprep.subr.mxu0 0.0
        %2908 = vmatpush1.msra.mxu0 %v2854
        %2909 = vmatprep.subr.mxu0 0.0
        %2910 = vmatpush2.msra.mxu0 0.0
        %2911 = vmatprep.subr.mxu0 0.0
        %2912 = vmatpush2.msra.mxu0 0.0
        %2913 = vmatprep.subr.mxu0 0.0
        %2914 = vmatpush2.msra.mxu0 0.0
        %2915 = vmatprep.subr.mxu0 0.0
        %2916 = vmatpush2.msra.mxu0 0.0
        %2917 = vmatprep.subr.mxu0 0.0
        %2918 = vmatpush2.msra.mxu0 0.0
        %2919 = vmatprep.subr.mxu0 0.0
        %2920 = vmatpush2.msra.mxu0 0.0
        %2921 = vmatprep.subr.mxu0 0.0
        %2922 = vmatpush2.msra.mxu0 0.0
        %2923 = vmatprep.subr.mxu0 0.0
        %2924 = vmatpush2.msra.mxu0 0.0
        %2925 = vmatprep.subr.mxu0 0.0
        %2926 = vmatpush2.msra.mxu0 0.0
        %2927 = vmatprep.subr.mxu0 0.0
        %2928 = vmatpush2.msra.mxu0 0.0
        %2929 = vmatprep.subr.mxu0 0.0
        %2930 = vmatpush2.msra.mxu0 0.0
        %2931 = vmatprep.subr.mxu0 0.0
        %2932 = vmatpush2.msra.mxu0 0.0
        %2933 = vmatprep.subr.mxu0 0.0
        %2934 = vmatpush2.msra.mxu0 0.0
        %2935 = vmatprep.subr.mxu0 0.0
        %2936 = vmatpush2.msra.mxu0 0.0
        %2937 = vmatprep.subr.mxu0 0.0
        %2938 = vmatpush2.msra.mxu0 0.0
        %2939 = vmatprep.subr.mxu0 0.0
        %2940 = vmatpush2.msra.mxu0 0.0
        %2941 = vmatprep.mubr.f32.mxu0 0.0
        %2942 = vmatmul.mubr.f32.gmra.mxu0 %v2866
        %v2943 = vpop.f32.mrf.mxu0
        %v2944 = vadd.f32 0.0, %v2943
        %v2945 = vpop.f32.mrf.mxu0
        %2946 = vmatprep.mubr.f32.mxu0 0.0
        %2947 = vmatmul.mubr.f32.gmra.mxu0 %v2869
        %v2948 = vpop.f32.mrf.mxu0
        %v2949 = vadd.f32 0.0, %v2948
        %v2950 = vpop.f32.mrf.mxu0
        %2951 = vmatprep.mubr.f32.mxu0 0.0
        %2952 = vmatmul.mubr.f32.gmra.mxu0 %v2872
        %v2953 = vpop.f32.mrf.mxu0
        %v2954 = vadd.f32 0.0, %v2953
        %v2955 = vpop.f32.mrf.mxu0
        %2956 = vmatprep.mubr.f32.mxu0 0.0
        %2957 = vmatmul.mubr.f32.gmra.mxu0 %v2875
        %v2958 = vpop.f32.mrf.mxu0
        %v2959 = vadd.f32 0.0, %v2958
        %v2960 = vpop.f32.mrf.mxu0
        %2961 = vdwg.mxu0
        %2963 = vrot.lane.b32.xlu0 %v441, 96
        %v2964 = vpop.permute.xlu0 %2963
        %v2967 = vsel %vm680, %v2944, 0
        %v2970 = vsel %vm680, %v2949, 0
        %v2973 = vsel %vm680, %v2954, 0
        %v2976 = vsel %vm680, %v2959, 0
        %2978 = vmatprep.subr.mxu0 0.0
        %2979 = vmatpush1.msra.mxu0 0.0
        %2980 = vmatprep.subr.mxu0 0.0
        %2981 = vmatpush1.msra.mxu0 0.0
        %2982 = vmatprep.subr.mxu0 0.0
        %2983 = vmatpush1.msra.mxu0 0.0
        %2984 = vmatprep.subr.mxu0 0.0
        %2985 = vmatpush1.msra.mxu0 0.0
        %2986 = vmatprep.subr.mxu0 0.0
        %2987 = vmatpush1.msra.mxu0 0.0
        %2988 = vmatprep.subr.mxu0 0.0
        %2989 = vmatpush1.msra.mxu0 0.0
        %2990 = vmatprep.subr.mxu0 0.0
        %2991 = vmatpush1.msra.mxu0 0.0
        %2992 = vmatprep.subr.mxu0 0.0
        %2993 = vmatpush1.msra.mxu0 0.0
        %2994 = vmatprep.subr.mxu0 0.0
        %2995 = vmatpush1.msra.mxu0 0.0
        %2996 = vmatprep.subr.mxu0 0.0
        %2997 = vmatpush1.msra.mxu0 0.0
        %2998 = vmatprep.subr.mxu0 0.0
        %2999 = vmatpush1.msra.mxu0 0.0
        %3000 = vmatprep.subr.mxu0 0.0
        %3001 = vmatpush1.msra.mxu0 0.0
        %3002 = vmatprep.subr.mxu0 0.0
        %3003 = vmatpush1.msra.mxu0 0.0
        %3004 = vmatprep.subr.mxu0 0.0
        %3005 = vmatpush1.msra.mxu0 0.0
        %3006 = vmatprep.subr.mxu0 0.0
        %3007 = vmatpush1.msra.mxu0 0.0
        %3008 = vmatprep.subr.mxu0 0.0
        %3009 = vmatpush1.msra.mxu0 %v2964
        %3010 = vmatprep.subr.mxu0 0.0
        %3011 = vmatpush2.msra.mxu0 0.0
        %3012 = vmatprep.subr.mxu0 0.0
        %3013 = vmatpush2.msra.mxu0 0.0
        %3014 = vmatprep.subr.mxu0 0.0
        %3015 = vmatpush2.msra.mxu0 0.0
        %3016 = vmatprep.subr.mxu0 0.0
        %3017 = vmatpush2.msra.mxu0 0.0
        %3018 = vmatprep.subr.mxu0 0.0
        %3019 = vmatpush2.msra.mxu0 0.0
        %3020 = vmatprep.subr.mxu0 0.0
        %3021 = vmatpush2.msra.mxu0 0.0
        %3022 = vmatprep.subr.mxu0 0.0
        %3023 = vmatpush2.msra.mxu0 0.0
        %3024 = vmatprep.subr.mxu0 0.0
        %3025 = vmatpush2.msra.mxu0 0.0
        %3026 = vmatprep.subr.mxu0 0.0
        %3027 = vmatpush2.msra.mxu0 0.0
        %3028 = vmatprep.subr.mxu0 0.0
        %3029 = vmatpush2.msra.mxu0 0.0
        %3030 = vmatprep.subr.mxu0 0.0
        %3031 = vmatpush2.msra.mxu0 0.0
        %3032 = vmatprep.subr.mxu0 0.0
        %3033 = vmatpush2.msra.mxu0 0.0
        %3034 = vmatprep.subr.mxu0 0.0
        %3035 = vmatpush2.msra.mxu0 0.0
        %3036 = vmatprep.subr.mxu0 0.0
        %3037 = vmatpush2.msra.mxu0 0.0
        %3038 = vmatprep.subr.mxu0 0.0
        %3039 = vmatpush2.msra.mxu0 0.0
        %3040 = vmatprep.subr.mxu0 0.0
        %3041 = vmatpush2.msra.mxu0 0.0
        %3042 = vmatprep.mubr.f32.mxu0 0.0
        %3043 = vmatmul.mubr.f32.gmra.mxu0 %v2967
        %v3044 = vpop.f32.mrf.mxu0
        %v3045 = vadd.f32 0.0, %v3044
        %v3046 = vpop.f32.mrf.mxu0
        %3047 = vmatprep.mubr.f32.mxu0 0.0
        %3048 = vmatmul.mubr.f32.gmra.mxu0 %v2970
        %v3049 = vpop.f32.mrf.mxu0
        %v3050 = vadd.f32 0.0, %v3049
        %v3051 = vpop.f32.mrf.mxu0
        %3052 = vmatprep.mubr.f32.mxu0 0.0
        %3053 = vmatmul.mubr.f32.gmra.mxu0 %v2973
        %v3054 = vpop.f32.mrf.mxu0
        %v3055 = vadd.f32 0.0, %v3054
        %v3056 = vpop.f32.mrf.mxu0
        %3057 = vmatprep.mubr.f32.mxu0 0.0
        %3058 = vmatmul.mubr.f32.gmra.mxu0 %v2976
        %v3059 = vpop.f32.mrf.mxu0
        %v3060 = vadd.f32 0.0, %v3059
        %v3061 = vpop.f32.mrf.mxu0
        %3062 = vdwg.mxu0
        %3064 = vrot.lane.b32.xlu0 %v440, 96
        %v3065 = vpop.permute.xlu0 %3064
        %v3068 = vsel %vm680, %v2670, 0
        %v3071 = vsel %vm680, %v2675, 0
        %v3074 = vsel %vm680, %v2680, 0
        %v3077 = vsel %vm680, %v2685, 0
        %3079 = vmatprep.subr.mxu0 0.0
        %3080 = vmatpush1.msra.mxu0 0.0
        %3081 = vmatprep.subr.mxu0 0.0
        %3082 = vmatpush1.msra.mxu0 0.0
        %3083 = vmatprep.subr.mxu0 0.0
        %3084 = vmatpush1.msra.mxu0 0.0
        %3085 = vmatprep.subr.mxu0 0.0
        %3086 = vmatpush1.msra.mxu0 0.0
        %3087 = vmatprep.subr.mxu0 0.0
        %3088 = vmatpush1.msra.mxu0 0.0
        %3089 = vmatprep.subr.mxu0 0.0
        %3090 = vmatpush1.msra.mxu0 0.0
        %3091 = vmatprep.subr.mxu0 0.0
        %3092 = vmatpush1.msra.mxu0 0.0
        %3093 = vmatprep.subr.mxu0 0.0
        %3094 = vmatpush1.msra.mxu0 0.0
        %3095 = vmatprep.subr.mxu0 0.0
        %3096 = vmatpush1.msra.mxu0 0.0
        %3097 = vmatprep.subr.mxu0 0.0
        %3098 = vmatpush1.msra.mxu0 0.0
        %3099 = vmatprep.subr.mxu0 0.0
        %3100 = vmatpush1.msra.mxu0 0.0
        %3101 = vmatprep.subr.mxu0 0.0
        %3102 = vmatpush1.msra.mxu0 0.0
        %3103 = vmatprep.subr.mxu0 0.0
        %3104 = vmatpush1.msra.mxu0 0.0
        %3105 = vmatprep.subr.mxu0 0.0
        %3106 = vmatpush1.msra.mxu0 0.0
        %3107 = vmatprep.subr.mxu0 0.0
        %3108 = vmatpush1.msra.mxu0 0.0
        %3109 = vmatprep.subr.mxu0 0.0
        %3110 = vmatpush1.msra.mxu0 %v3065
        %3111 = vmatprep.subr.mxu0 0.0
        %3112 = vmatpush2.msra.mxu0 0.0
        %3113 = vmatprep.subr.mxu0 0.0
        %3114 = vmatpush2.msra.mxu0 0.0
        %3115 = vmatprep.subr.mxu0 0.0
        %3116 = vmatpush2.msra.mxu0 0.0
        %3117 = vmatprep.subr.mxu0 0.0
        %3118 = vmatpush2.msra.mxu0 0.0
        %3119 = vmatprep.subr.mxu0 0.0
        %3120 = vmatpush2.msra.mxu0 0.0
        %3121 = vmatprep.subr.mxu0 0.0
        %3122 = vmatpush2.msra.mxu0 0.0
        %3123 = vmatprep.subr.mxu0 0.0
        %3124 = vmatpush2.msra.mxu0 0.0
        %3125 = vmatprep.subr.mxu0 0.0
        %3126 = vmatpush2.msra.mxu0 0.0
        %3127 = vmatprep.subr.mxu0 0.0
        %3128 = vmatpush2.msra.mxu0 0.0
        %3129 = vmatprep.subr.mxu0 0.0
        %3130 = vmatpush2.msra.mxu0 0.0
        %3131 = vmatprep.subr.mxu0 0.0
        %3132 = vmatpush2.msra.mxu0 0.0
        %3133 = vmatprep.subr.mxu0 0.0
        %3134 = vmatpush2.msra.mxu0 0.0
        %3135 = vmatprep.subr.mxu0 0.0
        %3136 = vmatpush2.msra.mxu0 0.0
        %3137 = vmatprep.subr.mxu0 0.0
        %3138 = vmatpush2.msra.mxu0 0.0
        %3139 = vmatprep.subr.mxu0 0.0
        %3140 = vmatpush2.msra.mxu0 0.0
        %3141 = vmatprep.subr.mxu0 0.0
        %3142 = vmatpush2.msra.mxu0 0.0
        %3143 = vmatprep.mubr.f32.mxu0 0.0
        %3144 = vmatmul.mubr.f32.gmra.mxu0 %v3068
        %v3145 = vpop.f32.mrf.mxu0
        %v3146 = vadd.f32 %v3045, %v3145
        %v3147 = vpop.f32.mrf.mxu0
        %3148 = vmatprep.mubr.f32.mxu0 0.0
        %3149 = vmatmul.mubr.f32.gmra.mxu0 %v3071
        %v3150 = vpop.f32.mrf.mxu0
        %v3151 = vadd.f32 %v3050, %v3150
        %v3152 = vpop.f32.mrf.mxu0
        %3153 = vmatprep.mubr.f32.mxu0 0.0
        %3154 = vmatmul.mubr.f32.gmra.mxu0 %v3074
        %v3155 = vpop.f32.mrf.mxu0
        %v3156 = vadd.f32 %v3055, %v3155
        %v3157 = vpop.f32.mrf.mxu0
        %3158 = vmatprep.mubr.f32.mxu0 0.0
        %3159 = vmatmul.mubr.f32.gmra.mxu0 %v3077
        %v3160 = vpop.f32.mrf.mxu0
        %v3161 = vadd.f32 %v3060, %v3160
        %v3162 = vpop.f32.mrf.mxu0
        %3163 = vdwg.mxu0
        %3164 = vrot.lane.b32.xlu0 %v2400, 112
        %v3165 = vpop.permute.xlu0 %3164
        %3166 = vrot.lane.b32.xlu0 %v2405, 112
        %v3167 = vpop.permute.xlu0 %3166
        %3168 = vrot.lane.b32.xlu0 %v2410, 112
        %v3169 = vpop.permute.xlu0 %3168
        %3170 = vrot.lane.b32.xlu0 %v2415, 112
        %v3171 = vpop.permute.xlu0 %3170
        %3172 = vrot.lane.b32.xlu0 %v2400, 80
        %v3173 = vpop.permute.xlu0 %3172
        %3174 = vrot.lane.b32.xlu0 %v2405, 80
        %v3175 = vpop.permute.xlu0 %3174
        %3176 = vrot.lane.b32.xlu0 %v2410, 80
        %v3177 = vpop.permute.xlu0 %3176
        %3178 = vrot.lane.b32.xlu0 %v2415, 80
        %v3179 = vpop.permute.xlu0 %3178
        %v3180 = vsel %vm680, %v3165, 0
        %v3182 = vsel %vm680, %v3167, 0
        %v3184 = vsel %vm680, %v3169, 0
        %v3186 = vsel %vm680, %v3171, 0
        %v3188 = vsel %vm680, %v3173, 0
        %v3190 = vsel %vm680, %v3175, 0
        %v3192 = vsel %vm680, %v3177, 0
        %v3194 = vsel %vm680, %v3179, 0
        %3196 = vmatprep.subr.mxu0 0.0
        %3197 = vmatpush1.xpose.msra.mxu0 0.0
        %3198 = vmatprep.subr.mxu0 0.0
        %3199 = vmatpush1.xpose.msra.mxu0 0.0
        %3200 = vmatprep.subr.mxu0 0.0
        %3201 = vmatpush1.xpose.msra.mxu0 0.0
        %3202 = vmatprep.subr.mxu0 0.0
        %3203 = vmatpush1.xpose.msra.mxu0 0.0
        %3204 = vmatprep.subr.mxu0 0.0
        %3205 = vmatpush1.xpose.msra.mxu0 0.0
        %3206 = vmatprep.subr.mxu0 0.0
        %3207 = vmatpush1.xpose.msra.mxu0 0.0
        %3208 = vmatprep.subr.mxu0 0.0
        %3209 = vmatpush1.xpose.msra.mxu0 0.0
        %3210 = vmatprep.subr.mxu0 0.0
        %3211 = vmatpush1.xpose.msra.mxu0 0.0
        %3212 = vmatprep.subr.mxu0 0.0
        %3213 = vmatpush1.xpose.msra.mxu0 0.0
        %3214 = vmatprep.subr.mxu0 0.0
        %3215 = vmatpush1.xpose.msra.mxu0 0.0
        %3216 = vmatprep.subr.mxu0 0.0
        %3217 = vmatpush1.xpose.msra.mxu0 0.0
        %3218 = vmatprep.subr.mxu0 0.0
        %3219 = vmatpush1.xpose.msra.mxu0 0.0
        %3220 = vmatprep.subr.mxu0 0.0
        %3221 = vmatpush1.xpose.msra.mxu0 %v3194
        %3222 = vmatprep.subr.mxu0 0.0
        %3223 = vmatpush1.xpose.msra.mxu0 %v3192
        %3224 = vmatprep.subr.mxu0 0.0
        %3225 = vmatpush1.xpose.msra.mxu0 %v3190
        %3226 = vmatprep.subr.mxu0 0.0
        %3227 = vmatpush1.xpose.msra.mxu0 %v3188
        %3228 = vmatprep.subr.mxu0 0.0
        %3229 = vmatpush2.xpose.msra.mxu0 0.0
        %3230 = vmatprep.subr.mxu0 0.0
        %3231 = vmatpush2.xpose.msra.mxu0 0.0
        %3232 = vmatprep.subr.mxu0 0.0
        %3233 = vmatpush2.xpose.msra.mxu0 0.0
        %3234 = vmatprep.subr.mxu0 0.0
        %3235 = vmatpush2.xpose.msra.mxu0 0.0
        %3236 = vmatprep.subr.mxu0 0.0
        %3237 = vmatpush2.xpose.msra.mxu0 0.0
        %3238 = vmatprep.subr.mxu0 0.0
        %3239 = vmatpush2.xpose.msra.mxu0 0.0
        %3240 = vmatprep.subr.mxu0 0.0
        %3241 = vmatpush2.xpose.msra.mxu0 0.0
        %3242 = vmatprep.subr.mxu0 0.0
        %3243 = vmatpush2.xpose.msra.mxu0 0.0
        %3244 = vmatprep.subr.mxu0 0.0
        %3245 = vmatpush2.xpose.msra.mxu0 0.0
        %3246 = vmatprep.subr.mxu0 0.0
        %3247 = vmatpush2.xpose.msra.mxu0 0.0
        %3248 = vmatprep.subr.mxu0 0.0
        %3249 = vmatpush2.xpose.msra.mxu0 0.0
        %3250 = vmatprep.subr.mxu0 0.0
        %3251 = vmatpush2.xpose.msra.mxu0 0.0
        %3252 = vmatprep.subr.mxu0 0.0
        %3253 = vmatpush2.xpose.msra.mxu0 0.0
        %3254 = vmatprep.subr.mxu0 0.0
        %3255 = vmatpush2.xpose.msra.mxu0 0.0
        %3256 = vmatprep.subr.mxu0 0.0
        %3257 = vmatpush2.xpose.msra.mxu0 0.0
        %3258 = vmatprep.subr.mxu0 0.0
        %3259 = vmatpush2.xpose.msra.mxu0 0.0
        %3260 = vmatprep.mubr.f32.mxu0 0.0
        %3261 = vmatmul.mubr.f32.gmra.mxu0 %v3180
        %v3262 = vpop.f32.mrf.mxu0
        %v3263 = vadd.f32 0.0, %v3262
        %v3264 = vpop.f32.mrf.mxu0
        %3265 = vmatprep.mubr.f32.mxu0 0.0
        %3266 = vmatmul.mubr.f32.gmra.mxu0 %v3182
        %v3267 = vpop.f32.mrf.mxu0
        %v3268 = vadd.f32 0.0, %v3267
        %v3269 = vpop.f32.mrf.mxu0
        %3270 = vmatprep.mubr.f32.mxu0 0.0
        %3271 = vmatmul.mubr.f32.gmra.mxu0 %v3184
        %v3272 = vpop.f32.mrf.mxu0
        %v3273 = vadd.f32 0.0, %v3272
        %v3274 = vpop.f32.mrf.mxu0
        %3275 = vmatprep.mubr.f32.mxu0 0.0
        %3276 = vmatmul.mubr.f32.gmra.mxu0 %v3186
        %v3277 = vpop.f32.mrf.mxu0
        %v3278 = vadd.f32 0.0, %v3277
        %v3279 = vpop.f32.mrf.mxu0
        %3280 = vdwg.mxu0
        %v3281 = vsel %vm541, %v3263, -1e+30
        %v3282 = vsel %vm542, %v3268, -1e+30
        %v3283 = vsel %vm543, %v3273, -1e+30
        %v3284 = vsel %vm544, %v3278, -1e+30
        %v3285 = vsel %vm561, %v3281, -inf
        %3286 = vmax.xlane.f32.xlu0 %v3285
        %v3287 = vpop.xlane.xlu0 %3286
        %v3288 = vsel %vm561, %v3282, -inf
        %3289 = vmax.xlane.f32.xlu0 %v3288
        %v3290 = vpop.xlane.xlu0 %3289
        %v3291 = vsel %vm561, %v3283, -inf
        %3292 = vmax.xlane.f32.xlu0 %v3291
        %v3293 = vpop.xlane.xlu0 %3292
        %v3294 = vsel %vm561, %v3284, -inf
        %3295 = vmax.xlane.f32.xlu0 %v3294
        %v3296 = vpop.xlane.xlu0 %3295
        %v3297 = vsub.f32 %v3281, %v3287
        %v3298 = vsub.f32 %v3282, %v3290
        %v3299 = vsub.f32 %v3283, %v3293
        %v3300 = vsub.f32 %v3284, %v3296
        %v3301 = vmul.f32 %v3297, 1.442695
        %v3302 = vpow.pop %v3301
        %v3303 = vmul.f32 %v3298, 1.442695
        %v3304 = vpow.pop %v3303
        %v3305 = vmul.f32 %v3299, 1.442695
        %v3306 = vpow.pop %v3305
        %v3307 = vmul.f32 %v3300, 1.442695
        %v3308 = vpow.pop %v3307
        %v3309 = vsel %vm561, %v3302, 0.0
        %3310 = vadd.xlane.f32.xlu0 %v3309
        %v3311 = vpop.xlane.xlu0 %3310
        %v3312 = vsel %vm561, %v3304, 0.0
        %3313 = vadd.xlane.f32.xlu0 %v3312
        %v3314 = vpop.xlane.xlu0 %3313
        %v3315 = vsel %vm561, %v3306, 0.0
        %3316 = vadd.xlane.f32.xlu0 %v3315
        %v3317 = vpop.xlane.xlu0 %3316
        %v3318 = vsel %vm561, %v3308, 0.0
        %3319 = vadd.xlane.f32.xlu0 %v3318
        %v3320 = vpop.xlane.xlu0 %3319
        %v3321 = vrcp.pop %v3311
        %v3322 = vrcp.pop %v3314
        %v3323 = vrcp.pop %v3317
        %v3324 = vrcp.pop %v3320
        %v3325 = vmul.f32 %v3302, %v3321
        %v3326 = vmul.f32 %v3304, %v3322
        %v3327 = vmul.f32 %v3306, %v3323
        %v3328 = vmul.f32 %v3308, %v3324
        %3329 = vrot.lane.b32.xlu0 %v2400, 48
        %v3330 = vpop.permute.xlu0 %3329
        %3331 = vrot.lane.b32.xlu0 %v2405, 48
        %v3332 = vpop.permute.xlu0 %3331
        %3333 = vrot.lane.b32.xlu0 %v2410, 48
        %v3334 = vpop.permute.xlu0 %3333
        %3335 = vrot.lane.b32.xlu0 %v2415, 48
        %v3336 = vpop.permute.xlu0 %3335
        %v3342 = vsel %vm561, %v3325, 0
        %v3345 = vsel %vm561, %v3326, 0
        %v3348 = vsel %vm561, %v3327, 0
        %v3351 = vsel %vm561, %v3328, 0
        %3353 = vmatprep.subr.mxu0 0.0
        %3354 = vmatpush1.msra.mxu0 0.0
        %3355 = vmatprep.subr.mxu0 0.0
        %3356 = vmatpush1.msra.mxu0 0.0
        %3357 = vmatprep.subr.mxu0 0.0
        %3358 = vmatpush1.msra.mxu0 0.0
        %3359 = vmatprep.subr.mxu0 0.0
        %3360 = vmatpush1.msra.mxu0 0.0
        %3361 = vmatprep.subr.mxu0 0.0
        %3362 = vmatpush1.msra.mxu0 0.0
        %3363 = vmatprep.subr.mxu0 0.0
        %3364 = vmatpush1.msra.mxu0 0.0
        %3365 = vmatprep.subr.mxu0 0.0
        %3366 = vmatpush1.msra.mxu0 0.0
        %3367 = vmatprep.subr.mxu0 0.0
        %3368 = vmatpush1.msra.mxu0 0.0
        %3369 = vmatprep.subr.mxu0 0.0
        %3370 = vmatpush1.msra.mxu0 0.0
        %3371 = vmatprep.subr.mxu0 0.0
        %3372 = vmatpush1.msra.mxu0 0.0
        %3373 = vmatprep.subr.mxu0 0.0
        %3374 = vmatpush1.msra.mxu0 0.0
        %3375 = vmatprep.subr.mxu0 0.0
        %3376 = vmatpush1.msra.mxu0 0.0
        %3377 = vmatprep.subr.mxu0 0.0
        %3378 = vmatpush1.msra.mxu0 %v3336
        %3379 = vmatprep.subr.mxu0 0.0
        %3380 = vmatpush1.msra.mxu0 %v3334
        %3381 = vmatprep.subr.mxu0 0.0
        %3382 = vmatpush1.msra.mxu0 %v3332
        %3383 = vmatprep.subr.mxu0 0.0
        %3384 = vmatpush1.msra.mxu0 %v3330
        %3385 = vmatprep.subr.mxu0 0.0
        %3386 = vmatpush2.msra.mxu0 0.0
        %3387 = vmatprep.subr.mxu0 0.0
        %3388 = vmatpush2.msra.mxu0 0.0
        %3389 = vmatprep.subr.mxu0 0.0
        %3390 = vmatpush2.msra.mxu0 0.0
        %3391 = vmatprep.subr.mxu0 0.0
        %3392 = vmatpush2.msra.mxu0 0.0
        %3393 = vmatprep.subr.mxu0 0.0
        %3394 = vmatpush2.msra.mxu0 0.0
        %3395 = vmatprep.subr.mxu0 0.0
        %3396 = vmatpush2.msra.mxu0 0.0
        %3397 = vmatprep.subr.mxu0 0.0
        %3398 = vmatpush2.msra.mxu0 0.0
        %3399 = vmatprep.subr.mxu0 0.0
        %3400 = vmatpush2.msra.mxu0 0.0
        %3401 = vmatprep.subr.mxu0 0.0
        %3402 = vmatpush2.msra.mxu0 0.0
        %3403 = vmatprep.subr.mxu0 0.0
        %3404 = vmatpush2.msra.mxu0 0.0
        %3405 = vmatprep.subr.mxu0 0.0
        %3406 = vmatpush2.msra.mxu0 0.0
        %3407 = vmatprep.subr.mxu0 0.0
        %3408 = vmatpush2.msra.mxu0 0.0
        %3409 = vmatprep.subr.mxu0 0.0
        %3410 = vmatpush2.msra.mxu0 0.0
        %3411 = vmatprep.subr.mxu0 0.0
        %3412 = vmatpush2.msra.mxu0 0.0
        %3413 = vmatprep.subr.mxu0 0.0
        %3414 = vmatpush2.msra.mxu0 0.0
        %3415 = vmatprep.subr.mxu0 0.0
        %3416 = vmatpush2.msra.mxu0 0.0
        %3417 = vmatprep.mubr.f32.mxu0 0.0
        %3418 = vmatmul.mubr.f32.gmra.mxu0 %v3342
        %v3419 = vpop.f32.mrf.mxu0
        %v3420 = vadd.f32 0.0, %v3419
        %v3421 = vpop.f32.mrf.mxu0
        %3422 = vmatprep.mubr.f32.mxu0 0.0
        %3423 = vmatmul.mubr.f32.gmra.mxu0 %v3345
        %v3424 = vpop.f32.mrf.mxu0
        %v3425 = vadd.f32 0.0, %v3424
        %v3426 = vpop.f32.mrf.mxu0
        %3427 = vmatprep.mubr.f32.mxu0 0.0
        %3428 = vmatmul.mubr.f32.gmra.mxu0 %v3348
        %v3429 = vpop.f32.mrf.mxu0
        %v3430 = vadd.f32 0.0, %v3429
        %v3431 = vpop.f32.mrf.mxu0
        %3432 = vmatprep.mubr.f32.mxu0 0.0
        %3433 = vmatmul.mubr.f32.gmra.mxu0 %v3351
        %v3434 = vpop.f32.mrf.mxu0
        %v3435 = vadd.f32 0.0, %v3434
        %v3436 = vpop.f32.mrf.mxu0
        %3437 = vdwg.mxu0
        %3439 = vrot.lane.b32.xlu0 %v442, 96
        %v3440 = vpop.permute.xlu0 %3439
        %v3443 = vsel %vm680, %v3420, 0
        %v3446 = vsel %vm680, %v3425, 0
        %v3449 = vsel %vm680, %v3430, 0
        %v3452 = vsel %vm680, %v3435, 0
        %3454 = vmatprep.subr.mxu0 0.0
        %3455 = vmatpush1.msra.mxu0 0.0
        %3456 = vmatprep.subr.mxu0 0.0
        %3457 = vmatpush1.msra.mxu0 0.0
        %3458 = vmatprep.subr.mxu0 0.0
        %3459 = vmatpush1.msra.mxu0 0.0
        %3460 = vmatprep.subr.mxu0 0.0
        %3461 = vmatpush1.msra.mxu0 0.0
        %3462 = vmatprep.subr.mxu0 0.0
        %3463 = vmatpush1.msra.mxu0 0.0
        %3464 = vmatprep.subr.mxu0 0.0
        %3465 = vmatpush1.msra.mxu0 0.0
        %3466 = vmatprep.subr.mxu0 0.0
        %3467 = vmatpush1.msra.mxu0 0.0
        %3468 = vmatprep.subr.mxu0 0.0
        %3469 = vmatpush1.msra.mxu0 0.0
        %3470 = vmatprep.subr.mxu0 0.0
        %3471 = vmatpush1.msra.mxu0 0.0
        %3472 = vmatprep.subr.mxu0 0.0
        %3473 = vmatpush1.msra.mxu0 0.0
        %3474 = vmatprep.subr.mxu0 0.0
        %3475 = vmatpush1.msra.mxu0 0.0
        %3476 = vmatprep.subr.mxu0 0.0
        %3477 = vmatpush1.msra.mxu0 0.0
        %3478 = vmatprep.subr.mxu0 0.0
        %3479 = vmatpush1.msra.mxu0 0.0
        %3480 = vmatprep.subr.mxu0 0.0
        %3481 = vmatpush1.msra.mxu0 0.0
        %3482 = vmatprep.subr.mxu0 0.0
        %3483 = vmatpush1.msra.mxu0 0.0
        %3484 = vmatprep.subr.mxu0 0.0
        %3485 = vmatpush1.msra.mxu0 %v3440
        %3486 = vmatprep.subr.mxu0 0.0
        %3487 = vmatpush2.msra.mxu0 0.0
        %3488 = vmatprep.subr.mxu0 0.0
        %3489 = vmatpush2.msra.mxu0 0.0
        %3490 = vmatprep.subr.mxu0 0.0
        %3491 = vmatpush2.msra.mxu0 0.0
        %3492 = vmatprep.subr.mxu0 0.0
        %3493 = vmatpush2.msra.mxu0 0.0
        %3494 = vmatprep.subr.mxu0 0.0
        %3495 = vmatpush2.msra.mxu0 0.0
        %3496 = vmatprep.subr.mxu0 0.0
        %3497 = vmatpush2.msra.mxu0 0.0
        %3498 = vmatprep.subr.mxu0 0.0
        %3499 = vmatpush2.msra.mxu0 0.0
        %3500 = vmatprep.subr.mxu0 0.0
        %3501 = vmatpush2.msra.mxu0 0.0
        %3502 = vmatprep.subr.mxu0 0.0
        %3503 = vmatpush2.msra.mxu0 0.0
        %3504 = vmatprep.subr.mxu0 0.0
        %3505 = vmatpush2.msra.mxu0 0.0
        %3506 = vmatprep.subr.mxu0 0.0
        %3507 = vmatpush2.msra.mxu0 0.0
        %3508 = vmatprep.subr.mxu0 0.0
        %3509 = vmatpush2.msra.mxu0 0.0
        %3510 = vmatprep.subr.mxu0 0.0
        %3511 = vmatpush2.msra.mxu0 0.0
        %3512 = vmatprep.subr.mxu0 0.0
        %3513 = vmatpush2.msra.mxu0 0.0
        %3514 = vmatprep.subr.mxu0 0.0
        %3515 = vmatpush2.msra.mxu0 0.0
        %3516 = vmatprep.subr.mxu0 0.0
        %3517 = vmatpush2.msra.mxu0 0.0
        %3518 = vmatprep.mubr.f32.mxu0 0.0
        %3519 = vmatmul.mubr.f32.gmra.mxu0 %v3443
        %v3520 = vpop.f32.mrf.mxu0
        %v3521 = vadd.f32 0.0, %v3520
        %v3522 = vpop.f32.mrf.mxu0
        %3523 = vmatprep.mubr.f32.mxu0 0.0
        %3524 = vmatmul.mubr.f32.gmra.mxu0 %v3446
        %v3525 = vpop.f32.mrf.mxu0
        %v3526 = vadd.f32 0.0, %v3525
        %v3527 = vpop.f32.mrf.mxu0
        %3528 = vmatprep.mubr.f32.mxu0 0.0
        %3529 = vmatmul.mubr.f32.gmra.mxu0 %v3449
        %v3530 = vpop.f32.mrf.mxu0
        %v3531 = vadd.f32 0.0, %v3530
        %v3532 = vpop.f32.mrf.mxu0
        %3533 = vmatprep.mubr.f32.mxu0 0.0
        %3534 = vmatmul.mubr.f32.gmra.mxu0 %v3452
        %v3535 = vpop.f32.mrf.mxu0
        %v3536 = vadd.f32 0.0, %v3535
        %v3537 = vpop.f32.mrf.mxu0
        %3538 = vdwg.mxu0
        %v3539 = vadd.f32 %v3146, %v3521
        %v3540 = vadd.f32 %v3151, %v3526
        %v3541 = vadd.f32 %v3156, %v3531
        %v3542 = vadd.f32 %v3161, %v3536
        %3543 = vrot.lane.b32.xlu0 %v2400, 104
        %v3544 = vpop.permute.xlu0 %3543
        %3545 = vrot.lane.b32.xlu0 %v2405, 104
        %v3546 = vpop.permute.xlu0 %3545
        %3547 = vrot.lane.b32.xlu0 %v2410, 104
        %v3548 = vpop.permute.xlu0 %3547
        %3549 = vrot.lane.b32.xlu0 %v2415, 104
        %v3550 = vpop.permute.xlu0 %3549
        %3551 = vrot.lane.b32.xlu0 %v2400, 72
        %v3552 = vpop.permute.xlu0 %3551
        %3553 = vrot.lane.b32.xlu0 %v2405, 72
        %v3554 = vpop.permute.xlu0 %3553
        %3555 = vrot.lane.b32.xlu0 %v2410, 72
        %v3556 = vpop.permute.xlu0 %3555
        %3557 = vrot.lane.b32.xlu0 %v2415, 72
        %v3558 = vpop.permute.xlu0 %3557
        %v3559 = vsel %vm680, %v3544, 0
        %v3561 = vsel %vm680, %v3546, 0
        %v3563 = vsel %vm680, %v3548, 0
        %v3565 = vsel %vm680, %v3550, 0
        %v3567 = vsel %vm680, %v3552, 0
        %v3569 = vsel %vm680, %v3554, 0
        %v3571 = vsel %vm680, %v3556, 0
        %v3573 = vsel %vm680, %v3558, 0
        %3575 = vmatprep.subr.mxu0 0.0
        %3576 = vmatpush1.xpose.msra.mxu0 0.0
        %3577 = vmatprep.subr.mxu0 0.0
        %3578 = vmatpush1.xpose.msra.mxu0 0.0
        %3579 = vmatprep.subr.mxu0 0.0
        %3580 = vmatpush1.xpose.msra.mxu0 0.0
        %3581 = vmatprep.subr.mxu0 0.0
        %3582 = vmatpush1.xpose.msra.mxu0 0.0
        %3583 = vmatprep.subr.mxu0 0.0
        %3584 = vmatpush1.xpose.msra.mxu0 0.0
        %3585 = vmatprep.subr.mxu0 0.0
        %3586 = vmatpush1.xpose.msra.mxu0 0.0
        %3587 = vmatprep.subr.mxu0 0.0
        %3588 = vmatpush1.xpose.msra.mxu0 0.0
        %3589 = vmatprep.subr.mxu0 0.0
        %3590 = vmatpush1.xpose.msra.mxu0 0.0
        %3591 = vmatprep.subr.mxu0 0.0
        %3592 = vmatpush1.xpose.msra.mxu0 0.0
        %3593 = vmatprep.subr.mxu0 0.0
        %3594 = vmatpush1.xpose.msra.mxu0 0.0
        %3595 = vmatprep.subr.mxu0 0.0
        %3596 = vmatpush1.xpose.msra.mxu0 0.0
        %3597 = vmatprep.subr.mxu0 0.0
        %3598 = vmatpush1.xpose.msra.mxu0 0.0
        %3599 = vmatprep.subr.mxu0 0.0
        %3600 = vmatpush1.xpose.msra.mxu0 %v3573
        %3601 = vmatprep.subr.mxu0 0.0
        %3602 = vmatpush1.xpose.msra.mxu0 %v3571
        %3603 = vmatprep.subr.mxu0 0.0
        %3604 = vmatpush1.xpose.msra.mxu0 %v3569
        %3605 = vmatprep.subr.mxu0 0.0
        %3606 = vmatpush1.xpose.msra.mxu0 %v3567
        %3607 = vmatprep.subr.mxu0 0.0
        %3608 = vmatpush2.xpose.msra.mxu0 0.0
        %3609 = vmatprep.subr.mxu0 0.0
        %3610 = vmatpush2.xpose.msra.mxu0 0.0
        %3611 = vmatprep.subr.mxu0 0.0
        %3612 = vmatpush2.xpose.msra.mxu0 0.0
        %3613 = vmatprep.subr.mxu0 0.0
        %3614 = vmatpush2.xpose.msra.mxu0 0.0
        %3615 = vmatprep.subr.mxu0 0.0
        %3616 = vmatpush2.xpose.msra.mxu0 0.0
        %3617 = vmatprep.subr.mxu0 0.0
        %3618 = vmatpush2.xpose.msra.mxu0 0.0
        %3619 = vmatprep.subr.mxu0 0.0
        %3620 = vmatpush2.xpose.msra.mxu0 0.0
        %3621 = vmatprep.subr.mxu0 0.0
        %3622 = vmatpush2.xpose.msra.mxu0 0.0
        %3623 = vmatprep.subr.mxu0 0.0
        %3624 = vmatpush2.xpose.msra.mxu0 0.0
        %3625 = vmatprep.subr.mxu0 0.0
        %3626 = vmatpush2.xpose.msra.mxu0 0.0
        %3627 = vmatprep.subr.mxu0 0.0
        %3628 = vmatpush2.xpose.msra.mxu0 0.0
        %3629 = vmatprep.subr.mxu0 0.0
        %3630 = vmatpush2.xpose.msra.mxu0 0.0
        %3631 = vmatprep.subr.mxu0 0.0
        %3632 = vmatpush2.xpose.msra.mxu0 0.0
        %3633 = vmatprep.subr.mxu0 0.0
        %3634 = vmatpush2.xpose.msra.mxu0 0.0
        %3635 = vmatprep.subr.mxu0 0.0
        %3636 = vmatpush2.xpose.msra.mxu0 0.0
        %3637 = vmatprep.subr.mxu0 0.0
        %3638 = vmatpush2.xpose.msra.mxu0 0.0
        %3639 = vmatprep.mubr.f32.mxu0 0.0
        %3640 = vmatmul.mubr.f32.gmra.mxu0 %v3559
        %v3641 = vpop.f32.mrf.mxu0
        %v3642 = vadd.f32 0.0, %v3641
        %v3643 = vpop.f32.mrf.mxu0
        %3644 = vmatprep.mubr.f32.mxu0 0.0
        %3645 = vmatmul.mubr.f32.gmra.mxu0 %v3561
        %v3646 = vpop.f32.mrf.mxu0
        %v3647 = vadd.f32 0.0, %v3646
        %v3648 = vpop.f32.mrf.mxu0
        %3649 = vmatprep.mubr.f32.mxu0 0.0
        %3650 = vmatmul.mubr.f32.gmra.mxu0 %v3563
        %v3651 = vpop.f32.mrf.mxu0
        %v3652 = vadd.f32 0.0, %v3651
        %v3653 = vpop.f32.mrf.mxu0
        %3654 = vmatprep.mubr.f32.mxu0 0.0
        %3655 = vmatmul.mubr.f32.gmra.mxu0 %v3565
        %v3656 = vpop.f32.mrf.mxu0
        %v3657 = vadd.f32 0.0, %v3656
        %v3658 = vpop.f32.mrf.mxu0
        %3659 = vdwg.mxu0
        %v3660 = vsel %vm541, %v3642, -1e+30
        %v3661 = vsel %vm542, %v3647, -1e+30
        %v3662 = vsel %vm543, %v3652, -1e+30
        %v3663 = vsel %vm544, %v3657, -1e+30
        %v3664 = vsel %vm561, %v3660, -inf
        %3665 = vmax.xlane.f32.xlu0 %v3664
        %v3666 = vpop.xlane.xlu0 %3665
        %v3667 = vsel %vm561, %v3661, -inf
        %3668 = vmax.xlane.f32.xlu0 %v3667
        %v3669 = vpop.xlane.xlu0 %3668
        %v3670 = vsel %vm561, %v3662, -inf
        %3671 = vmax.xlane.f32.xlu0 %v3670
        %v3672 = vpop.xlane.xlu0 %3671
        %v3673 = vsel %vm561, %v3663, -inf
        %3674 = vmax.xlane.f32.xlu0 %v3673
        %v3675 = vpop.xlane.xlu0 %3674
        %v3676 = vsub.f32 %v3660, %v3666
        %v3677 = vsub.f32 %v3661, %v3669
        %v3678 = vsub.f32 %v3662, %v3672
        %v3679 = vsub.f32 %v3663, %v3675
        %v3680 = vmul.f32 %v3676, 1.442695
        %v3681 = vpow.pop %v3680
        %v3682 = vmul.f32 %v3677, 1.442695
        %v3683 = vpow.pop %v3682
        %v3684 = vmul.f32 %v3678, 1.442695
        %v3685 = vpow.pop %v3684
        %v3686 = vmul.f32 %v3679, 1.442695
        %v3687 = vpow.pop %v3686
        %v3688 = vsel %vm561, %v3681, 0.0
        %3689 = vadd.xlane.f32.xlu0 %v3688
        %v3690 = vpop.xlane.xlu0 %3689
        %v3691 = vsel %vm561, %v3683, 0.0
        %3692 = vadd.xlane.f32.xlu0 %v3691
        %v3693 = vpop.xlane.xlu0 %3692
        %v3694 = vsel %vm561, %v3685, 0.0
        %3695 = vadd.xlane.f32.xlu0 %v3694
        %v3696 = vpop.xlane.xlu0 %3695
        %v3697 = vsel %vm561, %v3687, 0.0
        %3698 = vadd.xlane.f32.xlu0 %v3697
        %v3699 = vpop.xlane.xlu0 %3698
        %v3700 = vrcp.pop %v3690
        %v3701 = vrcp.pop %v3693
        %v3702 = vrcp.pop %v3696
        %v3703 = vrcp.pop %v3699
        %v3704 = vmul.f32 %v3681, %v3700
        %v3705 = vmul.f32 %v3683, %v3701
        %v3706 = vmul.f32 %v3685, %v3702
        %v3707 = vmul.f32 %v3687, %v3703
        %3708 = vrot.lane.b32.xlu0 %v2400, 40
        %v3709 = vpop.permute.xlu0 %3708
        %3710 = vrot.lane.b32.xlu0 %v2405, 40
        %v3711 = vpop.permute.xlu0 %3710
        %3712 = vrot.lane.b32.xlu0 %v2410, 40
        %v3713 = vpop.permute.xlu0 %3712
        %3714 = vrot.lane.b32.xlu0 %v2415, 40
        %v3715 = vpop.permute.xlu0 %3714
        %v3721 = vsel %vm561, %v3704, 0
        %v3724 = vsel %vm561, %v3705, 0
        %v3727 = vsel %vm561, %v3706, 0
        %v3730 = vsel %vm561, %v3707, 0
        %3732 = vmatprep.subr.mxu0 0.0
        %3733 = vmatpush1.msra.mxu0 0.0
        %3734 = vmatprep.subr.mxu0 0.0
        %3735 = vmatpush1.msra.mxu0 0.0
        %3736 = vmatprep.subr.mxu0 0.0
        %3737 = vmatpush1.msra.mxu0 0.0
        %3738 = vmatprep.subr.mxu0 0.0
        %3739 = vmatpush1.msra.mxu0 0.0
        %3740 = vmatprep.subr.mxu0 0.0
        %3741 = vmatpush1.msra.mxu0 0.0
        %3742 = vmatprep.subr.mxu0 0.0
        %3743 = vmatpush1.msra.mxu0 0.0
        %3744 = vmatprep.subr.mxu0 0.0
        %3745 = vmatpush1.msra.mxu0 0.0
        %3746 = vmatprep.subr.mxu0 0.0
        %3747 = vmatpush1.msra.mxu0 0.0
        %3748 = vmatprep.subr.mxu0 0.0
        %3749 = vmatpush1.msra.mxu0 0.0
        %3750 = vmatprep.subr.mxu0 0.0
        %3751 = vmatpush1.msra.mxu0 0.0
        %3752 = vmatprep.subr.mxu0 0.0
        %3753 = vmatpush1.msra.mxu0 0.0
        %3754 = vmatprep.subr.mxu0 0.0
        %3755 = vmatpush1.msra.mxu0 0.0
        %3756 = vmatprep.subr.mxu0 0.0
        %3757 = vmatpush1.msra.mxu0 %v3715
        %3758 = vmatprep.subr.mxu0 0.0
        %3759 = vmatpush1.msra.mxu0 %v3713
        %3760 = vmatprep.subr.mxu0 0.0
        %3761 = vmatpush1.msra.mxu0 %v3711
        %3762 = vmatprep.subr.mxu0 0.0
        %3763 = vmatpush1.msra.mxu0 %v3709
        %3764 = vmatprep.subr.mxu0 0.0
        %3765 = vmatpush2.msra.mxu0 0.0
        %3766 = vmatprep.subr.mxu0 0.0
        %3767 = vmatpush2.msra.mxu0 0.0
        %3768 = vmatprep.subr.mxu0 0.0
        %3769 = vmatpush2.msra.mxu0 0.0
        %3770 = vmatprep.subr.mxu0 0.0
        %3771 = vmatpush2.msra.mxu0 0.0
        %3772 = vmatprep.subr.mxu0 0.0
        %3773 = vmatpush2.msra.mxu0 0.0
        %3774 = vmatprep.subr.mxu0 0.0
        %3775 = vmatpush2.msra.mxu0 0.0
        %3776 = vmatprep.subr.mxu0 0.0
        %3777 = vmatpush2.msra.mxu0 0.0
        %3778 = vmatprep.subr.mxu0 0.0
        %3779 = vmatpush2.msra.mxu0 0.0
        %3780 = vmatprep.subr.mxu0 0.0
        %3781 = vmatpush2.msra.mxu0 0.0
        %3782 = vmatprep.subr.mxu0 0.0
        %3783 = vmatpush2.msra.mxu0 0.0
        %3784 = vmatprep.subr.mxu0 0.0
        %3785 = vmatpush2.msra.mxu0 0.0
        %3786 = vmatprep.subr.mxu0 0.0
        %3787 = vmatpush2.msra.mxu0 0.0
        %3788 = vmatprep.subr.mxu0 0.0
        %3789 = vmatpush2.msra.mxu0 0.0
        %3790 = vmatprep.subr.mxu0 0.0
        %3791 = vmatpush2.msra.mxu0 0.0
        %3792 = vmatprep.subr.mxu0 0.0
        %3793 = vmatpush2.msra.mxu0 0.0
        %3794 = vmatprep.subr.mxu0 0.0
        %3795 = vmatpush2.msra.mxu0 0.0
        %3796 = vmatprep.mubr.f32.mxu0 0.0
        %3797 = vmatmul.mubr.f32.gmra.mxu0 %v3721
        %v3798 = vpop.f32.mrf.mxu0
        %v3799 = vadd.f32 0.0, %v3798
        %v3800 = vpop.f32.mrf.mxu0
        %3801 = vmatprep.mubr.f32.mxu0 0.0
        %3802 = vmatmul.mubr.f32.gmra.mxu0 %v3724
        %v3803 = vpop.f32.mrf.mxu0
        %v3804 = vadd.f32 0.0, %v3803
        %v3805 = vpop.f32.mrf.mxu0
        %3806 = vmatprep.mubr.f32.mxu0 0.0
        %3807 = vmatmul.mubr.f32.gmra.mxu0 %v3727
        %v3808 = vpop.f32.mrf.mxu0
        %v3809 = vadd.f32 0.0, %v3808
        %v3810 = vpop.f32.mrf.mxu0
        %3811 = vmatprep.mubr.f32.mxu0 0.0
        %3812 = vmatmul.mubr.f32.gmra.mxu0 %v3730
        %v3813 = vpop.f32.mrf.mxu0
        %v3814 = vadd.f32 0.0, %v3813
        %v3815 = vpop.f32.mrf.mxu0
        %3816 = vdwg.mxu0
        %3818 = vrot.lane.b32.xlu0 %v443, 96
        %v3819 = vpop.permute.xlu0 %3818
        %v3822 = vsel %vm680, %v3799, 0
        %v3825 = vsel %vm680, %v3804, 0
        %v3828 = vsel %vm680, %v3809, 0
        %v3831 = vsel %vm680, %v3814, 0
        %3833 = vmatprep.subr.mxu0 0.0
        %3834 = vmatpush1.msra.mxu0 0.0
        %3835 = vmatprep.subr.mxu0 0.0
        %3836 = vmatpush1.msra.mxu0 0.0
        %3837 = vmatprep.subr.mxu0 0.0
        %3838 = vmatpush1.msra.mxu0 0.0
        %3839 = vmatprep.subr.mxu0 0.0
        %3840 = vmatpush1.msra.mxu0 0.0
        %3841 = vmatprep.subr.mxu0 0.0
        %3842 = vmatpush1.msra.mxu0 0.0
        %3843 = vmatprep.subr.mxu0 0.0
        %3844 = vmatpush1.msra.mxu0 0.0
        %3845 = vmatprep.subr.mxu0 0.0
        %3846 = vmatpush1.msra.mxu0 0.0
        %3847 = vmatprep.subr.mxu0 0.0
        %3848 = vmatpush1.msra.mxu0 0.0
        %3849 = vmatprep.subr.mxu0 0.0
        %3850 = vmatpush1.msra.mxu0 0.0
        %3851 = vmatprep.subr.mxu0 0.0
        %3852 = vmatpush1.msra.mxu0 0.0
        %3853 = vmatprep.subr.mxu0 0.0
        %3854 = vmatpush1.msra.mxu0 0.0
        %3855 = vmatprep.subr.mxu0 0.0
        %3856 = vmatpush1.msra.mxu0 0.0
        %3857 = vmatprep.subr.mxu0 0.0
        %3858 = vmatpush1.msra.mxu0 0.0
        %3859 = vmatprep.subr.mxu0 0.0
        %3860 = vmatpush1.msra.mxu0 0.0
        %3861 = vmatprep.subr.mxu0 0.0
        %3862 = vmatpush1.msra.mxu0 0.0
        %3863 = vmatprep.subr.mxu0 0.0
        %3864 = vmatpush1.msra.mxu0 %v3819
        %3865 = vmatprep.subr.mxu0 0.0
        %3866 = vmatpush2.msra.mxu0 0.0
        %3867 = vmatprep.subr.mxu0 0.0
        %3868 = vmatpush2.msra.mxu0 0.0
        %3869 = vmatprep.subr.mxu0 0.0
        %3870 = vmatpush2.msra.mxu0 0.0
        %3871 = vmatprep.subr.mxu0 0.0
        %3872 = vmatpush2.msra.mxu0 0.0
        %3873 = vmatprep.subr.mxu0 0.0
        %3874 = vmatpush2.msra.mxu0 0.0
        %3875 = vmatprep.subr.mxu0 0.0
        %3876 = vmatpush2.msra.mxu0 0.0
        %3877 = vmatprep.subr.mxu0 0.0
        %3878 = vmatpush2.msra.mxu0 0.0
        %3879 = vmatprep.subr.mxu0 0.0
        %3880 = vmatpush2.msra.mxu0 0.0
        %3881 = vmatprep.subr.mxu0 0.0
        %3882 = vmatpush2.msra.mxu0 0.0
        %3883 = vmatprep.subr.mxu0 0.0
        %3884 = vmatpush2.msra.mxu0 0.0
        %3885 = vmatprep.subr.mxu0 0.0
        %3886 = vmatpush2.msra.mxu0 0.0
        %3887 = vmatprep.subr.mxu0 0.0
        %3888 = vmatpush2.msra.mxu0 0.0
        %3889 = vmatprep.subr.mxu0 0.0
        %3890 = vmatpush2.msra.mxu0 0.0
        %3891 = vmatprep.subr.mxu0 0.0
        %3892 = vmatpush2.msra.mxu0 0.0
        %3893 = vmatprep.subr.mxu0 0.0
        %3894 = vmatpush2.msra.mxu0 0.0
        %3895 = vmatprep.subr.mxu0 0.0
        %3896 = vmatpush2.msra.mxu0 0.0
        %3897 = vmatprep.mubr.f32.mxu0 0.0
        %3898 = vmatmul.mubr.f32.gmra.mxu0 %v3822
        %v3899 = vpop.f32.mrf.mxu0
        %v3900 = vadd.f32 0.0, %v3899
        %v3901 = vpop.f32.mrf.mxu0
        %3902 = vmatprep.mubr.f32.mxu0 0.0
        %3903 = vmatmul.mubr.f32.gmra.mxu0 %v3825
        %v3904 = vpop.f32.mrf.mxu0
        %v3905 = vadd.f32 0.0, %v3904
        %v3906 = vpop.f32.mrf.mxu0
        %3907 = vmatprep.mubr.f32.mxu0 0.0
        %3908 = vmatmul.mubr.f32.gmra.mxu0 %v3828
        %v3909 = vpop.f32.mrf.mxu0
        %v3910 = vadd.f32 0.0, %v3909
        %v3911 = vpop.f32.mrf.mxu0
        %3912 = vmatprep.mubr.f32.mxu0 0.0
        %3913 = vmatmul.mubr.f32.gmra.mxu0 %v3831
        %v3914 = vpop.f32.mrf.mxu0
        %v3915 = vadd.f32 0.0, %v3914
        %v3916 = vpop.f32.mrf.mxu0
        %3917 = vdwg.mxu0
        %v3918 = vadd.f32 %v3539, %v3900
        %v3919 = vadd.f32 %v3540, %v3905
        %v3920 = vadd.f32 %v3541, %v3910
        %v3921 = vadd.f32 %v3542, %v3915
        %3923 = vrot.lane.b32.xlu0 %v2160, 96
        %v3924 = vpop.permute.xlu0 %3923
        %v3926 = vadd.f32 %v3918, %v3924
        %v3927 = vadd.f32 %v3919, %v3924
        %v3928 = vadd.f32 %v3920, %v3924
        %v3929 = vadd.f32 %v3921, %v3924
        %v3930 = vadd.f32 %v2245, %v3926
        %v3931 = vadd.f32 %v2246, %v3927
        %v3932 = vadd.f32 %v2247, %v3928
        %v3933 = vadd.f32 %v2248, %v3929
        %v3934 = vsel %vm561, %v3930, 0.0
        %3935 = vadd.xlane.f32.xlu0 %v3934
        %v3936 = vpop.xlane.xlu0 %3935
        %v3937 = vsel %vm561, %v3931, 0.0
        %3938 = vadd.xlane.f32.xlu0 %v3937
        %v3939 = vpop.xlane.xlu0 %3938
        %v3940 = vsel %vm561, %v3932, 0.0
        %3941 = vadd.xlane.f32.xlu0 %v3940
        %v3942 = vpop.xlane.xlu0 %3941
        %v3943 = vsel %vm561, %v3933, 0.0
        %3944 = vadd.xlane.f32.xlu0 %v3943
        %v3945 = vpop.xlane.xlu0 %3944
        %v3946 = vmul.f32 %v3936, %v2181
        %v3947 = vmul.f32 %v3939, %v2181
        %v3948 = vmul.f32 %v3942, %v2181
        %v3949 = vmul.f32 %v3945, %v2181
        %v3950 = vmul.f32 %v3930, %v3930
        %v3951 = vmul.f32 %v3931, %v3931
        %v3952 = vmul.f32 %v3932, %v3932
        %v3953 = vmul.f32 %v3933, %v3933
        %v3954 = vsel %vm561, %v3950, 0.0
        %3955 = vadd.xlane.f32.xlu0 %v3954
        %v3956 = vpop.xlane.xlu0 %3955
        %v3957 = vsel %vm561, %v3951, 0.0
        %3958 = vadd.xlane.f32.xlu0 %v3957
        %v3959 = vpop.xlane.xlu0 %3958
        %v3960 = vsel %vm561, %v3952, 0.0
        %3961 = vadd.xlane.f32.xlu0 %v3960
        %v3962 = vpop.xlane.xlu0 %3961
        %v3963 = vsel %vm561, %v3953, 0.0
        %3964 = vadd.xlane.f32.xlu0 %v3963
        %v3965 = vpop.xlane.xlu0 %3964
        %v3966 = vmul.f32 %v3956, %v2181
        %v3967 = vmul.f32 %v3959, %v2181
        %v3968 = vmul.f32 %v3962, %v2181
        %v3969 = vmul.f32 %v3965, %v2181
        %v3970 = vmul.f32 %v3946, %v3946
        %v3971 = vmul.f32 %v3947, %v3947
        %v3972 = vmul.f32 %v3948, %v3948
        %v3973 = vmul.f32 %v3949, %v3949
        %v3974 = vsub.f32 %v3966, %v3970
        %v3975 = vsub.f32 %v3967, %v3971
        %v3976 = vsub.f32 %v3968, %v3972
        %v3977 = vsub.f32 %v3969, %v3973
        %v3978 = vadd.f32 %v3974, 1e-05
        %v3979 = vadd.f32 %v3975, 1e-05
        %v3980 = vadd.f32 %v3976, 1e-05
        %v3981 = vadd.f32 %v3977, 1e-05
        %v3982 = vrsqrt.pop %v3978
        %v3983 = vrsqrt.pop %v3979
        %v3984 = vrsqrt.pop %v3980
        %v3985 = vrsqrt.pop %v3981
        %v3986 = vsub.f32 %v3930, %v3946
        %v3987 = vsub.f32 %v3931, %v3947
        %v3988 = vsub.f32 %v3932, %v3948
        %v3989 = vsub.f32 %v3933, %v3949
        %v3990 = vmul.f32 %v3986, %v3982
        %v3991 = vmul.f32 %v3987, %v3983
        %v3992 = vmul.f32 %v3988, %v3984
        %v3993 = vmul.f32 %v3989, %v3985
        %3994 = vrot.lane.b32.xlu0 %v2233, 32
        %v3995 = vpop.permute.xlu0 %3994
        %v3997 = vmul.f32 %v3990, %v3995
        %v3998 = vmul.f32 %v3991, %v3995
        %v3999 = vmul.f32 %v3992, %v3995
        %v4000 = vmul.f32 %v3993, %v3995
        %v4001 = vlaneseq
        %v4002 = vshrl.u32 %v4001, 7
        %v4003 = vsub.s32 4, %v4002
        %v4004 = vrot.slane %v452, %v4003
        %v4005 = vadd.f32 %v3997, %v4004
        %v4006 = vadd.f32 %v3998, %v4004
        %v4007 = vadd.f32 %v3999, %v4004
        %v4008 = vadd.f32 %v4000, %v4004
        %4009 = vrot.lane.b32.xlu0 %v440, 64
        %v4010 = vpop.permute.xlu0 %4009
        %4011 = vrot.lane.b32.xlu0 %v441, 64
        %v4012 = vpop.permute.xlu0 %4011
        %4013 = vrot.lane.b32.xlu0 %v442, 64
        %v4014 = vpop.permute.xlu0 %4013
        %4015 = vrot.lane.b32.xlu0 %v443, 64
        %v4016 = vpop.permute.xlu0 %4015
        %4021 = vrot.lane.b32.xlu0 %v2160, 64
        %v4022 = vpop.permute.xlu0 %4021
        %v4025 = vsel %vm561, %v4005, 0
        %v4028 = vsel %vm561, %v4006, 0
        %v4031 = vsel %vm561, %v4007, 0
        %v4034 = vsel %vm561, %v4008, 0
        %4036 = vmatprep.subr.mxu0 0.0
        %4037 = vmatpush1.msra.mxu0 0.0
        %4038 = vmatprep.subr.mxu0 0.0
        %4039 = vmatpush1.msra.mxu0 0.0
        %4040 = vmatprep.subr.mxu0 0.0
        %4041 = vmatpush1.msra.mxu0 0.0
        %4042 = vmatprep.subr.mxu0 0.0
        %4043 = vmatpush1.msra.mxu0 0.0
        %4044 = vmatprep.subr.mxu0 0.0
        %4045 = vmatpush1.msra.mxu0 0.0
        %4046 = vmatprep.subr.mxu0 0.0
        %4047 = vmatpush1.msra.mxu0 0.0
        %4048 = vmatprep.subr.mxu0 0.0
        %4049 = vmatpush1.msra.mxu0 0.0
        %4050 = vmatprep.subr.mxu0 0.0
        %4051 = vmatpush1.msra.mxu0 0.0
        %4052 = vmatprep.subr.mxu0 0.0
        %4053 = vmatpush1.msra.mxu0 0.0
        %4054 = vmatprep.subr.mxu0 0.0
        %4055 = vmatpush1.msra.mxu0 0.0
        %4056 = vmatprep.subr.mxu0 0.0
        %4057 = vmatpush1.msra.mxu0 0.0
        %4058 = vmatprep.subr.mxu0 0.0
        %4059 = vmatpush1.msra.mxu0 0.0
        %4060 = vmatprep.subr.mxu0 0.0
        %4061 = vmatpush1.msra.mxu0 %v4016
        %4062 = vmatprep.subr.mxu0 0.0
        %4063 = vmatpush1.msra.mxu0 %v4014
        %4064 = vmatprep.subr.mxu0 0.0
        %4065 = vmatpush1.msra.mxu0 %v4012
        %4066 = vmatprep.subr.mxu0 0.0
        %4067 = vmatpush1.msra.mxu0 %v4010
        %4068 = vmatprep.subr.mxu0 0.0
        %4069 = vmatpush2.msra.mxu0 0.0
        %4070 = vmatprep.subr.mxu0 0.0
        %4071 = vmatpush2.msra.mxu0 0.0
        %4072 = vmatprep.subr.mxu0 0.0
        %4073 = vmatpush2.msra.mxu0 0.0
        %4074 = vmatprep.subr.mxu0 0.0
        %4075 = vmatpush2.msra.mxu0 0.0
        %4076 = vmatprep.subr.mxu0 0.0
        %4077 = vmatpush2.msra.mxu0 0.0
        %4078 = vmatprep.subr.mxu0 0.0
        %4079 = vmatpush2.msra.mxu0 0.0
        %4080 = vmatprep.subr.mxu0 0.0
        %4081 = vmatpush2.msra.mxu0 0.0
        %4082 = vmatprep.subr.mxu0 0.0
        %4083 = vmatpush2.msra.mxu0 0.0
        %4084 = vmatprep.subr.mxu0 0.0
        %4085 = vmatpush2.msra.mxu0 0.0
        %4086 = vmatprep.subr.mxu0 0.0
        %4087 = vmatpush2.msra.mxu0 0.0
        %4088 = vmatprep.subr.mxu0 0.0
        %4089 = vmatpush2.msra.mxu0 0.0
        %4090 = vmatprep.subr.mxu0 0.0
        %4091 = vmatpush2.msra.mxu0 0.0
        %4092 = vmatprep.subr.mxu0 0.0
        %4093 = vmatpush2.msra.mxu0 0.0
        %4094 = vmatprep.subr.mxu0 0.0
        %4095 = vmatpush2.msra.mxu0 0.0
        %4096 = vmatprep.subr.mxu0 0.0
        %4097 = vmatpush2.msra.mxu0 0.0
        %4098 = vmatprep.subr.mxu0 0.0
        %4099 = vmatpush2.msra.mxu0 0.0
        %4100 = vmatprep.mubr.f32.mxu0 0.0
        %4101 = vmatmul.mubr.f32.gmra.mxu0 %v4025
        %v4102 = vpop.f32.mrf.mxu0
        %v4103 = vadd.f32 %v4022, %v4102
        %v4104 = vpop.f32.mrf.mxu0
        %4105 = vmatprep.mubr.f32.mxu0 0.0
        %4106 = vmatmul.mubr.f32.gmra.mxu0 %v4028
        %v4107 = vpop.f32.mrf.mxu0
        %v4108 = vadd.f32 %v4022, %v4107
        %v4109 = vpop.f32.mrf.mxu0
        %4110 = vmatprep.mubr.f32.mxu0 0.0
        %4111 = vmatmul.mubr.f32.gmra.mxu0 %v4031
        %v4112 = vpop.f32.mrf.mxu0
        %v4113 = vadd.f32 %v4022, %v4112
        %v4114 = vpop.f32.mrf.mxu0
        %4115 = vmatprep.mubr.f32.mxu0 0.0
        %4116 = vmatmul.mubr.f32.gmra.mxu0 %v4034
        %v4117 = vpop.f32.mrf.mxu0
        %v4118 = vadd.f32 %v4022, %v4117
        %v4119 = vpop.f32.mrf.mxu0
        %4120 = vdwg.mxu0
        %v4121 = vmax.f32 %v4103, 0.0
        %v4122 = vmax.f32 %v4108, 0.0
        %v4123 = vmax.f32 %v4113, 0.0
        %v4124 = vmax.f32 %v4118, 0.0
        %v4126 = vsel %vm570, %v4121, 0
        %v4129 = vsel %vm570, %v4122, 0
        %v4132 = vsel %vm570, %v4123, 0
        %v4135 = vsel %vm570, %v4124, 0
        %4137 = vmatprep.subr.mxu0 0.0
        %4138 = vmatpush1.msra.mxu0 0.0
        %4139 = vmatprep.subr.mxu0 0.0
        %4140 = vmatpush1.msra.mxu0 0.0
        %4141 = vmatprep.subr.mxu0 0.0
        %4142 = vmatpush1.msra.mxu0 0.0
        %4143 = vmatprep.subr.mxu0 0.0
        %4144 = vmatpush1.msra.mxu0 0.0
        %4145 = vmatprep.subr.mxu0 0.0
        %4146 = vmatpush1.msra.mxu0 0.0
        %4147 = vmatprep.subr.mxu0 0.0
        %4148 = vmatpush1.msra.mxu0 0.0
        %4149 = vmatprep.subr.mxu0 0.0
        %4150 = vmatpush1.msra.mxu0 0.0
        %4151 = vmatprep.subr.mxu0 0.0
        %4152 = vmatpush1.msra.mxu0 0.0
        %4153 = vmatprep.subr.mxu0 0.0
        %4154 = vmatpush1.msra.mxu0 %v451
        %4155 = vmatprep.subr.mxu0 0.0
        %4156 = vmatpush1.msra.mxu0 %v450
        %4157 = vmatprep.subr.mxu0 0.0
        %4158 = vmatpush1.msra.mxu0 %v449
        %4159 = vmatprep.subr.mxu0 0.0
        %4160 = vmatpush1.msra.mxu0 %v448
        %4161 = vmatprep.subr.mxu0 0.0
        %4162 = vmatpush1.msra.mxu0 %v447
        %4163 = vmatprep.subr.mxu0 0.0
        %4164 = vmatpush1.msra.mxu0 %v446
        %4165 = vmatprep.subr.mxu0 0.0
        %4166 = vmatpush1.msra.mxu0 %v445
        %4167 = vmatprep.subr.mxu0 0.0
        %4168 = vmatpush1.msra.mxu0 %v444
        %4169 = vmatprep.subr.mxu0 0.0
        %4170 = vmatpush2.msra.mxu0 0.0
        %4171 = vmatprep.subr.mxu0 0.0
        %4172 = vmatpush2.msra.mxu0 0.0
        %4173 = vmatprep.subr.mxu0 0.0
        %4174 = vmatpush2.msra.mxu0 0.0
        %4175 = vmatprep.subr.mxu0 0.0
        %4176 = vmatpush2.msra.mxu0 0.0
        %4177 = vmatprep.subr.mxu0 0.0
        %4178 = vmatpush2.msra.mxu0 0.0
        %4179 = vmatprep.subr.mxu0 0.0
        %4180 = vmatpush2.msra.mxu0 0.0
        %4181 = vmatprep.subr.mxu0 0.0
        %4182 = vmatpush2.msra.mxu0 0.0
        %4183 = vmatprep.subr.mxu0 0.0
        %4184 = vmatpush2.msra.mxu0 0.0
        %4185 = vmatprep.subr.mxu0 0.0
        %4186 = vmatpush2.msra.mxu0 0.0
        %4187 = vmatprep.subr.mxu0 0.0
        %4188 = vmatpush2.msra.mxu0 0.0
        %4189 = vmatprep.subr.mxu0 0.0
        %4190 = vmatpush2.msra.mxu0 0.0
        %4191 = vmatprep.subr.mxu0 0.0
        %4192 = vmatpush2.msra.mxu0 0.0
        %4193 = vmatprep.subr.mxu0 0.0
        %4194 = vmatpush2.msra.mxu0 0.0
        %4195 = vmatprep.subr.mxu0 0.0
        %4196 = vmatpush2.msra.mxu0 0.0
        %4197 = vmatprep.subr.mxu0 0.0
        %4198 = vmatpush2.msra.mxu0 0.0
        %4199 = vmatprep.subr.mxu0 0.0
        %4200 = vmatpush2.msra.mxu0 0.0
        %4201 = vmatprep.mubr.f32.mxu0 0.0
        %4202 = vmatmul.mubr.f32.gmra.mxu0 %v4126
        %v4203 = vpop.f32.mrf.mxu0
        %v4204 = vadd.f32 %v2233, %v4203
        %v4205 = vpop.f32.mrf.mxu0
        %4206 = vmatprep.mubr.f32.mxu0 0.0
        %4207 = vmatmul.mubr.f32.gmra.mxu0 %v4129
        %v4208 = vpop.f32.mrf.mxu0
        %v4209 = vadd.f32 %v2233, %v4208
        %v4210 = vpop.f32.mrf.mxu0
        %4211 = vmatprep.mubr.f32.mxu0 0.0
        %4212 = vmatmul.mubr.f32.gmra.mxu0 %v4132
        %v4213 = vpop.f32.mrf.mxu0
        %v4214 = vadd.f32 %v2233, %v4213
        %v4215 = vpop.f32.mrf.mxu0
        %4216 = vmatprep.mubr.f32.mxu0 0.0
        %4217 = vmatmul.mubr.f32.gmra.mxu0 %v4135
        %v4218 = vpop.f32.mrf.mxu0
        %v4219 = vadd.f32 %v2233, %v4218
        %v4220 = vpop.f32.mrf.mxu0
        %4221 = vdwg.mxu0
        %v4222 = vadd.f32 %v4005, %v4204
        %v4223 = vadd.f32 %v4006, %v4209
        %v4224 = vadd.f32 %v4007, %v4214
        %v4225 = vadd.f32 %v4008, %v4219
        %v4226 = vsel %vm561, %v4222, 0.0
        %4227 = vadd.xlane.f32.xlu0 %v4226
        %v4228 = vpop.xlane.xlu0 %4227
        %v4229 = vsel %vm561, %v4223, 0.0
        %4230 = vadd.xlane.f32.xlu0 %v4229
        %v4231 = vpop.xlane.xlu0 %4230
        %v4232 = vsel %vm561, %v4224, 0.0
        %4233 = vadd.xlane.f32.xlu0 %v4232
        %v4234 = vpop.xlane.xlu0 %4233
        %v4235 = vsel %vm561, %v4225, 0.0
        %4236 = vadd.xlane.f32.xlu0 %v4235
        %v4237 = vpop.xlane.xlu0 %4236
        %v4238 = vmul.f32 %v4228, %v2181
        %v4239 = vmul.f32 %v4231, %v2181
        %v4240 = vmul.f32 %v4234, %v2181
        %v4241 = vmul.f32 %v4237, %v2181
        %v4242 = vmul.f32 %v4222, %v4222
        %v4243 = vmul.f32 %v4223, %v4223
        %v4244 = vmul.f32 %v4224, %v4224
        %v4245 = vmul.f32 %v4225, %v4225
        %v4246 = vsel %vm561, %v4242, 0.0
        %4247 = vadd.xlane.f32.xlu0 %v4246
        %v4248 = vpop.xlane.xlu0 %4247
        %v4249 = vsel %vm561, %v4243, 0.0
        %4250 = vadd.xlane.f32.xlu0 %v4249
        %v4251 = vpop.xlane.xlu0 %4250
        %v4252 = vsel %vm561, %v4244, 0.0
        %4253 = vadd.xlane.f32.xlu0 %v4252
        %v4254 = vpop.xlane.xlu0 %4253
        %v4255 = vsel %vm561, %v4245, 0.0
        %4256 = vadd.xlane.f32.xlu0 %v4255
        %v4257 = vpop.xlane.xlu0 %4256
        %v4258 = vmul.f32 %v4248, %v2181
        %v4259 = vmul.f32 %v4251, %v2181
        %v4260 = vmul.f32 %v4254, %v2181
        %v4261 = vmul.f32 %v4257, %v2181
        %v4262 = vmul.f32 %v4238, %v4238
        %v4263 = vmul.f32 %v4239, %v4239
        %v4264 = vmul.f32 %v4240, %v4240
        %v4265 = vmul.f32 %v4241, %v4241
        %v4266 = vsub.f32 %v4258, %v4262
        %v4267 = vsub.f32 %v4259, %v4263
        %v4268 = vsub.f32 %v4260, %v4264
        %v4269 = vsub.f32 %v4261, %v4265
        %v4270 = vadd.f32 %v4266, 1e-05
        %v4271 = vadd.f32 %v4267, 1e-05
        %v4272 = vadd.f32 %v4268, 1e-05
        %v4273 = vadd.f32 %v4269, 1e-05
        %v4274 = vrsqrt.pop %v4270
        %v4275 = vrsqrt.pop %v4271
        %v4276 = vrsqrt.pop %v4272
        %v4277 = vrsqrt.pop %v4273
        %v4278 = vsub.f32 %v4222, %v4238
        %v4279 = vsub.f32 %v4223, %v4239
        %v4280 = vsub.f32 %v4224, %v4240
        %v4281 = vsub.f32 %v4225, %v4241
        %v4282 = vmul.f32 %v4278, %v4274
        %v4283 = vmul.f32 %v4279, %v4275
        %v4284 = vmul.f32 %v4280, %v4276
        %v4285 = vmul.f32 %v4281, %v4277
        %4287 = vrot.lane.b32.xlu0 %v4004, 96
        %v4288 = vpop.permute.xlu0 %4287
        %v4290 = vmul.f32 %v4282, %v4288
        %v4291 = vmul.f32 %v4283, %v4288
        %v4292 = vmul.f32 %v4284, %v4288
        %v4293 = vmul.f32 %v4285, %v4288
        %4294 = vrot.lane.b32.xlu0 %v4004, 64
        %v4295 = vpop.permute.xlu0 %4294
        %v4297 = vadd.f32 %v4290, %v4295
        %v4298 = vadd.f32 %v4291, %v4295
        %v4299 = vadd.f32 %v4292, %v4295
        %v4300 = vadd.f32 %v4293, %v4295
        %4301 = vst.msk [vmem:[#allocation2] sm:$0xff] %vm561, %v4297
        %4302 = vst.msk [vmem:[#allocation2 + $0x8] sm:$0xff] %vm561, %v4298
        %4303 = vst.msk [vmem:[#allocation2 + $0x10] sm:$0xff] %vm561, %v4299
        %4304 = vst.msk [vmem:[#allocation2 + $0x18] sm:$0xff] %vm561, %v4300
        %p4305 = scmp.eq.s32.totalorder %s26, 1
        // Predicated region
        $region61: #{_encoder_jit.1} parent=51 // pred_check
          %p4306 = pneg %p4305
        $region62: #{_encoder_jit.1} parent=51 // pred_check_branch
          %4308 = sbr.rel (%p4306) target = $region64
        $region63: #{_encoder_jit.1} parent=51 // pred_region
          %4309 = vst.msk [vmem:[#allocation7] sm:$0xff] %vm561, %v4297
          %4310 = vst.msk [vmem:[#allocation7 + $0x8] sm:$0xff] %vm561, %v4298
          %4311 = vst.msk [vmem:[#allocation8] sm:$0xff] %vm561, %v4299
          %4312 = vst.msk [vmem:[#allocation8 + $0x8] sm:$0xff] %vm561, %v4300
        $region64: #{_encoder_jit.1} parent=51 // pred_fallthru
          _
        // Predicated region
        $region65: #{_encoder_jit.1} parent=51 // pred_check
          %p4313 = pneg %p227
        $region66: #{_encoder_jit.1} parent=51 // pred_check_branch
          %4315 = sbr.rel (%p4313) target = $region68
        $region67: #{_encoder_jit.1} parent=51 // pred_region
          %s4317 = ssub.s32 256, 256
          %4318 = vsyncadd [#allocation6], %s4317
          %s4319 = sshll.u32 [#allocation7], 4
          %s4320 = int_to_ptr.vmem [resolvable:$true] %s4319
          %4325 = dma.vmem_to_hbm [thread:$0]  %s4320, 256, %s8, [#allocation6], 128, 128, 8
        $region68: #{_encoder_jit.1} parent=51 // pred_fallthru
          _
        // Predicated region
        $region69: #{_encoder_jit.1} parent=51 // pred_check
          %p4326 = pneg %p248
        $region70: #{_encoder_jit.1} parent=51 // pred_check_branch
          %4328 = sbr.rel (%p4326) target = $region72
        $region71: #{_encoder_jit.1} parent=51 // pred_region
          %s4330 = ssub.s32 256, 256
          %4331 = vsyncadd [#allocation9], %s4330
          %s4332 = sshll.u32 [#allocation8], 4
          %s4333 = int_to_ptr.vmem [resolvable:$true] %s4332
          %4338 = dma.vmem_to_hbm [thread:$0]  %s4333, 256, %s9, [#allocation9], 128, 128, 8
        $region72: #{_encoder_jit.1} parent=51 // pred_fallthru
          _
        // Predicated region
        $region73: #{_encoder_jit.1} parent=51 // pred_check
          %p4339 = pneg %p227
        $region74: #{_encoder_jit.1} parent=51 // pred_check_branch
          %4341 = sbr.rel (%p4339) target = $region76
        $region75: #{_encoder_jit.1} parent=51 // pred_region
          %4342 = dma.done [#allocation6], 256
        $region76: #{_encoder_jit.1} parent=51 // pred_fallthru
          _
        // Predicated region
        $region77: #{_encoder_jit.1} parent=51 // pred_check
          %p4343 = pneg %p248
        $region78: #{_encoder_jit.1} parent=51 // pred_check_branch
          %4345 = sbr.rel (%p4343) target = $region80
        $region79: #{_encoder_jit.1} parent=51 // pred_region
          %4346 = dma.done [#allocation9], 256
        $region80: #{_encoder_jit.1} parent=51 // pred_fallthru
          _
      $region52: #{_encoder_jit.1} parent=5 // pred_fallthru
        _
      %p4347 = scmp.le.s32.totalorder 2, %s21
      // Predicated region
      $region81: #{_encoder_jit.1} parent=5 // pred_check
        %p4348 = pneg %p4347
      $region82: #{_encoder_jit.1} parent=5 // pred_check_branch
        %4350 = sbr.rel (%p4348) target = $region84
      $region83: #{_encoder_jit.1} parent=5 // pred_region
        %s4351 = ssub.s32 %s21, 2
      $region84: #{_encoder_jit.1} parent=5 // pred_fallthru
        _
    $region6: #{_encoder_jit.1} parent=1 // loop_footer
      %s25 = sadd.s32 1, %s21
    $region7: #{_encoder_jit.1} parent=1 // loop_footer_branch
      %20 = sbr.rel target = $region3
    $region8: #{_encoder_jit.1} parent=1 // loop_exit
      _
    %4352 = vsyncpa [#allocation5], 1
    %s4353 = scalar_lea.sflag [#allocation5], 1
    %4354 = vsyncpa %s4353, 1
    %4355 = vsyncpa [#allocation6], 1
    %s4356 = scalar_lea.sflag [#allocation6], 1
    %4357 = vsyncpa %s4356, 1
    %4358 = vsyncpa [#allocation9], 1

</llo_original>
